<compile_context>
chip_gen: v7x
topology: tpu7x:2x2x1
jax: 0.10.0
libtpu: 0.0.40
codegen_flags: <defaults>
</compile_context>

<pallas_src>
import functools
import math

import jax
import jax.numpy as jnp
from jax.experimental import pallas as pl
from jax.experimental.pallas import tpu as pltpu

# Set to jnp.bfloat16 on v6e/v7x for ~2x MXU throughput and half the HBM/VMEM traffic
# (accumulation stays f32 via preferred_element_type).  Kept f32 so the strict
# reference comparison below passes.
COMPUTE_DTYPE = jnp.float32
VMEM_LIMIT = 32 * 1024 * 1024  # explicit cap; safe headroom even on v7x (64 MiB physical)


def _pick_tile(dim, pref, align):
    """Largest tile <= pref that evenly divides dim and respects the TPU tiling
    alignment for that axis; falls back to the full dim (always legal)."""
    if dim <= pref:
        return dim
    t = (pref // align) * align
    while t >= align:
        if dim % t == 0:
            return t
        t -= align
    return dim


# ----------------------------------------------------------------------------
# Pallas kernels
# ----------------------------------------------------------------------------
def _linear_kernel(x_ref, w_ref, b_ref, o_ref, acc_ref, *, act):
    @pl.when(pl.program_id(2) == 0)
    def _():
        acc_ref[...] = jnp.zeros_like(acc_ref)

    acc_ref[...] += jnp.dot(
        x_ref[...].astype(COMPUTE_DTYPE),
        w_ref[...].astype(COMPUTE_DTYPE),
        preferred_element_type=jnp.float32)

    @pl.when(pl.program_id(2) == pl.num_programs(2) - 1)
    def _():
        y = acc_ref[...] + b_ref[...]
        if act == "relu":
            y = jnp.maximum(y, 0.0)
        o_ref[...] = y.astype(o_ref.dtype)


def linear_pl(x, w, b, act=None):
    """x: [M, K], w: [K, N], b: [N] -> x @ w + b (optional ReLU). Tiled K-accumulator matmul."""
    M, K = x.shape
    N = w.shape[1]
    tm = _pick_tile(M, 256, 8)
    tn = _pick_tile(N, 256, 128)
    tk = _pick_tile(K, 512, 128)
    grid = (M // tm, N // tn, K // tk)
    cost = pl.CostEstimate(flops=2 * M * K * N, transcendentals=0,
                           bytes_accessed=4 * (M * K + K * N + M * N))
    return pl.pallas_call(
        functools.partial(_linear_kernel, act=act),
        out_shape=jax.ShapeDtypeStruct((M, N), jnp.float32),
        grid=grid,
        in_specs=[
            pl.BlockSpec((tm, tk), lambda i, j, k: (i, k)),
            pl.BlockSpec((tk, tn), lambda i, j, k: (k, j)),
            pl.BlockSpec((1, tn), lambda i, j, k: (0, j)),
        ],
        out_specs=pl.BlockSpec((tm, tn), lambda i, j, k: (i, j)),
        scratch_shapes=[pltpu.VMEM((tm, tn), jnp.float32)],
        compiler_params=pltpu.CompilerParams(
            dimension_semantics=("parallel", "parallel", "arbitrary"),
            vmem_limit_bytes=VMEM_LIMIT),
        cost_estimate=cost,
    )(x, w, b.reshape(1, N))


def _linear_res_ln_kernel(x_ref, w_ref, b_ref, r_ref, g_ref, beta_ref, o_ref, acc_ref, *, eps):
    @pl.when(pl.program_id(1) == 0)
    def _():
        acc_ref[...] = jnp.zeros_like(acc_ref)

    acc_ref[...] += jnp.dot(
        x_ref[...].astype(COMPUTE_DTYPE),
        w_ref[...].astype(COMPUTE_DTYPE),
        preferred_element_type=jnp.float32)

    @pl.when(pl.program_id(1) == pl.num_programs(1) - 1)
    def _():
        z = acc_ref[...] + b_ref[...] + r_ref[...]
        mean = jnp.mean(z, axis=-1, keepdims=True)
        var = jnp.mean((z - mean) ** 2, axis=-1, keepdims=True)
        o_ref[...] = ((z - mean) * jax.lax.rsqrt(var + eps) * g_ref[...]
                      + beta_ref[...]).astype(o_ref.dtype)


def linear_res_ln_pl(x, w, b, res, gamma, beta, eps=1e-6):
    """LayerNorm(res + (x @ w + b)) fused: matmul with K-accumulator, LN epilogue on the
    last K step.  Output is full-width in N so the LN reduction stays in-kernel."""
    M, K = x.shape
    N = w.shape[1]
    tm = _pick_tile(M, 256, 8)
    tk = _pick_tile(K, 512, 128)
    grid = (M // tm, K // tk)
    cost = pl.CostEstimate(flops=2 * M * K * N + 10 * M * N, transcendentals=M,
                           bytes_accessed=4 * (M * K + K * N + 3 * M * N))
    return pl.pallas_call(
        functools.partial(_linear_res_ln_kernel, eps=eps),
        out_shape=jax.ShapeDtypeStruct((M, N), jnp.float32),
        grid=grid,
        in_specs=[
            pl.BlockSpec((tm, tk), lambda i, k: (i, k)),
            pl.BlockSpec((tk, N), lambda i, k: (k, 0)),
            pl.BlockSpec((1, N), lambda i, k: (0, 0)),
            pl.BlockSpec((tm, N), lambda i, k: (i, 0)),
            pl.BlockSpec((1, N), lambda i, k: (0, 0)),
            pl.BlockSpec((1, N), lambda i, k: (0, 0)),
        ],
        out_specs=pl.BlockSpec((tm, N), lambda i, k: (i, 0)),
        scratch_shapes=[pltpu.VMEM((tm, N), jnp.float32)],
        compiler_params=pltpu.CompilerParams(
            dimension_semantics=("parallel", "arbitrary"),
            vmem_limit_bytes=VMEM_LIMIT),
        cost_estimate=cost,
    )(x, w, b.reshape(1, N), res, gamma.reshape(1, N), beta.reshape(1, N))


def _attn_kernel(q_ref, k_ref, v_ref, bias_ref, o_ref, *, scale):
    q = q_ref[...][0]            # (H, Sq, dp)
    k = k_ref[...][0]            # (H, Sk, dp)
    v = v_ref[...][0]            # (H, Sk, dp)
    bias = bias_ref[...][0, 0]   # (Sq, Sk), shared across heads
    s = jnp.einsum("hqd,hkd->hqk", q, k, preferred_element_type=jnp.float32)
    s = s * scale + bias[None, :, :]
    s = s - jnp.max(s, axis=-1, keepdims=True)
    p = jnp.exp(s)
    denom = jnp.sum(p, axis=-1, keepdims=True)
    p = p * pl.reciprocal(denom, approx=True)     # EUP slot, frees the VALU divide
    out = jnp.einsum("hqk,hkd->hqd", p, v, preferred_element_type=jnp.float32)
    o_ref[...] = out[None].astype(o_ref.dtype)


def attn_pl(q, k, v, bias):
    """q/k/v: [B,H,S,dp]; bias: additive mask [B,1,Sq,Sk] -> [B,H,Sq,dp].
    One grid step per batch element processes all heads (amortizes grid overhead,
    mask DMA'd once per batch instead of once per head)."""
    B, H, Sq, dp = q.shape
    Sk = k.shape[2]
    scale = 1.0 / math.sqrt(dp)
    cost = pl.CostEstimate(
        flops=4 * B * H * Sq * Sk * dp,
        transcendentals=B * H * Sq * Sk,
        bytes_accessed=4 * (B * H * (Sq + 2 * Sk + Sq) * dp + B * Sq * Sk))
    return pl.pallas_call(
        functools.partial(_attn_kernel, scale=scale),
        out_shape=jax.ShapeDtypeStruct((B, H, Sq, dp), jnp.float32),
        grid=(B,),
        in_specs=[
            pl.BlockSpec((1, H, Sq, dp), lambda b: (b, 0, 0, 0)),
            pl.BlockSpec((1, H, Sk, dp), lambda b: (b, 0, 0, 0)),
            pl.BlockSpec((1, H, Sk, dp), lambda b: (b, 0, 0, 0)),
            pl.BlockSpec((1, 1, Sq, Sk), lambda b: (b, 0, 0, 0)),
        ],
        out_specs=pl.BlockSpec((1, H, Sq, dp), lambda b: (b, 0, 0, 0)),
        compiler_params=pltpu.CompilerParams(
            dimension_semantics=("parallel",),
            vmem_limit_bytes=VMEM_LIMIT),
        cost_estimate=cost,
    )(q, k, v, bias)


# ----------------------------------------------------------------------------
# Pure-jnp reference ops (for correctness check)
# ----------------------------------------------------------------------------
def linear_jnp(x, w, b, act=None):
    y = x @ w + b
    if act == "relu":
        y = jnp.maximum(y, 0.0)
    return y


def linear_res_ln_jnp(x, w, b, res, gamma, beta, eps=1e-6):
    z = x @ w + b + res
    m = z.mean(-1, keepdims=True)
    v = ((z - m) ** 2).mean(-1, keepdims=True)
    return (z - m) / jnp.sqrt(v + eps) * gamma + beta


def attn_jnp(q, k, v, bias):
    dp = q.shape[-1]
    s = jnp.einsum("bhqd,bhkd->bhqk", q, k) / math.sqrt(dp) + bias
    p = jax.nn.softmax(s, axis=-1)
    return jnp.einsum("bhqk,bhkd->bhqd", p, v)


PALLAS_OPS = {"linear": linear_pl, "linear_res_ln": linear_res_ln_pl, "attn": attn_pl}
JNP_OPS = {"linear": linear_jnp, "linear_res_ln": linear_res_ln_jnp, "attn": attn_jnp}


# ----------------------------------------------------------------------------
# Model (glue in plain JAX, hot paths through the kernels above)
# ----------------------------------------------------------------------------
def positional_encoding(max_len, d_model):
    position = jnp.arange(max_len, dtype=jnp.float32)[:, None]
    div_term = jnp.exp(
        jnp.arange(0, d_model, 2, dtype=jnp.float32) * (-math.log(10000.0) / d_model))
    pe = jnp.zeros((max_len, d_model), jnp.float32)
    pe = pe.at[:, 0::2].set(jnp.sin(position * div_term))
    pe = pe.at[:, 1::2].set(jnp.cos(position * div_term))
    # torch: pe.unsqueeze(0).transpose(0, 1) -> [max_len, 1, d_model]
    return pe[:, None, :]


def mask_to_bias(mask, B, Sq, Sk):
    """Additive attention bias [B, 1, Sq, Sk]; 0 where mask==1, -1e9 where mask==0.
    Shared across heads (BlockSpec reuses one block per batch)."""
    if mask is None:
        return jnp.zeros((B, 1, Sq, Sk), jnp.float32)
    bias = jnp.where(mask == 0, -1e9, 0.0).astype(jnp.float32)
    return jnp.broadcast_to(bias, (B, 1, Sq, Sk))


def self_mha_heads(p, x, bias, num_heads, ops):
    """Self-attention up to (but not including) the output 'dense' projection.
    QKV is a single fused [D, 3D] matmul."""
    B, S, D = x.shape
    H, dp = num_heads, D // num_heads
    qkv = ops["linear"](x.reshape(-1, D), p["qkv"]["w"], p["qkv"]["b"])
    qkv = qkv.reshape(B, S, 3, H, dp)
    q = qkv[:, :, 0].transpose(0, 2, 1, 3)   # [B,H,S,dp]
    k = qkv[:, :, 1].transpose(0, 2, 1, 3)
    v = qkv[:, :, 2].transpose(0, 2, 1, 3)
    out = ops["attn"](q, k, v, bias)         # [B,H,S,dp]
    # TODO(synk): head split/merge transposes left to XLA; could be folded into BlockSpec index_maps.
    return out.transpose(0, 2, 1, 3).reshape(B * S, D)


def cross_mha_heads(p, x_dec, enc_out, bias, num_heads, ops):
    """Matches the PyTorch call cross_attn(x, enc_output, enc_output, mask) with
    MultiHeadAttention.forward(v, k, q):  v = wv(x_dec), k = wk(enc), q = wq(enc).
    Q and K projections both read enc_out, so they are fused into one [D, 2D] matmul."""
    B, Sd, D = x_dec.shape
    Se = enc_out.shape[1]
    H, dp = num_heads, D // num_heads
    qk = ops["linear"](enc_out.reshape(-1, D), p["qk"]["w"], p["qk"]["b"]).reshape(B, Se, 2, H, dp)
    q = qk[:, :, 0].transpose(0, 2, 1, 3)    # [B,H,Se,dp]
    k = qk[:, :, 1].transpose(0, 2, 1, 3)
    v = ops["linear"](x_dec.reshape(-1, D), p["v"]["w"], p["v"]["b"]) \
        .reshape(B, Sd, H, dp).transpose(0, 2, 1, 3)
    out = ops["attn"](q, k, v, bias)         # requires Se == Sd (quirk of the reference code)
    return out.transpose(0, 2, 1, 3).reshape(B * Se, D)


def encoder_layer_forward(p, x, mask_bias, num_heads, ops):
    B, S, D = x.shape
    heads = self_mha_heads(p["self_attn"], x, mask_bias, num_heads, ops)
    x = ops["linear_res_ln"](heads, p["self_attn"]["dense"]["w"], p["self_attn"]["dense"]["b"],
                             x.reshape(-1, D), p["norm1"]["g"], p["norm1"]["b"]).reshape(B, S, D)
    h = ops["linear"](x.reshape(-1, D), p["ff"]["linear1"]["w"], p["ff"]["linear1"]["b"], act="relu")
    x = ops["linear_res_ln"](h, p["ff"]["linear2"]["w"], p["ff"]["linear2"]["b"],
                             x.reshape(-1, D), p["norm2"]["g"], p["norm2"]["b"]).reshape(B, S, D)
    return x


def decoder_layer_forward(p, x, enc_out, la_bias, pad_bias, num_heads, ops):
    B, S, D = x.shape
    heads = self_mha_heads(p["self_attn"], x, la_bias, num_heads, ops)
    x = ops["linear_res_ln"](heads, p["self_attn"]["dense"]["w"], p["self_attn"]["dense"]["b"],
                             x.reshape(-1, D), p["norm1"]["g"], p["norm1"]["b"]).reshape(B, S, D)
    heads = cross_mha_heads(p["cross_attn"], x, enc_out, pad_bias, num_heads, ops)
    x = ops["linear_res_ln"](heads, p["cross_attn"]["dense"]["w"], p["cross_attn"]["dense"]["b"],
                             x.reshape(-1, D), p["norm2"]["g"], p["norm2"]["b"]).reshape(B, S, D)
    h = ops["linear"](x.reshape(-1, D), p["ff"]["linear1"]["w"], p["ff"]["linear1"]["b"], act="relu")
    x = ops["linear_res_ln"](h, p["ff"]["linear2"]["w"], p["ff"]["linear2"]["b"],
                             x.reshape(-1, D), p["norm3"]["g"], p["norm3"]["b"]).reshape(B, S, D)
    return x


def encoder_forward(p, tokens, mask_bias, cfg, ops):
    S = tokens.shape[1]
    # TODO(synk): embedding gather + positional add left to plain JAX (no clean Pallas win here).
    x = jnp.take(p["embedding"], tokens, axis=0) * math.sqrt(cfg["d_model"])
    x = x + p["pos_encoding"][:S, :]   # reproduces the torch broadcast (requires B == S)
    for lp in p["layers"]:
        x = encoder_layer_forward(lp, x, mask_bias, cfg["num_heads"], ops)
    return x


def decoder_forward(p, tokens, enc_out, la_bias, pad_bias, cfg, ops):
    S = tokens.shape[1]
    x = jnp.take(p["embedding"], tokens, axis=0) * math.sqrt(cfg["d_model"])
    x = x + p["pos_encoding"][:S, :]
    for lp in p["layers"]:
        x = decoder_layer_forward(lp, x, enc_out, la_bias, pad_bias, cfg["num_heads"], ops)
    return x


def t5_forward(params, input_ids, decoder_input_ids, enc_padding_mask,
               look_ahead_mask, dec_padding_mask, cfg, ops):
    B, S_enc = input_ids.shape
    S_dec = decoder_input_ids.shape[1]
    enc_bias = mask_to_bias(enc_padding_mask, B, S_enc, S_enc)
    la_bias = mask_to_bias(look_ahead_mask, B, S_dec, S_dec)
    # cross-attn scores are [B, H, S_enc, S_enc] (q and k both come from enc_out)
    pad_bias = mask_to_bias(dec_padding_mask, B, S_enc, S_enc)

    enc_out = encoder_forward(params["encoder"], input_ids, enc_bias, cfg, ops)
    dec_out = decoder_forward(params["decoder"], decoder_input_ids, enc_out,
                              la_bias, pad_bias, cfg, ops)
    B2, S, D = dec_out.shape
    logits = ops["linear"](dec_out.reshape(-1, D),
                           params["final"]["w"], params["final"]["b"])
    return logits.reshape(B2, S, cfg["vocab_size"])


# ----------------------------------------------------------------------------
# Deterministic parameter init (fused weight layouts stored directly)
# ----------------------------------------------------------------------------
def _init_linear(key, d_in, d_out, scale=0.05):
    kw, kb = jax.random.split(key)
    return {"w": scale * jax.random.normal(kw, (d_in, d_out), jnp.float32),
            "b": scale * jax.random.normal(kb, (d_out,), jnp.float32)}


def _init_self_mha(key, d_model):
    k1, k2 = jax.random.split(key)
    return {"qkv": _init_linear(k1, d_model, 3 * d_model),   # [Wq | Wk | Wv]
            "dense": _init_linear(k2, d_model, d_model)}


def _init_cross_mha(key, d_model):
    k1, k2, k3 = jax.random.split(key, 3)
    return {"qk": _init_linear(k1, d_model, 2 * d_model),    # [Wq | Wk] (both read enc_out)
            "v": _init_linear(k2, d_model, d_model),
            "dense": _init_linear(k3, d_model, d_model)}


def _init_ln(d_model):
    return {"g": jnp.ones((d_model,), jnp.float32), "b": jnp.zeros((d_model,), jnp.float32)}


def _init_ffn(key, d_model, d_ff):
    k1, k2 = jax.random.split(key)
    return {"linear1": _init_linear(k1, d_model, d_ff),
            "linear2": _init_linear(k2, d_ff, d_model)}


def _init_encoder_layer(key, cfg):
    k1, k2 = jax.random.split(key)
    return {"self_attn": _init_self_mha(k1, cfg["d_model"]),
            "ff": _init_ffn(k2, cfg["d_model"], cfg["d_ff"]),
            "norm1": _init_ln(cfg["d_model"]), "norm2": _init_ln(cfg["d_model"])}


def _init_decoder_layer(key, cfg):
    k1, k2, k3 = jax.random.split(key, 3)
    return {"self_attn": _init_self_mha(k1, cfg["d_model"]),
            "cross_attn": _init_cross_mha(k2, cfg["d_model"]),
            "ff": _init_ffn(k3, cfg["d_model"], cfg["d_ff"]),
            "norm1": _init_ln(cfg["d_model"]), "norm2": _init_ln(cfg["d_model"]),
            "norm3": _init_ln(cfg["d_model"])}


def init_params(key, cfg):
    k_enc_emb, k_dec_emb, k_fin, k_enc, k_dec = jax.random.split(key, 5)
    pe = positional_encoding(cfg["max_length"], cfg["d_model"])
    enc_layers = [_init_encoder_layer(k, cfg)
                  for k in jax.random.split(k_enc, cfg["num_layers"])]
    dec_layers = [_init_decoder_layer(k, cfg)
                  for k in jax.random.split(k_dec, cfg["num_layers"])]
    return {
        "encoder": {"embedding": 0.05 * jax.random.normal(
                        k_enc_emb, (cfg["vocab_size"], cfg["d_model"]), jnp.float32),
                    "pos_encoding": pe, "layers": enc_layers},
        "decoder": {"embedding": 0.05 * jax.random.normal(
                        k_dec_emb, (cfg["vocab_size"], cfg["d_model"]), jnp.float32),
                    "pos_encoding": pe, "layers": dec_layers},
        "final": _init_linear(k_fin, cfg["d_model"], cfg["vocab_size"]),
    }


# ----------------------------------------------------------------------------
# Demo
# ----------------------------------------------------------------------------
if __name__ == "__main__":
    cfg = dict(vocab_size=256, d_model=64, d_ff=128, num_heads=4,
               num_layers=2, max_length=16)

    # The reference code's pos-encoding broadcast and cross-attn matmul require B == S.
    B = 8
    S_ENC = 8
    S_DEC = 8

    key = jax.random.PRNGKey(0)
    k_par, k_in, k_dec = jax.random.split(key, 3)
    params = init_params(k_par, cfg)

    input_ids = jax.random.randint(k_in, (B, S_ENC), 1, cfg["vocab_size"], jnp.int32)
    decoder_input_ids = jax.random.randint(k_dec, (B, S_DEC), 1, cfg["vocab_size"], jnp.int32)

    # Masks (1 = keep, 0 = masked, matching masked_fill(mask == 0, -1e9)).
    enc_padding_mask = jnp.ones((B, 1, 1, S_ENC), jnp.float32)
    look_ahead_mask = jnp.tril(jnp.ones((S_DEC, S_DEC), jnp.float32))[None, None]
    dec_padding_mask = jnp.ones((B, 1, 1, S_ENC), jnp.float32)

    @jax.jit
    def run_pallas(params, input_ids, decoder_input_ids):
        return t5_forward(params, input_ids, decoder_input_ids,
                          enc_padding_mask, look_ahead_mask, dec_padding_mask,
                          cfg, PALLAS_OPS)

    @jax.jit
    def run_ref(params, input_ids, decoder_input_ids):
        return t5_forward(params, input_ids, decoder_input_ids,
                          enc_padding_mask, look_ahead_mask, dec_padding_mask,
                          cfg, JNP_OPS)

    logits = jax.block_until_ready(run_pallas(params, input_ids, decoder_input_ids))
    ref = jax.block_until_ready(run_ref(params, input_ids, decoder_input_ids))

    assert logits.shape == (B, S_DEC, cfg["vocab_size"]), logits.shape
    # Tolerance covers the approximate (EUP) softmax reciprocal in the Pallas path.
    assert jnp.allclose(logits, ref, rtol=2e-2, atol=2e-2), \
        float(jnp.max(jnp.abs(logits - ref)))

    print("KERNEL_OK")
</pallas_src>

<mosaic_0001>
module attributes {stable_mosaic.version = 11 : i64} {
  func.func @_linear_kernel(%arg0: i32, %arg1: i32, %arg2: i32, %arg3: memref<64x64xf32, #tpu.memory_space<vmem>>, %arg4: memref<64x192xf32, #tpu.memory_space<vmem>>, %arg5: memref<1x192xf32, #tpu.memory_space<vmem>>, %arg6: memref<64x192xf32, #tpu.memory_space<vmem>>, %arg7: memref<64x192xf32, #tpu.memory_space<vmem>>) attributes {dimension_semantics = [#tpu.dimension_semantics<parallel>, #tpu.dimension_semantics<parallel>, #tpu.dimension_semantics<arbitrary>], iteration_bounds = array<i64: 1, 1, 1>, scalar_prefetch = 0 : i64, scratch_operands = 1 : i64, tpu.core_type = #tpu.core_type<tc>, window_params = [{transform_indices = @transform_0, window_bounds = array<i64: 64, 64>}, {transform_indices = @transform_1, window_bounds = array<i64: 64, 192>}, {transform_indices = @transform_2, window_bounds = array<i64: 1, 192>}, {transform_indices = @transform_3, window_bounds = array<i64: 64, 192>}]} {
    %c0_i32 = arith.constant 0 : i32
    %0 = arith.cmpi eq, %arg2, %c0_i32 : i32
    %1 = arith.extui %0 : i1 to i32
    %c0_i32_0 = arith.constant 0 : i32
    %2 = arith.cmpi ne, %1, %c0_i32_0 : i32
    scf.if %2 {
      %cst_10 = arith.constant 0.000000e+00 : f32
      %12 = vector.broadcast %cst_10 : f32 to vector<64x192xf32>
      %c0_11 = arith.constant 0 : index
      %c0_12 = arith.constant 0 : index
      %13 = vector.load %arg7[%c0_11, %c0_12] : memref<64x192xf32, #tpu.memory_space<vmem>>, vector<64x192xf32>
      tpu.vector_store %arg7[%c0_11, %c0_12], %12 {strides = array<i32>} : memref<64x192xf32, #tpu.memory_space<vmem>>, vector<64x192xf32>,
    } else {
    }
    %c0 = arith.constant 0 : index
    %c0_1 = arith.constant 0 : index
    %3 = vector.load %arg7[%c0, %c0_1] : memref<64x192xf32, #tpu.memory_space<vmem>>, vector<64x192xf32>
    %c0_2 = arith.constant 0 : index
    %c0_3 = arith.constant 0 : index
    %4 = vector.load %arg3[%c0_2, %c0_3] : memref<64x64xf32, #tpu.memory_space<vmem>>, vector<64x64xf32>
    %c0_4 = arith.constant 0 : index
    %c0_5 = arith.constant 0 : index
    %5 = vector.load %arg4[%c0_4, %c0_5] : memref<64x192xf32, #tpu.memory_space<vmem>>, vector<64x192xf32>
    %cst = arith.constant dense<0.000000e+00> : vector<64x192xf32>
    %6 = tpu.matmul %4, %5, %cst {dimension_numbers = #tpu.dot_dimension_numbers<[1], [0], [0], [1], [0, 0, 1, 1], [], []>} : vector<64x64xf32>, vector<64x192xf32>, vector<64x192xf32> -> vector<64x192xf32>
    %7 = arith.addf %3, %6 : vector<64x192xf32>
    %c0_6 = arith.constant 0 : index
    %c0_7 = arith.constant 0 : index
    %8 = vector.load %arg7[%c0_6, %c0_7] : memref<64x192xf32, #tpu.memory_space<vmem>>, vector<64x192xf32>
    tpu.vector_store %arg7[%c0_6, %c0_7], %7 {strides = array<i32>} : memref<64x192xf32, #tpu.memory_space<vmem>>, vector<64x192xf32>,
    %c0_i32_8 = arith.constant 0 : i32
    %9 = arith.cmpi eq, %arg2, %c0_i32_8 : i32
    %10 = arith.extui %9 : i1 to i32
    %c0_i32_9 = arith.constant 0 : i32
    %11 = arith.cmpi ne, %10, %c0_i32_9 : i32
    scf.if %11 {
      %c0_10 = arith.constant 0 : index
      %c0_11 = arith.constant 0 : index
      %12 = vector.load %arg7[%c0_10, %c0_11] : memref<64x192xf32, #tpu.memory_space<vmem>>, vector<64x192xf32>
      %c0_12 = arith.constant 0 : index
      %c0_13 = arith.constant 0 : index
      %13 = vector.load %arg5[%c0_12, %c0_13] : memref<1x192xf32, #tpu.memory_space<vmem>>, vector<1x192xf32>
      %14 = vector.broadcast %13 : vector<1x192xf32> to vector<64x192xf32>
      %15 = arith.addf %12, %14 : vector<64x192xf32>
      %c0_14 = arith.constant 0 : index
      %c0_15 = arith.constant 0 : index
      %16 = vector.load %arg6[%c0_14, %c0_15] : memref<64x192xf32, #tpu.memory_space<vmem>>, vector<64x192xf32>
      tpu.vector_store %arg6[%c0_14, %c0_15], %15 {strides = array<i32>} : memref<64x192xf32, #tpu.memory_space<vmem>>, vector<64x192xf32>,
    } else {
    }
    return
  }
  func.func @transform_0(%arg0: i32, %arg1: i32, %arg2: i32) -> (i32, i32) {
    %c0_i32 = arith.constant 0 : i32
    return %arg0, %arg2 : i32, i32
  }
  func.func @transform_1(%arg0: i32, %arg1: i32, %arg2: i32) -> (i32, i32) {
    %c0_i32 = arith.constant 0 : i32
    return %arg2, %arg1 : i32, i32
  }
  func.func @transform_2(%arg0: i32, %arg1: i32, %arg2: i32) -> (i32, i32) {
    %c0_i32 = arith.constant 0 : i32
    %c0_i32_0 = arith.constant 0 : i32
    return %c0_i32, %arg1 : i32, i32
  }
  func.func @transform_3(%arg0: i32, %arg1: i32, %arg2: i32) -> (i32, i32) {
    %c0_i32 = arith.constant 0 : i32
    return %arg0, %arg1 : i32, i32
  }
}

module attributes {stable_mosaic.version = 11 : i64} {
  func.func @_attn_kernel(%arg0: i32, %arg1: memref<1x4x8x16xf32, #tpu.memory_space<vmem>>, %arg2: memref<1x4x8x16xf32, #tpu.memory_space<vmem>>, %arg3: memref<1x4x8x16xf32, #tpu.memory_space<vmem>>, %arg4: memref<1x1x8x8xf32, #tpu.memory_space<vmem>>, %arg5: memref<1x4x8x16xf32, #tpu.memory_space<vmem>>) attributes {dimension_semantics = [#tpu.dimension_semantics<parallel>], iteration_bounds = array<i64: 8>, scalar_prefetch = 0 : i64, scratch_operands = 0 : i64, tpu.core_type = #tpu.core_type<tc>, window_params = [{transform_indices = @transform_0, window_bounds = array<i64: 1, 4, 8, 16>}, {transform_indices = @transform_1, window_bounds = array<i64: 1, 4, 8, 16>}, {transform_indices = @transform_2, window_bounds = array<i64: 1, 4, 8, 16>}, {transform_indices = @transform_3, window_bounds = array<i64: 1, 1, 8, 8>}, {transform_indices = @transform_4, window_bounds = array<i64: 1, 4, 8, 16>}]} {
    %c0 = arith.constant 0 : index
    %c0_0 = arith.constant 0 : index
    %c0_1 = arith.constant 0 : index
    %c0_2 = arith.constant 0 : index
    %0 = vector.load %arg1[%c0, %c0_0, %c0_1, %c0_2] : memref<1x4x8x16xf32, #tpu.memory_space<vmem>>, vector<1x4x8x16xf32>
    %1 = vector.shape_cast %0 : vector<1x4x8x16xf32> to vector<4x8x16xf32>
    %c0_3 = arith.constant 0 : index
    %c0_4 = arith.constant 0 : index
    %c0_5 = arith.constant 0 : index
    %c0_6 = arith.constant 0 : index
    %2 = vector.load %arg2[%c0_3, %c0_4, %c0_5, %c0_6] : memref<1x4x8x16xf32, #tpu.memory_space<vmem>>, vector<1x4x8x16xf32>
    %3 = vector.shape_cast %2 : vector<1x4x8x16xf32> to vector<4x8x16xf32>
    %c0_7 = arith.constant 0 : index
    %c0_8 = arith.constant 0 : index
    %c0_9 = arith.constant 0 : index
    %c0_10 = arith.constant 0 : index
    %4 = vector.load %arg3[%c0_7, %c0_8, %c0_9, %c0_10] : memref<1x4x8x16xf32, #tpu.memory_space<vmem>>, vector<1x4x8x16xf32>
    %5 = vector.shape_cast %4 : vector<1x4x8x16xf32> to vector<4x8x16xf32>
    %c0_11 = arith.constant 0 : index
    %c0_12 = arith.constant 0 : index
    %c0_13 = arith.constant 0 : index
    %c0_14 = arith.constant 0 : index
    %6 = vector.load %arg4[%c0_11, %c0_12, %c0_13, %c0_14] : memref<1x1x8x8xf32, #tpu.memory_space<vmem>>, vector<1x1x8x8xf32>
    %7 = vector.shape_cast %6 : vector<1x1x8x8xf32> to vector<8x8xf32>
    "tpu.trace_start"() <{level = 10 : i32, message = "hqd,hkd->hqk"}> : () -> ()
    %cst = arith.constant dense<0.000000e+00> : vector<4x8x8xf32>
    %8 = tpu.matmul %1, %3, %cst {dimension_numbers = #tpu.dot_dimension_numbers<[2], [2], [1], [1], [0, 0, 0, 1, 1, 1], [0], [0]>} : vector<4x8x16xf32>, vector<4x8x16xf32>, vector<4x8x8xf32> -> vector<4x8x8xf32>
    "tpu.trace_stop"() : () -> ()
    %cst_15 = arith.constant 2.500000e-01 : f32
    %9 = vector.broadcast %cst_15 : f32 to vector<4x8x8xf32>
    %10 = arith.mulf %8, %9 : vector<4x8x8xf32>
    %11 = vector.shape_cast %7 : vector<8x8xf32> to vector<1x8x8xf32>
    %12 = vector.broadcast %11 : vector<1x8x8xf32> to vector<4x8x8xf32>
    %13 = arith.addf %10, %12 : vector<4x8x8xf32>
    %cst_16 = arith.constant dense<0xFF800000> : vector<4x8xf32>
    %14 = vector.multi_reduction <maximumf>, %13, %cst_16 [2] : vector<4x8x8xf32> to vector<4x8xf32>
    %15 = vector.shape_cast %14 : vector<4x8xf32> to vector<4x8x1xf32>
    %16 = vector.broadcast %15 : vector<4x8x1xf32> to vector<4x8x8xf32>
    %17 = arith.subf %13, %16 : vector<4x8x8xf32>
    %18 = math.exp %17 : vector<4x8x8xf32>
    %cst_17 = arith.constant dense<0.000000e+00> : vector<4x8xf32>
    %19 = vector.multi_reduction <add>, %18, %cst_17 [2] : vector<4x8x8xf32> to vector<4x8xf32>
    %20 = vector.shape_cast %19 : vector<4x8xf32> to vector<4x8x1xf32>
    %21 = tpu.reciprocal %20 {approx = true} : vector<4x8x1xf32> -> vector<4x8x1xf32>
    %22 = vector.broadcast %21 : vector<4x8x1xf32> to vector<4x8x8xf32>
    %23 = arith.mulf %18, %22 : vector<4x8x8xf32>
    "tpu.trace_start"() <{level = 10 : i32, message = "hqk,hkd->hqd"}> : () -> ()
    %cst_18 = arith.constant dense<0.000000e+00> : vector<4x8x16xf32>
    %24 = tpu.matmul %23, %5, %cst_18 {dimension_numbers = #tpu.dot_dimension_numbers<[2], [1], [1], [2], [0, 0, 0, 1, 1, 2], [0], [0]>} : vector<4x8x8xf32>, vector<4x8x16xf32>, vector<4x8x16xf32> -> vector<4x8x16xf32>
    "tpu.trace_stop"() : () -> ()
    %25 = vector.shape_cast %24 : vector<4x8x16xf32> to vector<1x4x8x16xf32>
    %c0_19 = arith.constant 0 : index
    %c0_20 = arith.constant 0 : index
    %c0_21 = arith.constant 0 : index
    %c0_22 = arith.constant 0 : index
    %26 = vector.load %arg5[%c0_19, %c0_20, %c0_21, %c0_22] : memref<1x4x8x16xf32, #tpu.memory_space<vmem>>, vector<1x4x8x16xf32>
    tpu.vector_store %arg5[%c0_19, %c0_20, %c0_21, %c0_22], %25 {strides = array<i32>} : memref<1x4x8x16xf32, #tpu.memory_space<vmem>>, vector<1x4x8x16xf32>,
    return
  }
  func.func @transform_0(%arg0: i32) -> (i32, i32, i32, i32) {
    %c0_i32 = arith.constant 0 : i32
    %c0_i32_0 = arith.constant 0 : i32
    %c0_i32_1 = arith.constant 0 : i32
    %c0_i32_2 = arith.constant 0 : i32
    return %arg0, %c0_i32, %c0_i32_0, %c0_i32_1 : i32, i32, i32, i32
  }
  func.func @transform_1(%arg0: i32) -> (i32, i32, i32, i32) {
    %c0_i32 = arith.constant 0 : i32
    %c0_i32_0 = arith.constant 0 : i32
    %c0_i32_1 = arith.constant 0 : i32
    %c0_i32_2 = arith.constant 0 : i32
    return %arg0, %c0_i32, %c0_i32_0, %c0_i32_1 : i32, i32, i32, i32
  }
  func.func @transform_2(%arg0: i32) -> (i32, i32, i32, i32) {
    %c0_i32 = arith.constant 0 : i32
    %c0_i32_0 = arith.constant 0 : i32
    %c0_i32_1 = arith.constant 0 : i32
    %c0_i32_2 = arith.constant 0 : i32
    return %arg0, %c0_i32, %c0_i32_0, %c0_i32_1 : i32, i32, i32, i32
  }
  func.func @transform_3(%arg0: i32) -> (i32, i32, i32, i32) {
    %c0_i32 = arith.constant 0 : i32
    %c0_i32_0 = arith.constant 0 : i32
    %c0_i32_1 = arith.constant 0 : i32
    %c0_i32_2 = arith.constant 0 : i32
    return %arg0, %c0_i32, %c0_i32_0, %c0_i32_1 : i32, i32, i32, i32
  }
  func.func @transform_4(%arg0: i32) -> (i32, i32, i32, i32) {
    %c0_i32 = arith.constant 0 : i32
    %c0_i32_0 = arith.constant 0 : i32
    %c0_i32_1 = arith.constant 0 : i32
    %c0_i32_2 = arith.constant 0 : i32
    return %arg0, %c0_i32, %c0_i32_0, %c0_i32_1 : i32, i32, i32, i32
  }
}

module attributes {stable_mosaic.version = 11 : i64} {
  func.func @_linear_kernel(%arg0: i32, %arg1: i32, %arg2: i32, %arg3: memref<64x64xf32, #tpu.memory_space<vmem>>, %arg4: memref<64x128xf32, #tpu.memory_space<vmem>>, %arg5: memref<1x128xf32, #tpu.memory_space<vmem>>, %arg6: memref<64x128xf32, #tpu.memory_space<vmem>>, %arg7: memref<64x128xf32, #tpu.memory_space<vmem>>) attributes {dimension_semantics = [#tpu.dimension_semantics<parallel>, #tpu.dimension_semantics<parallel>, #tpu.dimension_semantics<arbitrary>], iteration_bounds = array<i64: 1, 1, 1>, scalar_prefetch = 0 : i64, scratch_operands = 1 : i64, tpu.core_type = #tpu.core_type<tc>, window_params = [{transform_indices = @transform_0, window_bounds = array<i64: 64, 64>}, {transform_indices = @transform_1, window_bounds = array<i64: 64, 128>}, {transform_indices = @transform_2, window_bounds = array<i64: 1, 128>}, {transform_indices = @transform_3, window_bounds = array<i64: 64, 128>}]} {
    %c0_i32 = arith.constant 0 : i32
    %0 = arith.cmpi eq, %arg2, %c0_i32 : i32
    %1 = arith.extui %0 : i1 to i32
    %c0_i32_0 = arith.constant 0 : i32
    %2 = arith.cmpi ne, %1, %c0_i32_0 : i32
    scf.if %2 {
      %cst_10 = arith.constant 0.000000e+00 : f32
      %12 = vector.broadcast %cst_10 : f32 to vector<64x128xf32>
      %c0_11 = arith.constant 0 : index
      %c0_12 = arith.constant 0 : index
      %13 = vector.load %arg7[%c0_11, %c0_12] : memref<64x128xf32, #tpu.memory_space<vmem>>, vector<64x128xf32>
      tpu.vector_store %arg7[%c0_11, %c0_12], %12 {strides = array<i32>} : memref<64x128xf32, #tpu.memory_space<vmem>>, vector<64x128xf32>,
    } else {
    }
    %c0 = arith.constant 0 : index
    %c0_1 = arith.constant 0 : index
    %3 = vector.load %arg7[%c0, %c0_1] : memref<64x128xf32, #tpu.memory_space<vmem>>, vector<64x128xf32>
    %c0_2 = arith.constant 0 : index
    %c0_3 = arith.constant 0 : index
    %4 = vector.load %arg3[%c0_2, %c0_3] : memref<64x64xf32, #tpu.memory_space<vmem>>, vector<64x64xf32>
    %c0_4 = arith.constant 0 : index
    %c0_5 = arith.constant 0 : index
    %5 = vector.load %arg4[%c0_4, %c0_5] : memref<64x128xf32, #tpu.memory_space<vmem>>, vector<64x128xf32>
    %cst = arith.constant dense<0.000000e+00> : vector<64x128xf32>
    %6 = tpu.matmul %4, %5, %cst {dimension_numbers = #tpu.dot_dimension_numbers<[1], [0], [0], [1], [0, 0, 1, 1], [], []>} : vector<64x64xf32>, vector<64x128xf32>, vector<64x128xf32> -> vector<64x128xf32>
    %7 = arith.addf %3, %6 : vector<64x128xf32>
    %c0_6 = arith.constant 0 : index
    %c0_7 = arith.constant 0 : index
    %8 = vector.load %arg7[%c0_6, %c0_7] : memref<64x128xf32, #tpu.memory_space<vmem>>, vector<64x128xf32>
    tpu.vector_store %arg7[%c0_6, %c0_7], %7 {strides = array<i32>} : memref<64x128xf32, #tpu.memory_space<vmem>>, vector<64x128xf32>,
    %c0_i32_8 = arith.constant 0 : i32
    %9 = arith.cmpi eq, %arg2, %c0_i32_8 : i32
    %10 = arith.extui %9 : i1 to i32
    %c0_i32_9 = arith.constant 0 : i32
    %11 = arith.cmpi ne, %10, %c0_i32_9 : i32
    scf.if %11 {
      %c0_10 = arith.constant 0 : index
      %c0_11 = arith.constant 0 : index
      %12 = vector.load %arg7[%c0_10, %c0_11] : memref<64x128xf32, #tpu.memory_space<vmem>>, vector<64x128xf32>
      %c0_12 = arith.constant 0 : index
      %c0_13 = arith.constant 0 : index
      %13 = vector.load %arg5[%c0_12, %c0_13] : memref<1x128xf32, #tpu.memory_space<vmem>>, vector<1x128xf32>
      %14 = vector.broadcast %13 : vector<1x128xf32> to vector<64x128xf32>
      %15 = arith.addf %12, %14 : vector<64x128xf32>
      %cst_14 = arith.constant 0.000000e+00 : f32
      %16 = vector.broadcast %cst_14 : f32 to vector<64x128xf32>
      %17 = arith.maximumf %15, %16 : vector<64x128xf32>
      %c0_15 = arith.constant 0 : index
      %c0_16 = arith.constant 0 : index
      %18 = vector.load %arg6[%c0_15, %c0_16] : memref<64x128xf32, #tpu.memory_space<vmem>>, vector<64x128xf32>
      tpu.vector_store %arg6[%c0_15, %c0_16], %17 {strides = array<i32>} : memref<64x128xf32, #tpu.memory_space<vmem>>, vector<64x128xf32>,
    } else {
    }
    return
  }
  func.func @transform_0(%arg0: i32, %arg1: i32, %arg2: i32) -> (i32, i32) {
    %c0_i32 = arith.constant 0 : i32
    return %arg0, %arg2 : i32, i32
  }
  func.func @transform_1(%arg0: i32, %arg1: i32, %arg2: i32) -> (i32, i32) {
    %c0_i32 = arith.constant 0 : i32
    return %arg2, %arg1 : i32, i32
  }
  func.func @transform_2(%arg0: i32, %arg1: i32, %arg2: i32) -> (i32, i32) {
    %c0_i32 = arith.constant 0 : i32
    %c0_i32_0 = arith.constant 0 : i32
    return %c0_i32, %arg1 : i32, i32
  }
  func.func @transform_3(%arg0: i32, %arg1: i32, %arg2: i32) -> (i32, i32) {
    %c0_i32 = arith.constant 0 : i32
    return %arg0, %arg1 : i32, i32
  }
}

module attributes {stable_mosaic.version = 11 : i64} {
  func.func @_linear_res_ln_kernel(%arg0: i32, %arg1: i32, %arg2: memref<64x64xf32, #tpu.memory_space<vmem>>, %arg3: memref<64x64xf32, #tpu.memory_space<vmem>>, %arg4: memref<1x64xf32, #tpu.memory_space<vmem>>, %arg5: memref<64x64xf32, #tpu.memory_space<vmem>>, %arg6: memref<1x64xf32, #tpu.memory_space<vmem>>, %arg7: memref<1x64xf32, #tpu.memory_space<vmem>>, %arg8: memref<64x64xf32, #tpu.memory_space<vmem>>, %arg9: memref<64x64xf32, #tpu.memory_space<vmem>>) attributes {dimension_semantics = [#tpu.dimension_semantics<parallel>, #tpu.dimension_semantics<arbitrary>], iteration_bounds = array<i64: 1, 1>, scalar_prefetch = 0 : i64, scratch_operands = 1 : i64, tpu.core_type = #tpu.core_type<tc>, window_params = [{transform_indices = @transform_0, window_bounds = array<i64: 64, 64>}, {transform_indices = @transform_1, window_bounds = array<i64: 64, 64>}, {pipeline_mode = #tpu.pipeline_mode<synchronous>, transform_indices = @transform_2, window_bounds = array<i64: 1, 64>}, {transform_indices = @transform_3, window_bounds = array<i64: 64, 64>}, {pipeline_mode = #tpu.pipeline_mode<synchronous>, transform_indices = @transform_4, window_bounds = array<i64: 1, 64>}, {pipeline_mode = #tpu.pipeline_mode<synchronous>, transform_indices = @transform_5, window_bounds = array<i64: 1, 64>}, {transform_indices = @transform_6, window_bounds = array<i64: 64, 64>}]} {
    %c0_i32 = arith.constant 0 : i32
    %0 = arith.cmpi eq, %arg1, %c0_i32 : i32
    %1 = arith.extui %0 : i1 to i32
    %c0_i32_0 = arith.constant 0 : i32
    %2 = arith.cmpi ne, %1, %c0_i32_0 : i32
    scf.if %2 {
      %cst_10 = arith.constant 0.000000e+00 : f32
      %12 = vector.broadcast %cst_10 : f32 to vector<64x64xf32>
      %c0_11 = arith.constant 0 : index
      %c0_12 = arith.constant 0 : index
      %13 = vector.load %arg9[%c0_11, %c0_12] : memref<64x64xf32, #tpu.memory_space<vmem>>, vector<64x64xf32>
      tpu.vector_store %arg9[%c0_11, %c0_12], %12 {strides = array<i32>} : memref<64x64xf32, #tpu.memory_space<vmem>>, vector<64x64xf32>,
    } else {
    }
    %c0 = arith.constant 0 : index
    %c0_1 = arith.constant 0 : index
    %3 = vector.load %arg9[%c0, %c0_1] : memref<64x64xf32, #tpu.memory_space<vmem>>, vector<64x64xf32>
    %c0_2 = arith.constant 0 : index
    %c0_3 = arith.constant 0 : index
    %4 = vector.load %arg2[%c0_2, %c0_3] : memref<64x64xf32, #tpu.memory_space<vmem>>, vector<64x64xf32>
    %c0_4 = arith.constant 0 : index
    %c0_5 = arith.constant 0 : index
    %5 = vector.load %arg3[%c0_4, %c0_5] : memref<64x64xf32, #tpu.memory_space<vmem>>, vector<64x64xf32>
    %cst = arith.constant dense<0.000000e+00> : vector<64x64xf32>
    %6 = tpu.matmul %4, %5, %cst {dimension_numbers = #tpu.dot_dimension_numbers<[1], [0], [0], [1], [0, 0, 1, 1], [], []>} : vector<64x64xf32>, vector<64x64xf32>, vector<64x64xf32> -> vector<64x64xf32>
    %7 = arith.addf %3, %6 : vector<64x64xf32>
    %c0_6 = arith.constant 0 : index
    %c0_7 = arith.constant 0 : index
    %8 = vector.load %arg9[%c0_6, %c0_7] : memref<64x64xf32, #tpu.memory_space<vmem>>, vector<64x64xf32>
    tpu.vector_store %arg9[%c0_6, %c0_7], %7 {strides = array<i32>} : memref<64x64xf32, #tpu.memory_space<vmem>>, vector<64x64xf32>,
    %c0_i32_8 = arith.constant 0 : i32
    %9 = arith.cmpi eq, %arg1, %c0_i32_8 : i32
    %10 = arith.extui %9 : i1 to i32
    %c0_i32_9 = arith.constant 0 : i32
    %11 = arith.cmpi ne, %10, %c0_i32_9 : i32
    scf.if %11 {
      %c0_10 = arith.constant 0 : index
      %c0_11 = arith.constant 0 : index
      %12 = vector.load %arg9[%c0_10, %c0_11] : memref<64x64xf32, #tpu.memory_space<vmem>>, vector<64x64xf32>
      %c0_12 = arith.constant 0 : index
      %c0_13 = arith.constant 0 : index
      %13 = vector.load %arg4[%c0_12, %c0_13] : memref<1x64xf32, #tpu.memory_space<vmem>>, vector<1x64xf32>
      %14 = vector.broadcast %13 : vector<1x64xf32> to vector<64x64xf32>
      %15 = arith.addf %12, %14 : vector<64x64xf32>
      %c0_14 = arith.constant 0 : index
      %c0_15 = arith.constant 0 : index
      %16 = vector.load %arg5[%c0_14, %c0_15] : memref<64x64xf32, #tpu.memory_space<vmem>>, vector<64x64xf32>
      %17 = arith.addf %15, %16 : vector<64x64xf32>
      %cst_16 = arith.constant dense<0.000000e+00> : vector<64xf32>
      %18 = vector.multi_reduction <add>, %17, %cst_16 [1] : vector<64x64xf32> to vector<64xf32>
      %19 = vector.shape_cast %18 : vector<64xf32> to vector<64x1xf32>
      %cst_17 = arith.constant 6.400000e+01 : f32
      %20 = vector.broadcast %cst_17 : f32 to vector<64x1xf32>
      %21 = arith.divf %19, %20 : vector<64x1xf32>
      %22 = vector.broadcast %21 : vector<64x1xf32> to vector<64x64xf32>
      %23 = arith.subf %17, %22 : vector<64x64xf32>
      %24 = arith.mulf %23, %23 : vector<64x64xf32>
      %cst_18 = arith.constant dense<0.000000e+00> : vector<64xf32>
      %25 = vector.multi_reduction <add>, %24, %cst_18 [1] : vector<64x64xf32> to vector<64xf32>
      %26 = vector.shape_cast %25 : vector<64xf32> to vector<64x1xf32>
      %cst_19 = arith.constant 6.400000e+01 : f32
      %27 = vector.broadcast %cst_19 : f32 to vector<64x1xf32>
      %28 = arith.divf %26, %27 : vector<64x1xf32>
      %29 = vector.broadcast %21 : vector<64x1xf32> to vector<64x64xf32>
      %30 = arith.subf %17, %29 : vector<64x64xf32>
      %cst_20 = arith.constant 9.99999997E-7 : f32
      %31 = vector.broadcast %cst_20 : f32 to vector<64x1xf32>
      %32 = arith.addf %28, %31 : vector<64x1xf32>
      %33 = math.rsqrt %32 : vector<64x1xf32>
      %34 = vector.broadcast %33 : vector<64x1xf32> to vector<64x64xf32>
      %35 = arith.mulf %30, %34 : vector<64x64xf32>
      %c0_21 = arith.constant 0 : index
      %c0_22 = arith.constant 0 : index
      %36 = vector.load %arg6[%c0_21, %c0_22] : memref<1x64xf32, #tpu.memory_space<vmem>>, vector<1x64xf32>
      %37 = vector.broadcast %36 : vector<1x64xf32> to vector<64x64xf32>
      %38 = arith.mulf %35, %37 : vector<64x64xf32>
      %c0_23 = arith.constant 0 : index
      %c0_24 = arith.constant 0 : index
      %39 = vector.load %arg7[%c0_23, %c0_24] : memref<1x64xf32, #tpu.memory_space<vmem>>, vector<1x64xf32>
      %40 = vector.broadcast %39 : vector<1x64xf32> to vector<64x64xf32>
      %41 = arith.addf %38, %40 : vector<64x64xf32>
      %c0_25 = arith.constant 0 : index
      %c0_26 = arith.constant 0 : index
      %42 = vector.load %arg8[%c0_25, %c0_26] : memref<64x64xf32, #tpu.memory_space<vmem>>, vector<64x64xf32>
      tpu.vector_store %arg8[%c0_25, %c0_26], %41 {strides = array<i32>} : memref<64x64xf32, #tpu.memory_space<vmem>>, vector<64x64xf32>,
    } else {
    }
    return
  }
  func.func @transform_0(%arg0: i32, %arg1: i32) -> (i32, i32) {
    %c0_i32 = arith.constant 0 : i32
    return %arg0, %arg1 : i32, i32
  }
  func.func @transform_1(%arg0: i32, %arg1: i32) -> (i32, i32) {
    %c0_i32 = arith.constant 0 : i32
    %c0_i32_0 = arith.constant 0 : i32
    return %arg1, %c0_i32 : i32, i32
  }
  func.func @transform_2(%arg0: i32, %arg1: i32) -> (i32, i32) {
    %c0_i32 = arith.constant 0 : i32
    %c0_i32_0 = arith.constant 0 : i32
    %c0_i32_1 = arith.constant 0 : i32
    return %c0_i32, %c0_i32_0 : i32, i32
  }
  func.func @transform_3(%arg0: i32, %arg1: i32) -> (i32, i32) {
    %c0_i32 = arith.constant 0 : i32
    %c0_i32_0 = arith.constant 0 : i32
    return %arg0, %c0_i32 : i32, i32
  }
  func.func @transform_4(%arg0: i32, %arg1: i32) -> (i32, i32) {
    %c0_i32 = arith.constant 0 : i32
    %c0_i32_0 = arith.constant 0 : i32
    %c0_i32_1 = arith.constant 0 : i32
    return %c0_i32, %c0_i32_0 : i32, i32
  }
  func.func @transform_5(%arg0: i32, %arg1: i32) -> (i32, i32) {
    %c0_i32 = arith.constant 0 : i32
    %c0_i32_0 = arith.constant 0 : i32
    %c0_i32_1 = arith.constant 0 : i32
    return %c0_i32, %c0_i32_0 : i32, i32
  }
  func.func @transform_6(%arg0: i32, %arg1: i32) -> (i32, i32) {
    %c0_i32 = arith.constant 0 : i32
    %c0_i32_0 = arith.constant 0 : i32
    return %arg0, %c0_i32 : i32, i32
  }
}

module attributes {stable_mosaic.version = 11 : i64} {
  func.func @_linear_res_ln_kernel(%arg0: i32, %arg1: i32, %arg2: memref<64x128xf32, #tpu.memory_space<vmem>>, %arg3: memref<128x64xf32, #tpu.memory_space<vmem>>, %arg4: memref<1x64xf32, #tpu.memory_space<vmem>>, %arg5: memref<64x64xf32, #tpu.memory_space<vmem>>, %arg6: memref<1x64xf32, #tpu.memory_space<vmem>>, %arg7: memref<1x64xf32, #tpu.memory_space<vmem>>, %arg8: memref<64x64xf32, #tpu.memory_space<vmem>>, %arg9: memref<64x64xf32, #tpu.memory_space<vmem>>) attributes {dimension_semantics = [#tpu.dimension_semantics<parallel>, #tpu.dimension_semantics<arbitrary>], iteration_bounds = array<i64: 1, 1>, scalar_prefetch = 0 : i64, scratch_operands = 1 : i64, tpu.core_type = #tpu.core_type<tc>, window_params = [{transform_indices = @transform_0, window_bounds = array<i64: 64, 128>}, {transform_indices = @transform_1, window_bounds = array<i64: 128, 64>}, {pipeline_mode = #tpu.pipeline_mode<synchronous>, transform_indices = @transform_2, window_bounds = array<i64: 1, 64>}, {transform_indices = @transform_3, window_bounds = array<i64: 64, 64>}, {pipeline_mode = #tpu.pipeline_mode<synchronous>, transform_indices = @transform_4, window_bounds = array<i64: 1, 64>}, {pipeline_mode = #tpu.pipeline_mode<synchronous>, transform_indices = @transform_5, window_bounds = array<i64: 1, 64>}, {transform_indices = @transform_6, window_bounds = array<i64: 64, 64>}]} {
    %c0_i32 = arith.constant 0 : i32
    %0 = arith.cmpi eq, %arg1, %c0_i32 : i32
    %1 = arith.extui %0 : i1 to i32
    %c0_i32_0 = arith.constant 0 : i32
    %2 = arith.cmpi ne, %1, %c0_i32_0 : i32
    scf.if %2 {
      %cst_10 = arith.constant 0.000000e+00 : f32
      %12 = vector.broadcast %cst_10 : f32 to vector<64x64xf32>
      %c0_11 = arith.constant 0 : index
      %c0_12 = arith.constant 0 : index
      %13 = vector.load %arg9[%c0_11, %c0_12] : memref<64x64xf32, #tpu.memory_space<vmem>>, vector<64x64xf32>
      tpu.vector_store %arg9[%c0_11, %c0_12], %12 {strides = array<i32>} : memref<64x64xf32, #tpu.memory_space<vmem>>, vector<64x64xf32>,
    } else {
    }
    %c0 = arith.constant 0 : index
    %c0_1 = arith.constant 0 : index
    %3 = vector.load %arg9[%c0, %c0_1] : memref<64x64xf32, #tpu.memory_space<vmem>>, vector<64x64xf32>
    %c0_2 = arith.constant 0 : index
    %c0_3 = arith.constant 0 : index
    %4 = vector.load %arg2[%c0_2, %c0_3] : memref<64x128xf32, #tpu.memory_space<vmem>>, vector<64x128xf32>
    %c0_4 = arith.constant 0 : index
    %c0_5 = arith.constant 0 : index
    %5 = vector.load %arg3[%c0_4, %c0_5] : memref<128x64xf32, #tpu.memory_space<vmem>>, vector<128x64xf32>
    %cst = arith.constant dense<0.000000e+00> : vector<64x64xf32>
    %6 = tpu.matmul %4, %5, %cst {dimension_numbers = #tpu.dot_dimension_numbers<[1], [0], [0], [1], [0, 0, 1, 1], [], []>} : vector<64x128xf32>, vector<128x64xf32>, vector<64x64xf32> -> vector<64x64xf32>
    %7 = arith.addf %3, %6 : vector<64x64xf32>
    %c0_6 = arith.constant 0 : index
    %c0_7 = arith.constant 0 : index
    %8 = vector.load %arg9[%c0_6, %c0_7] : memref<64x64xf32, #tpu.memory_space<vmem>>, vector<64x64xf32>
    tpu.vector_store %arg9[%c0_6, %c0_7], %7 {strides = array<i32>} : memref<64x64xf32, #tpu.memory_space<vmem>>, vector<64x64xf32>,
    %c0_i32_8 = arith.constant 0 : i32
    %9 = arith.cmpi eq, %arg1, %c0_i32_8 : i32
    %10 = arith.extui %9 : i1 to i32
    %c0_i32_9 = arith.constant 0 : i32
    %11 = arith.cmpi ne, %10, %c0_i32_9 : i32
    scf.if %11 {
      %c0_10 = arith.constant 0 : index
      %c0_11 = arith.constant 0 : index
      %12 = vector.load %arg9[%c0_10, %c0_11] : memref<64x64xf32, #tpu.memory_space<vmem>>, vector<64x64xf32>
      %c0_12 = arith.constant 0 : index
      %c0_13 = arith.constant 0 : index
      %13 = vector.load %arg4[%c0_12, %c0_13] : memref<1x64xf32, #tpu.memory_space<vmem>>, vector<1x64xf32>
      %14 = vector.broadcast %13 : vector<1x64xf32> to vector<64x64xf32>
      %15 = arith.addf %12, %14 : vector<64x64xf32>
      %c0_14 = arith.constant 0 : index
      %c0_15 = arith.constant 0 : index
      %16 = vector.load %arg5[%c0_14, %c0_15] : memref<64x64xf32, #tpu.memory_space<vmem>>, vector<64x64xf32>
      %17 = arith.addf %15, %16 : vector<64x64xf32>
      %cst_16 = arith.constant dense<0.000000e+00> : vector<64xf32>
      %18 = vector.multi_reduction <add>, %17, %cst_16 [1] : vector<64x64xf32> to vector<64xf32>
      %19 = vector.shape_cast %18 : vector<64xf32> to vector<64x1xf32>
      %cst_17 = arith.constant 6.400000e+01 : f32
      %20 = vector.broadcast %cst_17 : f32 to vector<64x1xf32>
      %21 = arith.divf %19, %20 : vector<64x1xf32>
      %22 = vector.broadcast %21 : vector<64x1xf32> to vector<64x64xf32>
      %23 = arith.subf %17, %22 : vector<64x64xf32>
      %24 = arith.mulf %23, %23 : vector<64x64xf32>
      %cst_18 = arith.constant dense<0.000000e+00> : vector<64xf32>
      %25 = vector.multi_reduction <add>, %24, %cst_18 [1] : vector<64x64xf32> to vector<64xf32>
      %26 = vector.shape_cast %25 : vector<64xf32> to vector<64x1xf32>
      %cst_19 = arith.constant 6.400000e+01 : f32
      %27 = vector.broadcast %cst_19 : f32 to vector<64x1xf32>
      %28 = arith.divf %26, %27 : vector<64x1xf32>
      %29 = vector.broadcast %21 : vector<64x1xf32> to vector<64x64xf32>
      %30 = arith.subf %17, %29 : vector<64x64xf32>
      %cst_20 = arith.constant 9.99999997E-7 : f32
      %31 = vector.broadcast %cst_20 : f32 to vector<64x1xf32>
      %32 = arith.addf %28, %31 : vector<64x1xf32>
      %33 = math.rsqrt %32 : vector<64x1xf32>
      %34 = vector.broadcast %33 : vector<64x1xf32> to vector<64x64xf32>
      %35 = arith.mulf %30, %34 : vector<64x64xf32>
      %c0_21 = arith.constant 0 : index
      %c0_22 = arith.constant 0 : index
      %36 = vector.load %arg6[%c0_21, %c0_22] : memref<1x64xf32, #tpu.memory_space<vmem>>, vector<1x64xf32>
      %37 = vector.broadcast %36 : vector<1x64xf32> to vector<64x64xf32>
      %38 = arith.mulf %35, %37 : vector<64x64xf32>
      %c0_23 = arith.constant 0 : index
      %c0_24 = arith.constant 0 : index
      %39 = vector.load %arg7[%c0_23, %c0_24] : memref<1x64xf32, #tpu.memory_space<vmem>>, vector<1x64xf32>
      %40 = vector.broadcast %39 : vector<1x64xf32> to vector<64x64xf32>
      %41 = arith.addf %38, %40 : vector<64x64xf32>
      %c0_25 = arith.constant 0 : index
      %c0_26 = arith.constant 0 : index
      %42 = vector.load %arg8[%c0_25, %c0_26] : memref<64x64xf32, #tpu.memory_space<vmem>>, vector<64x64xf32>
      tpu.vector_store %arg8[%c0_25, %c0_26], %41 {strides = array<i32>} : memref<64x64xf32, #tpu.memory_space<vmem>>, vector<64x64xf32>,
    } else {
    }
    return
  }
  func.func @transform_0(%arg0: i32, %arg1: i32) -> (i32, i32) {
    %c0_i32 = arith.constant 0 : i32
    return %arg0, %arg1 : i32, i32
  }
  func.func @transform_1(%arg0: i32, %arg1: i32) -> (i32, i32) {
    %c0_i32 = arith.constant 0 : i32
    %c0_i32_0 = arith.constant 0 : i32
    return %arg1, %c0_i32 : i32, i32
  }
  func.func @transform_2(%arg0: i32, %arg1: i32) -> (i32, i32) {
    %c0_i32 = arith.constant 0 : i32
    %c0_i32_0 = arith.constant 0 : i32
    %c0_i32_1 = arith.constant 0 : i32
    return %c0_i32, %c0_i32_0 : i32, i32
  }
  func.func @transform_3(%arg0: i32, %arg1: i32) -> (i32, i32) {
    %c0_i32 = arith.constant 0 : i32
    %c0_i32_0 = arith.constant 0 : i32
    return %arg0, %c0_i32 : i32, i32
  }
  func.func @transform_4(%arg0: i32, %arg1: i32) -> (i32, i32) {
    %c0_i32 = arith.constant 0 : i32
    %c0_i32_0 = arith.constant 0 : i32
    %c0_i32_1 = arith.constant 0 : i32
    return %c0_i32, %c0_i32_0 : i32, i32
  }
  func.func @transform_5(%arg0: i32, %arg1: i32) -> (i32, i32) {
    %c0_i32 = arith.constant 0 : i32
    %c0_i32_0 = arith.constant 0 : i32
    %c0_i32_1 = arith.constant 0 : i32
    return %c0_i32, %c0_i32_0 : i32, i32
  }
  func.func @transform_6(%arg0: i32, %arg1: i32) -> (i32, i32) {
    %c0_i32 = arith.constant 0 : i32
    %c0_i32_0 = arith.constant 0 : i32
    return %arg0, %c0_i32 : i32, i32
  }
}

module attributes {stable_mosaic.version = 11 : i64} {
  func.func @_linear_kernel(%arg0: i32, %arg1: i32, %arg2: i32, %arg3: memref<64x64xf32, #tpu.memory_space<vmem>>, %arg4: memref<64x128xf32, #tpu.memory_space<vmem>>, %arg5: memref<1x128xf32, #tpu.memory_space<vmem>>, %arg6: memref<64x128xf32, #tpu.memory_space<vmem>>, %arg7: memref<64x128xf32, #tpu.memory_space<vmem>>) attributes {dimension_semantics = [#tpu.dimension_semantics<parallel>, #tpu.dimension_semantics<parallel>, #tpu.dimension_semantics<arbitrary>], iteration_bounds = array<i64: 1, 1, 1>, scalar_prefetch = 0 : i64, scratch_operands = 1 : i64, tpu.core_type = #tpu.core_type<tc>, window_params = [{transform_indices = @transform_0, window_bounds = array<i64: 64, 64>}, {transform_indices = @transform_1, window_bounds = array<i64: 64, 128>}, {transform_indices = @transform_2, window_bounds = array<i64: 1, 128>}, {transform_indices = @transform_3, window_bounds = array<i64: 64, 128>}]} {
    %c0_i32 = arith.constant 0 : i32
    %0 = arith.cmpi eq, %arg2, %c0_i32 : i32
    %1 = arith.extui %0 : i1 to i32
    %c0_i32_0 = arith.constant 0 : i32
    %2 = arith.cmpi ne, %1, %c0_i32_0 : i32
    scf.if %2 {
      %cst_10 = arith.constant 0.000000e+00 : f32
      %12 = vector.broadcast %cst_10 : f32 to vector<64x128xf32>
      %c0_11 = arith.constant 0 : index
      %c0_12 = arith.constant 0 : index
      %13 = vector.load %arg7[%c0_11, %c0_12] : memref<64x128xf32, #tpu.memory_space<vmem>>, vector<64x128xf32>
      tpu.vector_store %arg7[%c0_11, %c0_12], %12 {strides = array<i32>} : memref<64x128xf32, #tpu.memory_space<vmem>>, vector<64x128xf32>,
    } else {
    }
    %c0 = arith.constant 0 : index
    %c0_1 = arith.constant 0 : index
    %3 = vector.load %arg7[%c0, %c0_1] : memref<64x128xf32, #tpu.memory_space<vmem>>, vector<64x128xf32>
    %c0_2 = arith.constant 0 : index
    %c0_3 = arith.constant 0 : index
    %4 = vector.load %arg3[%c0_2, %c0_3] : memref<64x64xf32, #tpu.memory_space<vmem>>, vector<64x64xf32>
    %c0_4 = arith.constant 0 : index
    %c0_5 = arith.constant 0 : index
    %5 = vector.load %arg4[%c0_4, %c0_5] : memref<64x128xf32, #tpu.memory_space<vmem>>, vector<64x128xf32>
    %cst = arith.constant dense<0.000000e+00> : vector<64x128xf32>
    %6 = tpu.matmul %4, %5, %cst {dimension_numbers = #tpu.dot_dimension_numbers<[1], [0], [0], [1], [0, 0, 1, 1], [], []>} : vector<64x64xf32>, vector<64x128xf32>, vector<64x128xf32> -> vector<64x128xf32>
    %7 = arith.addf %3, %6 : vector<64x128xf32>
    %c0_6 = arith.constant 0 : index
    %c0_7 = arith.constant 0 : index
    %8 = vector.load %arg7[%c0_6, %c0_7] : memref<64x128xf32, #tpu.memory_space<vmem>>, vector<64x128xf32>
    tpu.vector_store %arg7[%c0_6, %c0_7], %7 {strides = array<i32>} : memref<64x128xf32, #tpu.memory_space<vmem>>, vector<64x128xf32>,
    %c0_i32_8 = arith.constant 0 : i32
    %9 = arith.cmpi eq, %arg2, %c0_i32_8 : i32
    %10 = arith.extui %9 : i1 to i32
    %c0_i32_9 = arith.constant 0 : i32
    %11 = arith.cmpi ne, %10, %c0_i32_9 : i32
    scf.if %11 {
      %c0_10 = arith.constant 0 : index
      %c0_11 = arith.constant 0 : index
      %12 = vector.load %arg7[%c0_10, %c0_11] : memref<64x128xf32, #tpu.memory_space<vmem>>, vector<64x128xf32>
      %c0_12 = arith.constant 0 : index
      %c0_13 = arith.constant 0 : index
      %13 = vector.load %arg5[%c0_12, %c0_13] : memref<1x128xf32, #tpu.memory_space<vmem>>, vector<1x128xf32>
      %14 = vector.broadcast %13 : vector<1x128xf32> to vector<64x128xf32>
      %15 = arith.addf %12, %14 : vector<64x128xf32>
      %c0_14 = arith.constant 0 : index
      %c0_15 = arith.constant 0 : index
      %16 = vector.load %arg6[%c0_14, %c0_15] : memref<64x128xf32, #tpu.memory_space<vmem>>, vector<64x128xf32>
      tpu.vector_store %arg6[%c0_14, %c0_15], %15 {strides = array<i32>} : memref<64x128xf32, #tpu.memory_space<vmem>>, vector<64x128xf32>,
    } else {
    }
    return
  }
  func.func @transform_0(%arg0: i32, %arg1: i32, %arg2: i32) -> (i32, i32) {
    %c0_i32 = arith.constant 0 : i32
    return %arg0, %arg2 : i32, i32
  }
  func.func @transform_1(%arg0: i32, %arg1: i32, %arg2: i32) -> (i32, i32) {
    %c0_i32 = arith.constant 0 : i32
    return %arg2, %arg1 : i32, i32
  }
  func.func @transform_2(%arg0: i32, %arg1: i32, %arg2: i32) -> (i32, i32) {
    %c0_i32 = arith.constant 0 : i32
    %c0_i32_0 = arith.constant 0 : i32
    return %c0_i32, %arg1 : i32, i32
  }
  func.func @transform_3(%arg0: i32, %arg1: i32, %arg2: i32) -> (i32, i32) {
    %c0_i32 = arith.constant 0 : i32
    return %arg0, %arg1 : i32, i32
  }
}

module attributes {stable_mosaic.version = 11 : i64} {
  func.func @_linear_kernel(%arg0: i32, %arg1: i32, %arg2: i32, %arg3: memref<64x64xf32, #tpu.memory_space<vmem>>, %arg4: memref<64x64xf32, #tpu.memory_space<vmem>>, %arg5: memref<1x64xf32, #tpu.memory_space<vmem>>, %arg6: memref<64x64xf32, #tpu.memory_space<vmem>>, %arg7: memref<64x64xf32, #tpu.memory_space<vmem>>) attributes {dimension_semantics = [#tpu.dimension_semantics<parallel>, #tpu.dimension_semantics<parallel>, #tpu.dimension_semantics<arbitrary>], iteration_bounds = array<i64: 1, 1, 1>, scalar_prefetch = 0 : i64, scratch_operands = 1 : i64, tpu.core_type = #tpu.core_type<tc>, window_params = [{transform_indices = @transform_0, window_bounds = array<i64: 64, 64>}, {transform_indices = @transform_1, window_bounds = array<i64: 64, 64>}, {transform_indices = @transform_2, window_bounds = array<i64: 1, 64>}, {transform_indices = @transform_3, window_bounds = array<i64: 64, 64>}]} {
    %c0_i32 = arith.constant 0 : i32
    %0 = arith.cmpi eq, %arg2, %c0_i32 : i32
    %1 = arith.extui %0 : i1 to i32
    %c0_i32_0 = arith.constant 0 : i32
    %2 = arith.cmpi ne, %1, %c0_i32_0 : i32
    scf.if %2 {
      %cst_10 = arith.constant 0.000000e+00 : f32
      %12 = vector.broadcast %cst_10 : f32 to vector<64x64xf32>
      %c0_11 = arith.constant 0 : index
      %c0_12 = arith.constant 0 : index
      %13 = vector.load %arg7[%c0_11, %c0_12] : memref<64x64xf32, #tpu.memory_space<vmem>>, vector<64x64xf32>
      tpu.vector_store %arg7[%c0_11, %c0_12], %12 {strides = array<i32>} : memref<64x64xf32, #tpu.memory_space<vmem>>, vector<64x64xf32>,
    } else {
    }
    %c0 = arith.constant 0 : index
    %c0_1 = arith.constant 0 : index
    %3 = vector.load %arg7[%c0, %c0_1] : memref<64x64xf32, #tpu.memory_space<vmem>>, vector<64x64xf32>
    %c0_2 = arith.constant 0 : index
    %c0_3 = arith.constant 0 : index
    %4 = vector.load %arg3[%c0_2, %c0_3] : memref<64x64xf32, #tpu.memory_space<vmem>>, vector<64x64xf32>
    %c0_4 = arith.constant 0 : index
    %c0_5 = arith.constant 0 : index
    %5 = vector.load %arg4[%c0_4, %c0_5] : memref<64x64xf32, #tpu.memory_space<vmem>>, vector<64x64xf32>
    %cst = arith.constant dense<0.000000e+00> : vector<64x64xf32>
    %6 = tpu.matmul %4, %5, %cst {dimension_numbers = #tpu.dot_dimension_numbers<[1], [0], [0], [1], [0, 0, 1, 1], [], []>} : vector<64x64xf32>, vector<64x64xf32>, vector<64x64xf32> -> vector<64x64xf32>
    %7 = arith.addf %3, %6 : vector<64x64xf32>
    %c0_6 = arith.constant 0 : index
    %c0_7 = arith.constant 0 : index
    %8 = vector.load %arg7[%c0_6, %c0_7] : memref<64x64xf32, #tpu.memory_space<vmem>>, vector<64x64xf32>
    tpu.vector_store %arg7[%c0_6, %c0_7], %7 {strides = array<i32>} : memref<64x64xf32, #tpu.memory_space<vmem>>, vector<64x64xf32>,
    %c0_i32_8 = arith.constant 0 : i32
    %9 = arith.cmpi eq, %arg2, %c0_i32_8 : i32
    %10 = arith.extui %9 : i1 to i32
    %c0_i32_9 = arith.constant 0 : i32
    %11 = arith.cmpi ne, %10, %c0_i32_9 : i32
    scf.if %11 {
      %c0_10 = arith.constant 0 : index
      %c0_11 = arith.constant 0 : index
      %12 = vector.load %arg7[%c0_10, %c0_11] : memref<64x64xf32, #tpu.memory_space<vmem>>, vector<64x64xf32>
      %c0_12 = arith.constant 0 : index
      %c0_13 = arith.constant 0 : index
      %13 = vector.load %arg5[%c0_12, %c0_13] : memref<1x64xf32, #tpu.memory_space<vmem>>, vector<1x64xf32>
      %14 = vector.broadcast %13 : vector<1x64xf32> to vector<64x64xf32>
      %15 = arith.addf %12, %14 : vector<64x64xf32>
      %c0_14 = arith.constant 0 : index
      %c0_15 = arith.constant 0 : index
      %16 = vector.load %arg6[%c0_14, %c0_15] : memref<64x64xf32, #tpu.memory_space<vmem>>, vector<64x64xf32>
      tpu.vector_store %arg6[%c0_14, %c0_15], %15 {strides = array<i32>} : memref<64x64xf32, #tpu.memory_space<vmem>>, vector<64x64xf32>,
    } else {
    }
    return
  }
  func.func @transform_0(%arg0: i32, %arg1: i32, %arg2: i32) -> (i32, i32) {
    %c0_i32 = arith.constant 0 : i32
    return %arg0, %arg2 : i32, i32
  }
  func.func @transform_1(%arg0: i32, %arg1: i32, %arg2: i32) -> (i32, i32) {
    %c0_i32 = arith.constant 0 : i32
    return %arg2, %arg1 : i32, i32
  }
  func.func @transform_2(%arg0: i32, %arg1: i32, %arg2: i32) -> (i32, i32) {
    %c0_i32 = arith.constant 0 : i32
    %c0_i32_0 = arith.constant 0 : i32
    return %c0_i32, %arg1 : i32, i32
  }
  func.func @transform_3(%arg0: i32, %arg1: i32, %arg2: i32) -> (i32, i32) {
    %c0_i32 = arith.constant 0 : i32
    return %arg0, %arg1 : i32, i32
  }
}

module attributes {stable_mosaic.version = 11 : i64} {
  func.func @_linear_kernel(%arg0: i32, %arg1: i32, %arg2: i32, %arg3: memref<64x64xf32, #tpu.memory_space<vmem>>, %arg4: memref<64x256xf32, #tpu.memory_space<vmem>>, %arg5: memref<1x256xf32, #tpu.memory_space<vmem>>, %arg6: memref<64x256xf32, #tpu.memory_space<vmem>>, %arg7: memref<64x256xf32, #tpu.memory_space<vmem>>) attributes {dimension_semantics = [#tpu.dimension_semantics<parallel>, #tpu.dimension_semantics<parallel>, #tpu.dimension_semantics<arbitrary>], iteration_bounds = array<i64: 1, 1, 1>, scalar_prefetch = 0 : i64, scratch_operands = 1 : i64, tpu.core_type = #tpu.core_type<tc>, window_params = [{transform_indices = @transform_0, window_bounds = array<i64: 64, 64>}, {transform_indices = @transform_1, window_bounds = array<i64: 64, 256>}, {transform_indices = @transform_2, window_bounds = array<i64: 1, 256>}, {transform_indices = @transform_3, window_bounds = array<i64: 64, 256>}]} {
    %c0_i32 = arith.constant 0 : i32
    %0 = arith.cmpi eq, %arg2, %c0_i32 : i32
    %1 = arith.extui %0 : i1 to i32
    %c0_i32_0 = arith.constant 0 : i32
    %2 = arith.cmpi ne, %1, %c0_i32_0 : i32
    scf.if %2 {
      %cst_10 = arith.constant 0.000000e+00 : f32
      %12 = vector.broadcast %cst_10 : f32 to vector<64x256xf32>
      %c0_11 = arith.constant 0 : index
      %c0_12 = arith.constant 0 : index
      %13 = vector.load %arg7[%c0_11, %c0_12] : memref<64x256xf32, #tpu.memory_space<vmem>>, vector<64x256xf32>
      tpu.vector_store %arg7[%c0_11, %c0_12], %12 {strides = array<i32>} : memref<64x256xf32, #tpu.memory_space<vmem>>, vector<64x256xf32>,
    } else {
    }
    %c0 = arith.constant 0 : index
    %c0_1 = arith.constant 0 : index
    %3 = vector.load %arg7[%c0, %c0_1] : memref<64x256xf32, #tpu.memory_space<vmem>>, vector<64x256xf32>
    %c0_2 = arith.constant 0 : index
    %c0_3 = arith.constant 0 : index
    %4 = vector.load %arg3[%c0_2, %c0_3] : memref<64x64xf32, #tpu.memory_space<vmem>>, vector<64x64xf32>
    %c0_4 = arith.constant 0 : index
    %c0_5 = arith.constant 0 : index
    %5 = vector.load %arg4[%c0_4, %c0_5] : memref<64x256xf32, #tpu.memory_space<vmem>>, vector<64x256xf32>
    %cst = arith.constant dense<0.000000e+00> : vector<64x256xf32>
    %6 = tpu.matmul %4, %5, %cst {dimension_numbers = #tpu.dot_dimension_numbers<[1], [0], [0], [1], [0, 0, 1, 1], [], []>} : vector<64x64xf32>, vector<64x256xf32>, vector<64x256xf32> -> vector<64x256xf32>
    %7 = arith.addf %3, %6 : vector<64x256xf32>
    %c0_6 = arith.constant 0 : index
    %c0_7 = arith.constant 0 : index
    %8 = vector.load %arg7[%c0_6, %c0_7] : memref<64x256xf32, #tpu.memory_space<vmem>>, vector<64x256xf32>
    tpu.vector_store %arg7[%c0_6, %c0_7], %7 {strides = array<i32>} : memref<64x256xf32, #tpu.memory_space<vmem>>, vector<64x256xf32>,
    %c0_i32_8 = arith.constant 0 : i32
    %9 = arith.cmpi eq, %arg2, %c0_i32_8 : i32
    %10 = arith.extui %9 : i1 to i32
    %c0_i32_9 = arith.constant 0 : i32
    %11 = arith.cmpi ne, %10, %c0_i32_9 : i32
    scf.if %11 {
      %c0_10 = arith.constant 0 : index
      %c0_11 = arith.constant 0 : index
      %12 = vector.load %arg7[%c0_10, %c0_11] : memref<64x256xf32, #tpu.memory_space<vmem>>, vector<64x256xf32>
      %c0_12 = arith.constant 0 : index
      %c0_13 = arith.constant 0 : index
      %13 = vector.load %arg5[%c0_12, %c0_13] : memref<1x256xf32, #tpu.memory_space<vmem>>, vector<1x256xf32>
      %14 = vector.broadcast %13 : vector<1x256xf32> to vector<64x256xf32>
      %15 = arith.addf %12, %14 : vector<64x256xf32>
      %c0_14 = arith.constant 0 : index
      %c0_15 = arith.constant 0 : index
      %16 = vector.load %arg6[%c0_14, %c0_15] : memref<64x256xf32, #tpu.memory_space<vmem>>, vector<64x256xf32>
      tpu.vector_store %arg6[%c0_14, %c0_15], %15 {strides = array<i32>} : memref<64x256xf32, #tpu.memory_space<vmem>>, vector<64x256xf32>,
    } else {
    }
    return
  }
  func.func @transform_0(%arg0: i32, %arg1: i32, %arg2: i32) -> (i32, i32) {
    %c0_i32 = arith.constant 0 : i32
    return %arg0, %arg2 : i32, i32
  }
  func.func @transform_1(%arg0: i32, %arg1: i32, %arg2: i32) -> (i32, i32) {
    %c0_i32 = arith.constant 0 : i32
    return %arg2, %arg1 : i32, i32
  }
  func.func @transform_2(%arg0: i32, %arg1: i32, %arg2: i32) -> (i32, i32) {
    %c0_i32 = arith.constant 0 : i32
    %c0_i32_0 = arith.constant 0 : i32
    return %c0_i32, %arg1 : i32, i32
  }
  func.func @transform_3(%arg0: i32, %arg1: i32, %arg2: i32) -> (i32, i32) {
    %c0_i32 = arith.constant 0 : i32
    return %arg0, %arg1 : i32, i32
  }
}

</mosaic_0001>

<llo_original>
// kernel: run_pallas.29
$region0: #{run_pallas.29}
  #allocation0 [shape = 'u32[]', space=smem, size = 0x4, offset = 0x4, fixed_abs, tag = 'smem constant byte address 0x4 - core index']
  #allocation1 [shape = 'u32[144,128]{1,0:T(1,128)}', space=vmem, size = 0x12000, scoped, tag = 'internal scratch']
  #allocation2 [shape = 'f32[64,192]{1,0:T(8,128)}', space=vmem, size = 0x10000, scoped, tag = 'scratch operand']
  %s0 = inlined_call_operand.vmem [shape: f32[64,64], index: 0, kind: input, shape index: {}]
  %s1 = inlined_call_operand.vmem [shape: f32[64,192], index: 1, kind: input, shape index: {}]
  %s2 = inlined_call_operand.vmem [shape: f32[1,192], index: 2, kind: input, shape index: {}]
  %s3 = inlined_call_operand.vmem [shape: f32[64,192], index: 3, kind: output, shape index: {}]
  %s4 = sld [smem:[#allocation0]]
  $region30: #{run_pallas.29} parent=0
    _
  %s6 = ssub.s32 1, %s4
  %s7 = scalar_select 0, %s6, %s4
  // Predicated region
  $region2: #{run_pallas.29} parent=0 // pred_check
    _
  $region3: #{run_pallas.29} parent=0 // pred_check_branch
    %9 = sbr.rel (0) target = $region5
  $region4: #{run_pallas.29} parent=0 // pred_region
    _
  $region5: #{run_pallas.29} parent=0 // pred_fallthru
    _
  // Predicated region
  $region6: #{run_pallas.29} parent=0 // pred_check
    _
  $region7: #{run_pallas.29} parent=0 // pred_check_branch
    %11 = sbr.rel (0) target = $region9
  $region8: #{run_pallas.29} parent=0 // pred_region
    _
  $region9: #{run_pallas.29} parent=0 // pred_fallthru
    _
  // Predicated region
  $region10: #{run_pallas.29} parent=0 // pred_check
    _
  $region11: #{run_pallas.29} parent=0 // pred_check_branch
    %13 = sbr.rel (0) target = $region13
  $region12: #{run_pallas.29} parent=0 // pred_region
    _
  $region13: #{run_pallas.29} parent=0 // pred_fallthru
    _
  %p14 = scmp.eq.s32.totalorder 0, 0
  // Predicated region
  $region14: #{run_pallas.29} parent=0 // pred_check
    %p15 = pneg %p14
  $region15: #{run_pallas.29} parent=0 // pred_check_branch
    %17 = sbr.rel (%p15) target = $region17
  $region16: #{run_pallas.29} parent=0 // pred_region
    %18 = vst [vmem:[#allocation2] sm:$0xff] 0.0
    %vm19 = vcmask 523264
    %20 = vst.msk [vmem:[#allocation2 + $0x8] sm:$0xff] %vm19, 0.0
    %21 = vst [vmem:[#allocation2 + $0x10] sm:$0xff] 0.0
    %22 = vst.msk [vmem:[#allocation2 + $0x18] sm:$0xff] %vm19, 0.0
    %23 = vst [vmem:[#allocation2 + $0x20] sm:$0xff] 0.0
    %24 = vst.msk [vmem:[#allocation2 + $0x28] sm:$0xff] %vm19, 0.0
    %25 = vst [vmem:[#allocation2 + $0x30] sm:$0xff] 0.0
    %26 = vst.msk [vmem:[#allocation2 + $0x38] sm:$0xff] %vm19, 0.0
    %27 = vst [vmem:[#allocation2 + $0x40] sm:$0xff] 0.0
    %28 = vst.msk [vmem:[#allocation2 + $0x48] sm:$0xff] %vm19, 0.0
    %29 = vst [vmem:[#allocation2 + $0x50] sm:$0xff] 0.0
    %30 = vst.msk [vmem:[#allocation2 + $0x58] sm:$0xff] %vm19, 0.0
    %31 = vst [vmem:[#allocation2 + $0x60] sm:$0xff] 0.0
    %32 = vst.msk [vmem:[#allocation2 + $0x68] sm:$0xff] %vm19, 0.0
    %33 = vst [vmem:[#allocation2 + $0x70] sm:$0xff] 0.0
    %34 = vst.msk [vmem:[#allocation2 + $0x78] sm:$0xff] %vm19, 0.0
  $region17: #{run_pallas.29} parent=0 // pred_fallthru
    _
  %v35 = vld [vmem:[#allocation2] sm:$0xff]
  %v36 = vld [vmem:[#allocation2 + $0x8] sm:$0xff]
  %v37 = vld [vmem:[#allocation2 + $0x10] sm:$0xff]
  %v38 = vld [vmem:[#allocation2 + $0x18] sm:$0xff]
  %v39 = vld [vmem:[#allocation2 + $0x20] sm:$0xff]
  %v40 = vld [vmem:[#allocation2 + $0x28] sm:$0xff]
  %v41 = vld [vmem:[#allocation2 + $0x30] sm:$0xff]
  %v42 = vld [vmem:[#allocation2 + $0x38] sm:$0xff]
  %v43 = vld [vmem:[#allocation2 + $0x40] sm:$0xff]
  %v44 = vld [vmem:[#allocation2 + $0x48] sm:$0xff]
  %v45 = vld [vmem:[#allocation2 + $0x50] sm:$0xff]
  %v46 = vld [vmem:[#allocation2 + $0x58] sm:$0xff]
  %v47 = vld [vmem:[#allocation2 + $0x60] sm:$0xff]
  %v48 = vld [vmem:[#allocation2 + $0x68] sm:$0xff]
  %v49 = vld [vmem:[#allocation2 + $0x70] sm:$0xff]
  %v50 = vld [vmem:[#allocation2 + $0x78] sm:$0xff]
  %v51 = vld [vmem:[%s0] sm:$0xff]
  %v52 = vld [vmem:[%s0 + $0x8] sm:$0xff]
  %v53 = vld [vmem:[%s0 + $0x10] sm:$0xff]
  %v54 = vld [vmem:[%s0 + $0x18] sm:$0xff]
  %v55 = vld [vmem:[%s0 + $0x20] sm:$0xff]
  %v56 = vld [vmem:[%s0 + $0x28] sm:$0xff]
  %v57 = vld [vmem:[%s0 + $0x30] sm:$0xff]
  %v58 = vld [vmem:[%s0 + $0x38] sm:$0xff]
  %v59 = vld [vmem:[%s1] sm:$0xff]
  %v60 = vld [vmem:[%s1 + $0x8] sm:$0xff]
  %v61 = vld [vmem:[%s1 + $0x10] sm:$0xff]
  %v62 = vld [vmem:[%s1 + $0x18] sm:$0xff]
  %v63 = vld [vmem:[%s1 + $0x20] sm:$0xff]
  %v64 = vld [vmem:[%s1 + $0x28] sm:$0xff]
  %v65 = vld [vmem:[%s1 + $0x30] sm:$0xff]
  %v66 = vld [vmem:[%s1 + $0x38] sm:$0xff]
  %v67 = vld [vmem:[%s1 + $0x40] sm:$0xff]
  %v68 = vld [vmem:[%s1 + $0x48] sm:$0xff]
  %v69 = vld [vmem:[%s1 + $0x50] sm:$0xff]
  %v70 = vld [vmem:[%s1 + $0x58] sm:$0xff]
  %v71 = vld [vmem:[%s1 + $0x60] sm:$0xff]
  %v72 = vld [vmem:[%s1 + $0x68] sm:$0xff]
  %v73 = vld [vmem:[%s1 + $0x70] sm:$0xff]
  %v74 = vld [vmem:[%s1 + $0x78] sm:$0xff]
  %vm75 = vcmask 523264
  %v77 = vsel %vm75, %v51, 0
  %v80 = vsel %vm75, %v52, 0
  %v83 = vsel %vm75, %v53, 0
  %v86 = vsel %vm75, %v54, 0
  %v89 = vsel %vm75, %v55, 0
  %v92 = vsel %vm75, %v56, 0
  %v95 = vsel %vm75, %v57, 0
  %v98 = vsel %vm75, %v58, 0
  %100 = vmatprep.subr.mxu0 %v60
  %101 = vmatpush1.msra.mxu0 %v59
  %102 = vmatprep.subr.mxu0 %v62
  %103 = vmatpush1.msra.mxu0 %v61
  %104 = vmatprep.subr.mxu0 %v64
  %105 = vmatpush1.msra.mxu0 %v63
  %106 = vmatprep.subr.mxu0 %v66
  %107 = vmatpush1.msra.mxu0 %v65
  %108 = vmatprep.subr.mxu0 %v68
  %109 = vmatpush1.msra.mxu0 %v67
  %110 = vmatprep.subr.mxu0 %v70
  %111 = vmatpush1.msra.mxu0 %v69
  %112 = vmatprep.subr.mxu0 %v72
  %113 = vmatpush1.msra.mxu0 %v71
  %114 = vmatprep.subr.mxu0 %v74
  %115 = vmatpush1.msra.mxu0 %v73
  %116 = vmatprep.subr.mxu0 0.0
  %117 = vmatpush1.msra.mxu0 0.0
  %118 = vmatprep.subr.mxu0 0.0
  %119 = vmatpush1.msra.mxu0 0.0
  %120 = vmatprep.subr.mxu0 0.0
  %121 = vmatpush1.msra.mxu0 0.0
  %122 = vmatprep.subr.mxu0 0.0
  %123 = vmatpush1.msra.mxu0 0.0
  %124 = vmatprep.subr.mxu0 0.0
  %125 = vmatpush1.msra.mxu0 0.0
  %126 = vmatprep.subr.mxu0 0.0
  %127 = vmatpush1.msra.mxu0 0.0
  %128 = vmatprep.subr.mxu0 0.0
  %129 = vmatpush1.msra.mxu0 0.0
  %130 = vmatprep.subr.mxu0 0.0
  %131 = vmatpush1.msra.mxu0 0.0
  %132 = vmatprep.subr.mxu0 0.0
  %133 = vmatpush1.msra.mxu0 0.0
  %134 = vmatprep.subr.mxu0 0.0
  %135 = vmatpush1.msra.mxu0 0.0
  %136 = vmatprep.subr.mxu0 0.0
  %137 = vmatpush1.msra.mxu0 0.0
  %138 = vmatprep.subr.mxu0 0.0
  %139 = vmatpush1.msra.mxu0 0.0
  %140 = vmatprep.subr.mxu0 0.0
  %141 = vmatpush1.msra.mxu0 0.0
  %142 = vmatprep.subr.mxu0 0.0
  %143 = vmatpush1.msra.mxu0 0.0
  %144 = vmatprep.subr.mxu0 0.0
  %145 = vmatpush1.msra.mxu0 0.0
  %146 = vmatprep.subr.mxu0 0.0
  %147 = vmatpush1.msra.mxu0 0.0
  %148 = vmatprep.subr.mxu0 0.0
  %149 = vmatpush1.msra.mxu0 0.0
  %150 = vmatprep.subr.mxu0 0.0
  %151 = vmatpush1.msra.mxu0 0.0
  %152 = vmatprep.subr.mxu0 0.0
  %153 = vmatpush1.msra.mxu0 0.0
  %154 = vmatprep.subr.mxu0 0.0
  %155 = vmatpush1.msra.mxu0 0.0
  %156 = vmatprep.subr.mxu0 0.0
  %157 = vmatpush1.msra.mxu0 0.0
  %158 = vmatprep.subr.mxu0 0.0
  %159 = vmatpush1.msra.mxu0 0.0
  %160 = vmatprep.subr.mxu0 0.0
  %161 = vmatpush1.msra.mxu0 0.0
  %162 = vmatprep.subr.mxu0 0.0
  %163 = vmatpush1.msra.mxu0 0.0
  %164 = vmatprep.mubr.f32.mxu0 0.0
  %165 = vmatmul.mubr.f32.gmra.mrb[0].mxu0 %v77
  %v166 = vpop.f32.mrb[0].mxu0
  %v167 = vadd.f32 0.0, %v166
  %v168 = vpop.f32.mrb[0].mxu0
  %v169 = vadd.f32 0.0, %v168
  %170 = vmatprep.mubr.f32.mxu0 0.0
  %171 = vmatmul.mubr.f32.gmra.mrb[0].mxu0 %v80
  %v172 = vpop.f32.mrb[0].mxu0
  %v173 = vadd.f32 0.0, %v172
  %v174 = vpop.f32.mrb[0].mxu0
  %v175 = vadd.f32 0.0, %v174
  %176 = vmatprep.mubr.f32.mxu0 0.0
  %177 = vmatmul.mubr.f32.gmra.mrb[0].mxu0 %v83
  %v178 = vpop.f32.mrb[0].mxu0
  %v179 = vadd.f32 0.0, %v178
  %v180 = vpop.f32.mrb[0].mxu0
  %v181 = vadd.f32 0.0, %v180
  %182 = vmatprep.mubr.f32.mxu0 0.0
  %183 = vmatmul.mubr.f32.gmra.mrb[0].mxu0 %v86
  %v184 = vpop.f32.mrb[0].mxu0
  %v185 = vadd.f32 0.0, %v184
  %v186 = vpop.f32.mrb[0].mxu0
  %v187 = vadd.f32 0.0, %v186
  %188 = vmatprep.mubr.f32.mxu0 0.0
  %189 = vmatmul.mubr.f32.gmra.mrb[0].mxu0 %v89
  %v190 = vpop.f32.mrb[0].mxu0
  %v191 = vadd.f32 0.0, %v190
  %v192 = vpop.f32.mrb[0].mxu0
  %v193 = vadd.f32 0.0, %v192
  %194 = vmatprep.mubr.f32.mxu0 0.0
  %195 = vmatmul.mubr.f32.gmra.mrb[0].mxu0 %v92
  %v196 = vpop.f32.mrb[0].mxu0
  %v197 = vadd.f32 0.0, %v196
  %v198 = vpop.f32.mrb[0].mxu0
  %v199 = vadd.f32 0.0, %v198
  %200 = vmatprep.mubr.f32.mxu0 0.0
  %201 = vmatmul.mubr.f32.gmra.mrb[0].mxu0 %v95
  %v202 = vpop.f32.mrb[0].mxu0
  %v203 = vadd.f32 0.0, %v202
  %v204 = vpop.f32.mrb[0].mxu0
  %v205 = vadd.f32 0.0, %v204
  %206 = vmatprep.mubr.f32.mxu0 0.0
  %207 = vmatmul.mubr.f32.gmra.mrb[0].mxu0 %v98
  %v208 = vpop.f32.mrb[0].mxu0
  %v209 = vadd.f32 0.0, %v208
  %v210 = vpop.f32.mrb[0].mxu0
  %v211 = vadd.f32 0.0, %v210
  %212 = vdwg.mxu0
  %v213 = vadd.f32 %v35, %v167
  %v214 = vadd.f32 %v36, %v169
  %v215 = vadd.f32 %v37, %v173
  %v216 = vadd.f32 %v38, %v175
  %v217 = vadd.f32 %v39, %v179
  %v218 = vadd.f32 %v40, %v181
  %v219 = vadd.f32 %v41, %v185
  %v220 = vadd.f32 %v42, %v187
  %v221 = vadd.f32 %v43, %v191
  %v222 = vadd.f32 %v44, %v193
  %v223 = vadd.f32 %v45, %v197
  %v224 = vadd.f32 %v46, %v199
  %v225 = vadd.f32 %v47, %v203
  %v226 = vadd.f32 %v48, %v205
  %v227 = vadd.f32 %v49, %v209
  %v228 = vadd.f32 %v50, %v211
  %229 = vst [vmem:[#allocation2] sm:$0xff] %v213
  %230 = vst.msk [vmem:[#allocation2 + $0x8] sm:$0xff] %vm75, %v214
  %231 = vst [vmem:[#allocation2 + $0x10] sm:$0xff] %v215
  %232 = vst.msk [vmem:[#allocation2 + $0x18] sm:$0xff] %vm75, %v216
  %233 = vst [vmem:[#allocation2 + $0x20] sm:$0xff] %v217
  %234 = vst.msk [vmem:[#allocation2 + $0x28] sm:$0xff] %vm75, %v218
  %235 = vst [vmem:[#allocation2 + $0x30] sm:$0xff] %v219
  %236 = vst.msk [vmem:[#allocation2 + $0x38] sm:$0xff] %vm75, %v220
  %237 = vst [vmem:[#allocation2 + $0x40] sm:$0xff] %v221
  %238 = vst.msk [vmem:[#allocation2 + $0x48] sm:$0xff] %vm75, %v222
  %239 = vst [vmem:[#allocation2 + $0x50] sm:$0xff] %v223
  %240 = vst.msk [vmem:[#allocation2 + $0x58] sm:$0xff] %vm75, %v224
  %241 = vst [vmem:[#allocation2 + $0x60] sm:$0xff] %v225
  %242 = vst.msk [vmem:[#allocation2 + $0x68] sm:$0xff] %vm75, %v226
  %243 = vst [vmem:[#allocation2 + $0x70] sm:$0xff] %v227
  %244 = vst.msk [vmem:[#allocation2 + $0x78] sm:$0xff] %vm75, %v228
  // Predicated region
  $region18: #{run_pallas.29} parent=0 // pred_check
    %p245 = pneg %p14
  $region19: #{run_pallas.29} parent=0 // pred_check_branch
    %247 = sbr.rel (%p245) target = $region21
  $region20: #{run_pallas.29} parent=0 // pred_region
    %v248 = vld [vmem:[#allocation2] sm:$0xff]
    %v249 = vld [vmem:[#allocation2 + $0x8] sm:$0xff]
    %v250 = vld [vmem:[#allocation2 + $0x10] sm:$0xff]
    %v251 = vld [vmem:[#allocation2 + $0x18] sm:$0xff]
    %v252 = vld [vmem:[#allocation2 + $0x20] sm:$0xff]
    %v253 = vld [vmem:[#allocation2 + $0x28] sm:$0xff]
    %v254 = vld [vmem:[#allocation2 + $0x30] sm:$0xff]
    %v255 = vld [vmem:[#allocation2 + $0x38] sm:$0xff]
    %v256 = vld [vmem:[#allocation2 + $0x40] sm:$0xff]
    %v257 = vld [vmem:[#allocation2 + $0x48] sm:$0xff]
    %v258 = vld [vmem:[#allocation2 + $0x50] sm:$0xff]
    %v259 = vld [vmem:[#allocation2 + $0x58] sm:$0xff]
    %v260 = vld [vmem:[#allocation2 + $0x60] sm:$0xff]
    %v261 = vld [vmem:[#allocation2 + $0x68] sm:$0xff]
    %v262 = vld [vmem:[#allocation2 + $0x70] sm:$0xff]
    %v263 = vld [vmem:[#allocation2 + $0x78] sm:$0xff]
    %v264 = vld [vmem:[%s2] sm:$0x3]
    %v266 = vlaneseq
    %v267 = vshrl.u32 %v266, 7
    %v268 = vsub.s32 0, %v267
    %v269 = vrot.slane %v264, %v268
    %v270 = vlaneseq
    %v271 = vshrl.u32 %v270, 7
    %v272 = vsub.s32 1, %v271
    %v273 = vrot.slane %v264, %v272
    %v276 = vadd.f32 %v248, %v269
    %v277 = vadd.f32 %v249, %v273
    %v278 = vadd.f32 %v250, %v269
    %v279 = vadd.f32 %v251, %v273
    %v280 = vadd.f32 %v252, %v269
    %v281 = vadd.f32 %v253, %v273
    %v282 = vadd.f32 %v254, %v269
    %v283 = vadd.f32 %v255, %v273
    %v284 = vadd.f32 %v256, %v269
    %v285 = vadd.f32 %v257, %v273
    %v286 = vadd.f32 %v258, %v269
    %v287 = vadd.f32 %v259, %v273
    %v288 = vadd.f32 %v260, %v269
    %v289 = vadd.f32 %v261, %v273
    %v290 = vadd.f32 %v262, %v269
    %v291 = vadd.f32 %v263, %v273
    %292 = vst [vmem:[%s3] sm:$0xff] %v276
    %293 = vst.msk [vmem:[%s3 + $0x8] sm:$0xff] %vm75, %v277
    %294 = vst [vmem:[%s3 + $0x10] sm:$0xff] %v278
    %295 = vst.msk [vmem:[%s3 + $0x18] sm:$0xff] %vm75, %v279
    %296 = vst [vmem:[%s3 + $0x20] sm:$0xff] %v280
    %297 = vst.msk [vmem:[%s3 + $0x28] sm:$0xff] %vm75, %v281
    %298 = vst [vmem:[%s3 + $0x30] sm:$0xff] %v282
    %299 = vst.msk [vmem:[%s3 + $0x38] sm:$0xff] %vm75, %v283
    %300 = vst [vmem:[%s3 + $0x40] sm:$0xff] %v284
    %301 = vst.msk [vmem:[%s3 + $0x48] sm:$0xff] %vm75, %v285
    %302 = vst [vmem:[%s3 + $0x50] sm:$0xff] %v286
    %303 = vst.msk [vmem:[%s3 + $0x58] sm:$0xff] %vm75, %v287
    %304 = vst [vmem:[%s3 + $0x60] sm:$0xff] %v288
    %305 = vst.msk [vmem:[%s3 + $0x68] sm:$0xff] %vm75, %v289
    %306 = vst [vmem:[%s3 + $0x70] sm:$0xff] %v290
    %307 = vst.msk [vmem:[%s3 + $0x78] sm:$0xff] %vm75, %v291
  $region21: #{run_pallas.29} parent=0 // pred_fallthru
    _
  // Predicated region
  $region22: #{run_pallas.29} parent=0 // pred_check
    _
  $region23: #{run_pallas.29} parent=0 // pred_check_branch
    %309 = sbr.rel (0) target = $region25
  $region24: #{run_pallas.29} parent=0 // pred_region
    _
  $region25: #{run_pallas.29} parent=0 // pred_fallthru
    _
  // Predicated region
  $region26: #{run_pallas.29} parent=0 // pred_check
    _
  $region27: #{run_pallas.29} parent=0 // pred_check_branch
    %311 = sbr.rel (0) target = $region29
  $region28: #{run_pallas.29} parent=0 // pred_region
    _
  $region29: #{run_pallas.29} parent=0 // pred_fallthru
    _

// kernel: run_pallas.32
$region0: #{run_pallas.32}
  #allocation0 [shape = 'u32[]', space=smem, size = 0x4, offset = 0x4, fixed_abs, tag = 'smem constant byte address 0x4 - core index']
  #allocation1 [shape = 'u32[144,128]{1,0:T(1,128)}', space=vmem, size = 0x12000, scoped, tag = 'internal scratch']
  #allocation2 [shape = 'f32[64,128]{1,0:T(8,128)}', space=vmem, size = 0x8000, scoped, tag = 'scratch operand']
  %s0 = inlined_call_operand.vmem [shape: f32[64,64], index: 0, kind: input, shape index: {}]
  %s1 = inlined_call_operand.vmem [shape: f32[64,128], index: 1, kind: input, shape index: {}]
  %s2 = inlined_call_operand.vmem [shape: f32[1,128], index: 2, kind: input, shape index: {}]
  %s3 = inlined_call_operand.vmem [shape: f32[64,128], index: 3, kind: output, shape index: {}]
  %s4 = sld [smem:[#allocation0]]
  $region30: #{run_pallas.32} parent=0
    _
  %s6 = ssub.s32 1, %s4
  %s7 = scalar_select 0, %s6, %s4
  // Predicated region
  $region2: #{run_pallas.32} parent=0 // pred_check
    _
  $region3: #{run_pallas.32} parent=0 // pred_check_branch
    %9 = sbr.rel (0) target = $region5
  $region4: #{run_pallas.32} parent=0 // pred_region
    _
  $region5: #{run_pallas.32} parent=0 // pred_fallthru
    _
  // Predicated region
  $region6: #{run_pallas.32} parent=0 // pred_check
    _
  $region7: #{run_pallas.32} parent=0 // pred_check_branch
    %11 = sbr.rel (0) target = $region9
  $region8: #{run_pallas.32} parent=0 // pred_region
    _
  $region9: #{run_pallas.32} parent=0 // pred_fallthru
    _
  // Predicated region
  $region10: #{run_pallas.32} parent=0 // pred_check
    _
  $region11: #{run_pallas.32} parent=0 // pred_check_branch
    %13 = sbr.rel (0) target = $region13
  $region12: #{run_pallas.32} parent=0 // pred_region
    _
  $region13: #{run_pallas.32} parent=0 // pred_fallthru
    _
  %p14 = scmp.eq.s32.totalorder 0, 0
  // Predicated region
  $region14: #{run_pallas.32} parent=0 // pred_check
    %p15 = pneg %p14
  $region15: #{run_pallas.32} parent=0 // pred_check_branch
    %17 = sbr.rel (%p15) target = $region17
  $region16: #{run_pallas.32} parent=0 // pred_region
    %18 = vst [vmem:[#allocation2] sm:$0xff] 0.0
    %19 = vst [vmem:[#allocation2 + $0x8] sm:$0xff] 0.0
    %20 = vst [vmem:[#allocation2 + $0x10] sm:$0xff] 0.0
    %21 = vst [vmem:[#allocation2 + $0x18] sm:$0xff] 0.0
    %22 = vst [vmem:[#allocation2 + $0x20] sm:$0xff] 0.0
    %23 = vst [vmem:[#allocation2 + $0x28] sm:$0xff] 0.0
    %24 = vst [vmem:[#allocation2 + $0x30] sm:$0xff] 0.0
    %25 = vst [vmem:[#allocation2 + $0x38] sm:$0xff] 0.0
  $region17: #{run_pallas.32} parent=0 // pred_fallthru
    _
  %v26 = vld [vmem:[#allocation2] sm:$0xff]
  %v27 = vld [vmem:[#allocation2 + $0x8] sm:$0xff]
  %v28 = vld [vmem:[#allocation2 + $0x10] sm:$0xff]
  %v29 = vld [vmem:[#allocation2 + $0x18] sm:$0xff]
  %v30 = vld [vmem:[#allocation2 + $0x20] sm:$0xff]
  %v31 = vld [vmem:[#allocation2 + $0x28] sm:$0xff]
  %v32 = vld [vmem:[#allocation2 + $0x30] sm:$0xff]
  %v33 = vld [vmem:[#allocation2 + $0x38] sm:$0xff]
  %v34 = vld [vmem:[%s0] sm:$0xff]
  %v35 = vld [vmem:[%s0 + $0x8] sm:$0xff]
  %v36 = vld [vmem:[%s0 + $0x10] sm:$0xff]
  %v37 = vld [vmem:[%s0 + $0x18] sm:$0xff]
  %v38 = vld [vmem:[%s0 + $0x20] sm:$0xff]
  %v39 = vld [vmem:[%s0 + $0x28] sm:$0xff]
  %v40 = vld [vmem:[%s0 + $0x30] sm:$0xff]
  %v41 = vld [vmem:[%s0 + $0x38] sm:$0xff]
  %v42 = vld [vmem:[%s1] sm:$0xff]
  %v43 = vld [vmem:[%s1 + $0x8] sm:$0xff]
  %v44 = vld [vmem:[%s1 + $0x10] sm:$0xff]
  %v45 = vld [vmem:[%s1 + $0x18] sm:$0xff]
  %v46 = vld [vmem:[%s1 + $0x20] sm:$0xff]
  %v47 = vld [vmem:[%s1 + $0x28] sm:$0xff]
  %v48 = vld [vmem:[%s1 + $0x30] sm:$0xff]
  %v49 = vld [vmem:[%s1 + $0x38] sm:$0xff]
  %vm50 = vcmask 523264
  %v52 = vsel %vm50, %v34, 0
  %v55 = vsel %vm50, %v35, 0
  %v58 = vsel %vm50, %v36, 0
  %v61 = vsel %vm50, %v37, 0
  %v64 = vsel %vm50, %v38, 0
  %v67 = vsel %vm50, %v39, 0
  %v70 = vsel %vm50, %v40, 0
  %v73 = vsel %vm50, %v41, 0
  %75 = vmatprep.subr.mxu0 0.0
  %76 = vmatpush1.msra.mxu0 %v42
  %77 = vmatprep.subr.mxu0 0.0
  %78 = vmatpush1.msra.mxu0 %v43
  %79 = vmatprep.subr.mxu0 0.0
  %80 = vmatpush1.msra.mxu0 %v44
  %81 = vmatprep.subr.mxu0 0.0
  %82 = vmatpush1.msra.mxu0 %v45
  %83 = vmatprep.subr.mxu0 0.0
  %84 = vmatpush1.msra.mxu0 %v46
  %85 = vmatprep.subr.mxu0 0.0
  %86 = vmatpush1.msra.mxu0 %v47
  %87 = vmatprep.subr.mxu0 0.0
  %88 = vmatpush1.msra.mxu0 %v48
  %89 = vmatprep.subr.mxu0 0.0
  %90 = vmatpush1.msra.mxu0 %v49
  %91 = vmatprep.subr.mxu0 0.0
  %92 = vmatpush1.msra.mxu0 0.0
  %93 = vmatprep.subr.mxu0 0.0
  %94 = vmatpush1.msra.mxu0 0.0
  %95 = vmatprep.subr.mxu0 0.0
  %96 = vmatpush1.msra.mxu0 0.0
  %97 = vmatprep.subr.mxu0 0.0
  %98 = vmatpush1.msra.mxu0 0.0
  %99 = vmatprep.subr.mxu0 0.0
  %100 = vmatpush1.msra.mxu0 0.0
  %101 = vmatprep.subr.mxu0 0.0
  %102 = vmatpush1.msra.mxu0 0.0
  %103 = vmatprep.subr.mxu0 0.0
  %104 = vmatpush1.msra.mxu0 0.0
  %105 = vmatprep.subr.mxu0 0.0
  %106 = vmatpush1.msra.mxu0 0.0
  %107 = vmatprep.subr.mxu0 0.0
  %108 = vmatpush1.msra.mxu0 0.0
  %109 = vmatprep.subr.mxu0 0.0
  %110 = vmatpush1.msra.mxu0 0.0
  %111 = vmatprep.subr.mxu0 0.0
  %112 = vmatpush1.msra.mxu0 0.0
  %113 = vmatprep.subr.mxu0 0.0
  %114 = vmatpush1.msra.mxu0 0.0
  %115 = vmatprep.subr.mxu0 0.0
  %116 = vmatpush1.msra.mxu0 0.0
  %117 = vmatprep.subr.mxu0 0.0
  %118 = vmatpush1.msra.mxu0 0.0
  %119 = vmatprep.subr.mxu0 0.0
  %120 = vmatpush1.msra.mxu0 0.0
  %121 = vmatprep.subr.mxu0 0.0
  %122 = vmatpush1.msra.mxu0 0.0
  %123 = vmatprep.subr.mxu0 0.0
  %124 = vmatpush1.msra.mxu0 0.0
  %125 = vmatprep.subr.mxu0 0.0
  %126 = vmatpush1.msra.mxu0 0.0
  %127 = vmatprep.subr.mxu0 0.0
  %128 = vmatpush1.msra.mxu0 0.0
  %129 = vmatprep.subr.mxu0 0.0
  %130 = vmatpush1.msra.mxu0 0.0
  %131 = vmatprep.subr.mxu0 0.0
  %132 = vmatpush1.msra.mxu0 0.0
  %133 = vmatprep.subr.mxu0 0.0
  %134 = vmatpush1.msra.mxu0 0.0
  %135 = vmatprep.subr.mxu0 0.0
  %136 = vmatpush1.msra.mxu0 0.0
  %137 = vmatprep.subr.mxu0 0.0
  %138 = vmatpush1.msra.mxu0 0.0
  %139 = vmatprep.mubr.f32.mxu0 0.0
  %140 = vmatmul.mubr.f32.gmra.mrb[0].mxu0 %v52
  %v141 = vpop.f32.mrb[0].mxu0
  %v142 = vadd.f32 0.0, %v141
  %v143 = vpop.f32.mrb[0].mxu0
  %144 = vmatprep.mubr.f32.mxu0 0.0
  %145 = vmatmul.mubr.f32.gmra.mrb[0].mxu0 %v55
  %v146 = vpop.f32.mrb[0].mxu0
  %v147 = vadd.f32 0.0, %v146
  %v148 = vpop.f32.mrb[0].mxu0
  %149 = vmatprep.mubr.f32.mxu0 0.0
  %150 = vmatmul.mubr.f32.gmra.mrb[0].mxu0 %v58
  %v151 = vpop.f32.mrb[0].mxu0
  %v152 = vadd.f32 0.0, %v151
  %v153 = vpop.f32.mrb[0].mxu0
  %154 = vmatprep.mubr.f32.mxu0 0.0
  %155 = vmatmul.mubr.f32.gmra.mrb[0].mxu0 %v61
  %v156 = vpop.f32.mrb[0].mxu0
  %v157 = vadd.f32 0.0, %v156
  %v158 = vpop.f32.mrb[0].mxu0
  %159 = vmatprep.mubr.f32.mxu0 0.0
  %160 = vmatmul.mubr.f32.gmra.mrb[0].mxu0 %v64
  %v161 = vpop.f32.mrb[0].mxu0
  %v162 = vadd.f32 0.0, %v161
  %v163 = vpop.f32.mrb[0].mxu0
  %164 = vmatprep.mubr.f32.mxu0 0.0
  %165 = vmatmul.mubr.f32.gmra.mrb[0].mxu0 %v67
  %v166 = vpop.f32.mrb[0].mxu0
  %v167 = vadd.f32 0.0, %v166
  %v168 = vpop.f32.mrb[0].mxu0
  %169 = vmatprep.mubr.f32.mxu0 0.0
  %170 = vmatmul.mubr.f32.gmra.mrb[0].mxu0 %v70
  %v171 = vpop.f32.mrb[0].mxu0
  %v172 = vadd.f32 0.0, %v171
  %v173 = vpop.f32.mrb[0].mxu0
  %174 = vmatprep.mubr.f32.mxu0 0.0
  %175 = vmatmul.mubr.f32.gmra.mrb[0].mxu0 %v73
  %v176 = vpop.f32.mrb[0].mxu0
  %v177 = vadd.f32 0.0, %v176
  %v178 = vpop.f32.mrb[0].mxu0
  %179 = vdwg.mxu0
  %v180 = vadd.f32 %v26, %v142
  %v181 = vadd.f32 %v27, %v147
  %v182 = vadd.f32 %v28, %v152
  %v183 = vadd.f32 %v29, %v157
  %v184 = vadd.f32 %v30, %v162
  %v185 = vadd.f32 %v31, %v167
  %v186 = vadd.f32 %v32, %v172
  %v187 = vadd.f32 %v33, %v177
  %188 = vst [vmem:[#allocation2] sm:$0xff] %v180
  %189 = vst [vmem:[#allocation2 + $0x8] sm:$0xff] %v181
  %190 = vst [vmem:[#allocation2 + $0x10] sm:$0xff] %v182
  %191 = vst [vmem:[#allocation2 + $0x18] sm:$0xff] %v183
  %192 = vst [vmem:[#allocation2 + $0x20] sm:$0xff] %v184
  %193 = vst [vmem:[#allocation2 + $0x28] sm:$0xff] %v185
  %194 = vst [vmem:[#allocation2 + $0x30] sm:$0xff] %v186
  %195 = vst [vmem:[#allocation2 + $0x38] sm:$0xff] %v187
  // Predicated region
  $region18: #{run_pallas.32} parent=0 // pred_check
    %p196 = pneg %p14
  $region19: #{run_pallas.32} parent=0 // pred_check_branch
    %198 = sbr.rel (%p196) target = $region21
  $region20: #{run_pallas.32} parent=0 // pred_region
    %v199 = vld [vmem:[#allocation2] sm:$0xff]
    %v200 = vld [vmem:[#allocation2 + $0x8] sm:$0xff]
    %v201 = vld [vmem:[#allocation2 + $0x10] sm:$0xff]
    %v202 = vld [vmem:[#allocation2 + $0x18] sm:$0xff]
    %v203 = vld [vmem:[#allocation2 + $0x20] sm:$0xff]
    %v204 = vld [vmem:[#allocation2 + $0x28] sm:$0xff]
    %v205 = vld [vmem:[#allocation2 + $0x30] sm:$0xff]
    %v206 = vld [vmem:[#allocation2 + $0x38] sm:$0xff]
    %v207 = vld [vmem:[%s2] sm:$0x1]
    %v209 = vlaneseq
    %v210 = vshrl.u32 %v209, 7
    %v211 = vsub.s32 0, %v210
    %v212 = vrot.slane %v207, %v211
    %v214 = vadd.f32 %v199, %v212
    %v215 = vadd.f32 %v200, %v212
    %v216 = vadd.f32 %v201, %v212
    %v217 = vadd.f32 %v202, %v212
    %v218 = vadd.f32 %v203, %v212
    %v219 = vadd.f32 %v204, %v212
    %v220 = vadd.f32 %v205, %v212
    %v221 = vadd.f32 %v206, %v212
    %v222 = vmax.f32 %v214, 0.0
    %v223 = vmax.f32 %v215, 0.0
    %v224 = vmax.f32 %v216, 0.0
    %v225 = vmax.f32 %v217, 0.0
    %v226 = vmax.f32 %v218, 0.0
    %v227 = vmax.f32 %v219, 0.0
    %v228 = vmax.f32 %v220, 0.0
    %v229 = vmax.f32 %v221, 0.0
    %230 = vst [vmem:[%s3] sm:$0xff] %v222
    %231 = vst [vmem:[%s3 + $0x8] sm:$0xff] %v223
    %232 = vst [vmem:[%s3 + $0x10] sm:$0xff] %v224
    %233 = vst [vmem:[%s3 + $0x18] sm:$0xff] %v225
    %234 = vst [vmem:[%s3 + $0x20] sm:$0xff] %v226
    %235 = vst [vmem:[%s3 + $0x28] sm:$0xff] %v227
    %236 = vst [vmem:[%s3 + $0x30] sm:$0xff] %v228
    %237 = vst [vmem:[%s3 + $0x38] sm:$0xff] %v229
  $region21: #{run_pallas.32} parent=0 // pred_fallthru
    _
  // Predicated region
  $region22: #{run_pallas.32} parent=0 // pred_check
    _
  $region23: #{run_pallas.32} parent=0 // pred_check_branch
    %239 = sbr.rel (0) target = $region25
  $region24: #{run_pallas.32} parent=0 // pred_region
    _
  $region25: #{run_pallas.32} parent=0 // pred_fallthru
    _
  // Predicated region
  $region26: #{run_pallas.32} parent=0 // pred_check
    _
  $region27: #{run_pallas.32} parent=0 // pred_check_branch
    %241 = sbr.rel (0) target = $region29
  $region28: #{run_pallas.32} parent=0 // pred_region
    _
  $region29: #{run_pallas.32} parent=0 // pred_fallthru
    _

// kernel: run_pallas.30
$region0: #{run_pallas.30}
  #allocation0 [shape = 'u32[]', space=smem, size = 0x4, offset = 0x4, fixed_abs, tag = 'smem constant byte address 0x4 - core index']
  #allocation1 [shape = 'u32[144,128]{1,0:T(1,128)}', space=vmem, size = 0x12000, scoped, tag = 'internal scratch']
  %s0 = inlined_call_operand.vmem [shape: f32[8,4,8,16], index: 0, kind: input, shape index: {}]
  %s1 = inlined_call_operand.vmem [shape: f32[8,4,8,16], index: 1, kind: input, shape index: {}]
  %s2 = inlined_call_operand.vmem [shape: f32[8,4,8,16], index: 2, kind: input, shape index: {}]
  %s3 = inlined_call_operand.vmem [shape: f32[8,1,8,8], index: 3, kind: input, shape index: {}]
  %s4 = inlined_call_operand.vmem [shape: f32[8,4,8,16], index: 4, kind: output, shape index: {}]
  %s5 = sld [smem:[#allocation0]]
  $region49: #{run_pallas.30} parent=0
    _
  %s7 = ssub.s32 1, %s5
  %s8 = scalar_select 0, %s7, %s5
  loop: start=0, step=1, limit=10
  $region2: #{run_pallas.30} parent=0 // loop_pre_header
    _
  $region3: #{run_pallas.30} parent=0 // loop_header
    %s10 = sphi 0, %s14
    %p11 = scmp.ge.s32.totalorder %s10, 10
    %s20 = sphi 0, %s22
    %s23 = sphi 0, %s20
    %s24 = sphi 0, %s23
    %s40 = sphi 0, %s24
    %s46 = sphi 0, %s48
    %s49 = sphi 0, %s46
    %s50 = sphi 0, %s49
    %s66 = sphi 0, %s50
    %s72 = sphi 0, %s74
    %s75 = sphi 0, %s72
    %s76 = sphi 0, %s75
    %s92 = sphi 0, %s76
    %s98 = sphi 0, %s100
    %s101 = sphi 0, %s98
    %s102 = sphi 0, %s101
    %s118 = sphi 0, %s102
    %s124 = sphi 0, %s126
    %s127 = sphi 0, %s124
    %s128 = sphi 0, %s127
    %s144 = sphi 0, %s128
  $region4: #{run_pallas.30} parent=0 // loop_header_branch
    %13 = sbr.rel (%p11) target = $region8
  $region5: #{run_pallas.30} parent=0 // loop_body
    %s15 = ssub.s32 %s10, 1
    %s16 = ssub.s32 %s10, 2
    %s17 = sadd.s32 %s10, 1
    %s18 = ssub.s32 %s10, %s17
    %p19 = scmp.eq.s32.totalorder %s18, 0
    %s21 = sadd.s32 %s20, 1
    %s22 = scalar_select %p19, %s20, %s21
    %p25 = pneg %p19
    %p26 = scmp.eq.s32.totalorder %s10, 7
    %p27 = por %p25, %p26
    %p28 = scmp.ne.s32.totalorder %s20, %s23
    %p29 = scmp.eq.s32.totalorder %s10, 0
    %p30 = por %p28, %p29
    %p31 = scmp.ne.s32.totalorder %s20, %s23
    %p32 = scmp.eq.s32.totalorder %s15, 7
    %p33 = por %p31, %p32
    %p34 = scmp.ne.s32.totalorder %s23, %s24
    %p35 = scmp.eq.s32.totalorder %s15, 0
    %p36 = por %p34, %p35
    %p37 = scmp.ne.s32.totalorder %s23, %s24
    %p38 = scmp.eq.s32.totalorder %s16, 7
    %p39 = por %p37, %p38
    %p41 = scmp.ne.s32.totalorder %s24, %s40
    %p42 = scmp.eq.s32.totalorder %s16, 0
    %p43 = por %p41, %p42
    %s44 = ssub.s32 %s10, %s17
    %p45 = scmp.eq.s32.totalorder %s44, 0
    %s47 = sadd.s32 %s46, 1
    %s48 = scalar_select %p45, %s46, %s47
    %p51 = pneg %p45
    %p52 = scmp.eq.s32.totalorder %s10, 7
    %p53 = por %p51, %p52
    %p54 = scmp.ne.s32.totalorder %s46, %s49
    %p55 = scmp.eq.s32.totalorder %s10, 0
    %p56 = por %p54, %p55
    %p57 = scmp.ne.s32.totalorder %s46, %s49
    %p58 = scmp.eq.s32.totalorder %s15, 7
    %p59 = por %p57, %p58
    %p60 = scmp.ne.s32.totalorder %s49, %s50
    %p61 = scmp.eq.s32.totalorder %s15, 0
    %p62 = por %p60, %p61
    %p63 = scmp.ne.s32.totalorder %s49, %s50
    %p64 = scmp.eq.s32.totalorder %s16, 7
    %p65 = por %p63, %p64
    %p67 = scmp.ne.s32.totalorder %s50, %s66
    %p68 = scmp.eq.s32.totalorder %s16, 0
    %p69 = por %p67, %p68
    %s70 = ssub.s32 %s10, %s17
    %p71 = scmp.eq.s32.totalorder %s70, 0
    %s73 = sadd.s32 %s72, 1
    %s74 = scalar_select %p71, %s72, %s73
    %p77 = pneg %p71
    %p78 = scmp.eq.s32.totalorder %s10, 7
    %p79 = por %p77, %p78
    %p80 = scmp.ne.s32.totalorder %s72, %s75
    %p81 = scmp.eq.s32.totalorder %s10, 0
    %p82 = por %p80, %p81
    %p83 = scmp.ne.s32.totalorder %s72, %s75
    %p84 = scmp.eq.s32.totalorder %s15, 7
    %p85 = por %p83, %p84
    %p86 = scmp.ne.s32.totalorder %s75, %s76
    %p87 = scmp.eq.s32.totalorder %s15, 0
    %p88 = por %p86, %p87
    %p89 = scmp.ne.s32.totalorder %s75, %s76
    %p90 = scmp.eq.s32.totalorder %s16, 7
    %p91 = por %p89, %p90
    %p93 = scmp.ne.s32.totalorder %s76, %s92
    %p94 = scmp.eq.s32.totalorder %s16, 0
    %p95 = por %p93, %p94
    %s96 = ssub.s32 %s10, %s17
    %p97 = scmp.eq.s32.totalorder %s96, 0
    %s99 = sadd.s32 %s98, 1
    %s100 = scalar_select %p97, %s98, %s99
    %p103 = pneg %p97
    %p104 = scmp.eq.s32.totalorder %s10, 7
    %p105 = por %p103, %p104
    %p106 = scmp.ne.s32.totalorder %s98, %s101
    %p107 = scmp.eq.s32.totalorder %s10, 0
    %p108 = por %p106, %p107
    %p109 = scmp.ne.s32.totalorder %s98, %s101
    %p110 = scmp.eq.s32.totalorder %s15, 7
    %p111 = por %p109, %p110
    %p112 = scmp.ne.s32.totalorder %s101, %s102
    %p113 = scmp.eq.s32.totalorder %s15, 0
    %p114 = por %p112, %p113
    %p115 = scmp.ne.s32.totalorder %s101, %s102
    %p116 = scmp.eq.s32.totalorder %s16, 7
    %p117 = por %p115, %p116
    %p119 = scmp.ne.s32.totalorder %s102, %s118
    %p120 = scmp.eq.s32.totalorder %s16, 0
    %p121 = por %p119, %p120
    %s122 = ssub.s32 %s10, %s17
    %p123 = scmp.eq.s32.totalorder %s122, 0
    %s125 = sadd.s32 %s124, 1
    %s126 = scalar_select %p123, %s124, %s125
    %p129 = pneg %p123
    %p130 = scmp.eq.s32.totalorder %s10, 7
    %p131 = por %p129, %p130
    %p132 = scmp.ne.s32.totalorder %s124, %s127
    %p133 = scmp.eq.s32.totalorder %s10, 0
    %p134 = por %p132, %p133
    %p135 = scmp.ne.s32.totalorder %s124, %s127
    %p136 = scmp.eq.s32.totalorder %s15, 7
    %p137 = por %p135, %p136
    %p138 = scmp.ne.s32.totalorder %s127, %s128
    %p139 = scmp.eq.s32.totalorder %s15, 0
    %p140 = por %p138, %p139
    %p141 = scmp.ne.s32.totalorder %s127, %s128
    %p142 = scmp.eq.s32.totalorder %s16, 7
    %p143 = por %p141, %p142
    %p145 = scmp.ne.s32.totalorder %s128, %s144
    %p146 = scmp.eq.s32.totalorder %s16, 0
    %p147 = por %p145, %p146
    %p148 = scmp.le.s32.totalorder 1, %s10
    %p149 = scmp.lt.s32.totalorder %s10, 9
    %p150 = pnand %p148, %p149
    %p151 = pneg %p150
    // Predicated region
    $region9: #{run_pallas.30} parent=5 // pred_check
      _
    $region10: #{run_pallas.30} parent=5 // pred_check_branch
      %153 = sbr.rel (%p150) target = $region12
    $region11: #{run_pallas.30} parent=5 // pred_region
      %s154 = ssub.s32 %s10, 1
    $region12: #{run_pallas.30} parent=5 // pred_fallthru
      _
    %p155 = scmp.lt.s32.totalorder %s10, 8
    // Predicated region
    $region13: #{run_pallas.30} parent=5 // pred_check
      %p156 = pneg %p155
    $region14: #{run_pallas.30} parent=5 // pred_check_branch
      %158 = sbr.rel (%p156) target = $region16
    $region15: #{run_pallas.30} parent=5 // pred_region
      // Predicated region
      $region17: #{run_pallas.30} parent=15 // pred_check
        %p159 = pneg %p30
      $region18: #{run_pallas.30} parent=15 // pred_check_branch
        %161 = sbr.rel (%p159) target = $region20
      $region19: #{run_pallas.30} parent=15 // pred_region
        %p162 = scmp.lt.s32.totalorder %s10, 7
        %s163 = scalar_select %p162, %s10, 7
        %s164 = smul.addr %s163, 4
        %s165 = smul.addr %s164, 8
        %s166 = scalar_lea.vmem %s0, %s165
      $region20: #{run_pallas.30} parent=15 // pred_fallthru
        _
      // Predicated region
      $region21: #{run_pallas.30} parent=15 // pred_check
        %p167 = pneg %p56
      $region22: #{run_pallas.30} parent=15 // pred_check_branch
        %169 = sbr.rel (%p167) target = $region24
      $region23: #{run_pallas.30} parent=15 // pred_region
        %p170 = scmp.lt.s32.totalorder %s10, 7
        %s171 = scalar_select %p170, %s10, 7
        %s172 = smul.addr %s171, 4
        %s173 = smul.addr %s172, 8
        %s174 = scalar_lea.vmem %s1, %s173
      $region24: #{run_pallas.30} parent=15 // pred_fallthru
        _
      // Predicated region
      $region25: #{run_pallas.30} parent=15 // pred_check
        %p175 = pneg %p82
      $region26: #{run_pallas.30} parent=15 // pred_check_branch
        %177 = sbr.rel (%p175) target = $region28
      $region27: #{run_pallas.30} parent=15 // pred_region
        %p178 = scmp.lt.s32.totalorder %s10, 7
        %s179 = scalar_select %p178, %s10, 7
        %s180 = smul.addr %s179, 4
        %s181 = smul.addr %s180, 8
        %s182 = scalar_lea.vmem %s2, %s181
      $region28: #{run_pallas.30} parent=15 // pred_fallthru
        _
      // Predicated region
      $region29: #{run_pallas.30} parent=15 // pred_check
        %p183 = pneg %p108
      $region30: #{run_pallas.30} parent=15 // pred_check_branch
        %185 = sbr.rel (%p183) target = $region32
      $region31: #{run_pallas.30} parent=15 // pred_region
        %p186 = scmp.lt.s32.totalorder %s10, 7
        %s187 = scalar_select %p186, %s10, 7
        %s188 = smul.addr %s187, 8
        %s189 = scalar_lea.vmem %s3, %s188
      $region32: #{run_pallas.30} parent=15 // pred_fallthru
        _
    $region16: #{run_pallas.30} parent=5 // pred_fallthru
      _
    %p190 = scmp.le.s32.totalorder 1, %s10
    %p191 = scmp.lt.s32.totalorder %s10, 9
    %p192 = pnand %p190, %p191
    %p193 = pneg %p192
    // Predicated region
    $region33: #{run_pallas.30} parent=5 // pred_check
      _
    $region34: #{run_pallas.30} parent=5 // pred_check_branch
      %195 = sbr.rel (%p192) target = $region36
    $region35: #{run_pallas.30} parent=5 // pred_region
      %s196 = ssub.s32 %s10, 1
      %p197 = scmp.lt.s32.totalorder %s15, 7
      %s198 = scalar_select %p197, %s15, 7
      %s199 = smul.addr %s198, 4
      %s200 = smul.addr %s199, 8
      %s201 = scalar_lea.vmem %s0, %s200
      %p202 = pneg %p36
      %p203 = pneg %p33
      %p204 = scmp.lt.s32.totalorder %s15, 7
      %s205 = scalar_select %p204, %s15, 7
      %s206 = smul.addr %s205, 4
      %s207 = smul.addr %s206, 8
      %s208 = scalar_lea.vmem %s1, %s207
      %p209 = pneg %p62
      %p210 = pneg %p59
      %p211 = scmp.lt.s32.totalorder %s15, 7
      %s212 = scalar_select %p211, %s15, 7
      %s213 = smul.addr %s212, 4
      %s214 = smul.addr %s213, 8
      %s215 = scalar_lea.vmem %s2, %s214
      %p216 = pneg %p88
      %p217 = pneg %p85
      %p218 = scmp.lt.s32.totalorder %s15, 7
      %s219 = scalar_select %p218, %s15, 7
      %s220 = smul.addr %s219, 8
      %s221 = scalar_lea.vmem %s3, %s220
      %p222 = pneg %p114
      %p223 = pneg %p111
      %p224 = pneg %p140
      %p225 = pneg %p137
      %p226 = scmp.lt.s32.totalorder %s15, 7
      %s227 = scalar_select %p226, %s15, 7
      %s228 = smul.addr %s227, 4
      %s229 = smul.addr %s228, 8
      %s230 = scalar_lea.vmem %s4, %s229
      %p231 = scmp.lt.s32.totalorder %s15, 7
      %s232 = scalar_select %p231, %s15, 7
      %s233 = smul.addr %s232, 4
      %s234 = smul.addr %s233, 8
      %s235 = scalar_lea.vmem %s0, %s234
      %p236 = scmp.lt.s32.totalorder %s15, 7
      %s237 = scalar_select %p236, %s15, 7
      %s238 = smul.addr %s237, 4
      %s239 = smul.addr %s238, 8
      %s240 = scalar_lea.vmem %s1, %s239
      %p241 = scmp.lt.s32.totalorder %s15, 7
      %s242 = scalar_select %p241, %s15, 7
      %s243 = smul.addr %s242, 4
      %s244 = smul.addr %s243, 8
      %s245 = scalar_lea.vmem %s2, %s244
      %p246 = scmp.lt.s32.totalorder %s15, 7
      %s247 = scalar_select %p246, %s15, 7
      %s248 = smul.addr %s247, 8
      %s249 = scalar_lea.vmem %s3, %s248
      %p250 = scmp.lt.s32.totalorder %s15, 7
      %s251 = scalar_select %p250, %s15, 7
      %s252 = smul.addr %s251, 4
      %s253 = smul.addr %s252, 8
      %s254 = scalar_lea.vmem %s4, %s253
      %v255 = vld [vmem:[%s235] sm:$0xff]
      %v256 = vld [vmem:[%s235 + $0x8] sm:$0xff]
      %v257 = vld [vmem:[%s235 + $0x10] sm:$0xff]
      %v258 = vld [vmem:[%s235 + $0x18] sm:$0xff]
      %v259 = vld [vmem:[%s240] sm:$0xff]
      %v260 = vld [vmem:[%s240 + $0x8] sm:$0xff]
      %v261 = vld [vmem:[%s240 + $0x10] sm:$0xff]
      %v262 = vld [vmem:[%s240 + $0x18] sm:$0xff]
      %v263 = vld [vmem:[%s245] sm:$0xff]
      %v264 = vld [vmem:[%s245 + $0x8] sm:$0xff]
      %v265 = vld [vmem:[%s245 + $0x10] sm:$0xff]
      %v266 = vld [vmem:[%s245 + $0x18] sm:$0xff]
      %v267 = vld [vmem:[%s249] sm:$0xff]
      %vm268 = vcmask 130048
      %v270 = vsel %vm268, %v255, 0
      %v273 = vsel %vm268, %v259, 0
      %275 = vmatprep.subr.mxu0 0.0
      %276 = vmatpush1.xpose.msra.mxu0 %v273
      %277 = vmatprep.subr.mxu0 0.0
      %278 = vmatpush1.xpose.msra.mxu0 0.0
      %279 = vmatprep.subr.mxu0 0.0
      %280 = vmatpush1.xpose.msra.mxu0 0.0
      %281 = vmatprep.subr.mxu0 0.0
      %282 = vmatpush1.xpose.msra.mxu0 0.0
      %283 = vmatprep.subr.mxu0 0.0
      %284 = vmatpush1.xpose.msra.mxu0 0.0
      %285 = vmatprep.subr.mxu0 0.0
      %286 = vmatpush1.xpose.msra.mxu0 0.0
      %287 = vmatprep.subr.mxu0 0.0
      %288 = vmatpush1.xpose.msra.mxu0 0.0
      %289 = vmatprep.subr.mxu0 0.0
      %290 = vmatpush1.xpose.msra.mxu0 0.0
      %291 = vmatprep.subr.mxu0 0.0
      %292 = vmatpush1.xpose.msra.mxu0 0.0
      %293 = vmatprep.subr.mxu0 0.0
      %294 = vmatpush1.xpose.msra.mxu0 0.0
      %295 = vmatprep.subr.mxu0 0.0
      %296 = vmatpush1.xpose.msra.mxu0 0.0
      %297 = vmatprep.subr.mxu0 0.0
      %298 = vmatpush1.xpose.msra.mxu0 0.0
      %299 = vmatprep.subr.mxu0 0.0
      %300 = vmatpush1.xpose.msra.mxu0 0.0
      %301 = vmatprep.subr.mxu0 0.0
      %302 = vmatpush1.xpose.msra.mxu0 0.0
      %303 = vmatprep.subr.mxu0 0.0
      %304 = vmatpush1.xpose.msra.mxu0 0.0
      %305 = vmatprep.subr.mxu0 0.0
      %306 = vmatpush1.xpose.msra.mxu0 0.0
      %307 = vmatprep.subr.mxu0 0.0
      %308 = vmatpush1.xpose.msra.mxu0 0.0
      %309 = vmatprep.subr.mxu0 0.0
      %310 = vmatpush1.xpose.msra.mxu0 0.0
      %311 = vmatprep.subr.mxu0 0.0
      %312 = vmatpush1.xpose.msra.mxu0 0.0
      %313 = vmatprep.subr.mxu0 0.0
      %314 = vmatpush1.xpose.msra.mxu0 0.0
      %315 = vmatprep.subr.mxu0 0.0
      %316 = vmatpush1.xpose.msra.mxu0 0.0
      %317 = vmatprep.subr.mxu0 0.0
      %318 = vmatpush1.xpose.msra.mxu0 0.0
      %319 = vmatprep.subr.mxu0 0.0
      %320 = vmatpush1.xpose.msra.mxu0 0.0
      %321 = vmatprep.subr.mxu0 0.0
      %322 = vmatpush1.xpose.msra.mxu0 0.0
      %323 = vmatprep.subr.mxu0 0.0
      %324 = vmatpush1.xpose.msra.mxu0 0.0
      %325 = vmatprep.subr.mxu0 0.0
      %326 = vmatpush1.xpose.msra.mxu0 0.0
      %327 = vmatprep.subr.mxu0 0.0
      %328 = vmatpush1.xpose.msra.mxu0 0.0
      %329 = vmatprep.subr.mxu0 0.0
      %330 = vmatpush1.xpose.msra.mxu0 0.0
      %331 = vmatprep.subr.mxu0 0.0
      %332 = vmatpush1.xpose.msra.mxu0 0.0
      %333 = vmatprep.subr.mxu0 0.0
      %334 = vmatpush1.xpose.msra.mxu0 0.0
      %335 = vmatprep.subr.mxu0 0.0
      %336 = vmatpush1.xpose.msra.mxu0 0.0
      %337 = vmatprep.subr.mxu0 0.0
      %338 = vmatpush1.xpose.msra.mxu0 0.0
      %339 = vmatprep.mubr.f32.mxu0 0.0
      %340 = vmatmul.mubr.f32.gmra.mrb[0].mxu0 %v270
      %v341 = vpop.f32.mrb[0].mxu0
      %v342 = vadd.f32 0.0, %v341
      %v343 = vpop.f32.mrb[0].mxu0
      %344 = vdwg.mxu0
      %v346 = vsel %vm268, %v256, 0
      %v349 = vsel %vm268, %v260, 0
      %351 = vmatprep.subr.mxu0 0.0
      %352 = vmatpush1.xpose.msra.mxu0 %v349
      %353 = vmatprep.subr.mxu0 0.0
      %354 = vmatpush1.xpose.msra.mxu0 0.0
      %355 = vmatprep.subr.mxu0 0.0
      %356 = vmatpush1.xpose.msra.mxu0 0.0
      %357 = vmatprep.subr.mxu0 0.0
      %358 = vmatpush1.xpose.msra.mxu0 0.0
      %359 = vmatprep.subr.mxu0 0.0
      %360 = vmatpush1.xpose.msra.mxu0 0.0
      %361 = vmatprep.subr.mxu0 0.0
      %362 = vmatpush1.xpose.msra.mxu0 0.0
      %363 = vmatprep.subr.mxu0 0.0
      %364 = vmatpush1.xpose.msra.mxu0 0.0
      %365 = vmatprep.subr.mxu0 0.0
      %366 = vmatpush1.xpose.msra.mxu0 0.0
      %367 = vmatprep.subr.mxu0 0.0
      %368 = vmatpush1.xpose.msra.mxu0 0.0
      %369 = vmatprep.subr.mxu0 0.0
      %370 = vmatpush1.xpose.msra.mxu0 0.0
      %371 = vmatprep.subr.mxu0 0.0
      %372 = vmatpush1.xpose.msra.mxu0 0.0
      %373 = vmatprep.subr.mxu0 0.0
      %374 = vmatpush1.xpose.msra.mxu0 0.0
      %375 = vmatprep.subr.mxu0 0.0
      %376 = vmatpush1.xpose.msra.mxu0 0.0
      %377 = vmatprep.subr.mxu0 0.0
      %378 = vmatpush1.xpose.msra.mxu0 0.0
      %379 = vmatprep.subr.mxu0 0.0
      %380 = vmatpush1.xpose.msra.mxu0 0.0
      %381 = vmatprep.subr.mxu0 0.0
      %382 = vmatpush1.xpose.msra.mxu0 0.0
      %383 = vmatprep.subr.mxu0 0.0
      %384 = vmatpush1.xpose.msra.mxu0 0.0
      %385 = vmatprep.subr.mxu0 0.0
      %386 = vmatpush1.xpose.msra.mxu0 0.0
      %387 = vmatprep.subr.mxu0 0.0
      %388 = vmatpush1.xpose.msra.mxu0 0.0
      %389 = vmatprep.subr.mxu0 0.0
      %390 = vmatpush1.xpose.msra.mxu0 0.0
      %391 = vmatprep.subr.mxu0 0.0
      %392 = vmatpush1.xpose.msra.mxu0 0.0
      %393 = vmatprep.subr.mxu0 0.0
      %394 = vmatpush1.xpose.msra.mxu0 0.0
      %395 = vmatprep.subr.mxu0 0.0
      %396 = vmatpush1.xpose.msra.mxu0 0.0
      %397 = vmatprep.subr.mxu0 0.0
      %398 = vmatpush1.xpose.msra.mxu0 0.0
      %399 = vmatprep.subr.mxu0 0.0
      %400 = vmatpush1.xpose.msra.mxu0 0.0
      %401 = vmatprep.subr.mxu0 0.0
      %402 = vmatpush1.xpose.msra.mxu0 0.0
      %403 = vmatprep.subr.mxu0 0.0
      %404 = vmatpush1.xpose.msra.mxu0 0.0
      %405 = vmatprep.subr.mxu0 0.0
      %406 = vmatpush1.xpose.msra.mxu0 0.0
      %407 = vmatprep.subr.mxu0 0.0
      %408 = vmatpush1.xpose.msra.mxu0 0.0
      %409 = vmatprep.subr.mxu0 0.0
      %410 = vmatpush1.xpose.msra.mxu0 0.0
      %411 = vmatprep.subr.mxu0 0.0
      %412 = vmatpush1.xpose.msra.mxu0 0.0
      %413 = vmatprep.subr.mxu0 0.0
      %414 = vmatpush1.xpose.msra.mxu0 0.0
      %415 = vmatprep.mubr.f32.mxu0 0.0
      %416 = vmatmul.mubr.f32.gmra.mrb[0].mxu0 %v346
      %v417 = vpop.f32.mrb[0].mxu0
      %v418 = vadd.f32 0.0, %v417
      %v419 = vpop.f32.mrb[0].mxu0
      %420 = vdwg.mxu0
      %v422 = vsel %vm268, %v257, 0
      %v425 = vsel %vm268, %v261, 0
      %427 = vmatprep.subr.mxu0 0.0
      %428 = vmatpush1.xpose.msra.mxu0 %v425
      %429 = vmatprep.subr.mxu0 0.0
      %430 = vmatpush1.xpose.msra.mxu0 0.0
      %431 = vmatprep.subr.mxu0 0.0
      %432 = vmatpush1.xpose.msra.mxu0 0.0
      %433 = vmatprep.subr.mxu0 0.0
      %434 = vmatpush1.xpose.msra.mxu0 0.0
      %435 = vmatprep.subr.mxu0 0.0
      %436 = vmatpush1.xpose.msra.mxu0 0.0
      %437 = vmatprep.subr.mxu0 0.0
      %438 = vmatpush1.xpose.msra.mxu0 0.0
      %439 = vmatprep.subr.mxu0 0.0
      %440 = vmatpush1.xpose.msra.mxu0 0.0
      %441 = vmatprep.subr.mxu0 0.0
      %442 = vmatpush1.xpose.msra.mxu0 0.0
      %443 = vmatprep.subr.mxu0 0.0
      %444 = vmatpush1.xpose.msra.mxu0 0.0
      %445 = vmatprep.subr.mxu0 0.0
      %446 = vmatpush1.xpose.msra.mxu0 0.0
      %447 = vmatprep.subr.mxu0 0.0
      %448 = vmatpush1.xpose.msra.mxu0 0.0
      %449 = vmatprep.subr.mxu0 0.0
      %450 = vmatpush1.xpose.msra.mxu0 0.0
      %451 = vmatprep.subr.mxu0 0.0
      %452 = vmatpush1.xpose.msra.mxu0 0.0
      %453 = vmatprep.subr.mxu0 0.0
      %454 = vmatpush1.xpose.msra.mxu0 0.0
      %455 = vmatprep.subr.mxu0 0.0
      %456 = vmatpush1.xpose.msra.mxu0 0.0
      %457 = vmatprep.subr.mxu0 0.0
      %458 = vmatpush1.xpose.msra.mxu0 0.0
      %459 = vmatprep.subr.mxu0 0.0
      %460 = vmatpush1.xpose.msra.mxu0 0.0
      %461 = vmatprep.subr.mxu0 0.0
      %462 = vmatpush1.xpose.msra.mxu0 0.0
      %463 = vmatprep.subr.mxu0 0.0
      %464 = vmatpush1.xpose.msra.mxu0 0.0
      %465 = vmatprep.subr.mxu0 0.0
      %466 = vmatpush1.xpose.msra.mxu0 0.0
      %467 = vmatprep.subr.mxu0 0.0
      %468 = vmatpush1.xpose.msra.mxu0 0.0
      %469 = vmatprep.subr.mxu0 0.0
      %470 = vmatpush1.xpose.msra.mxu0 0.0
      %471 = vmatprep.subr.mxu0 0.0
      %472 = vmatpush1.xpose.msra.mxu0 0.0
      %473 = vmatprep.subr.mxu0 0.0
      %474 = vmatpush1.xpose.msra.mxu0 0.0
      %475 = vmatprep.subr.mxu0 0.0
      %476 = vmatpush1.xpose.msra.mxu0 0.0
      %477 = vmatprep.subr.mxu0 0.0
      %478 = vmatpush1.xpose.msra.mxu0 0.0
      %479 = vmatprep.subr.mxu0 0.0
      %480 = vmatpush1.xpose.msra.mxu0 0.0
      %481 = vmatprep.subr.mxu0 0.0
      %482 = vmatpush1.xpose.msra.mxu0 0.0
      %483 = vmatprep.subr.mxu0 0.0
      %484 = vmatpush1.xpose.msra.mxu0 0.0
      %485 = vmatprep.subr.mxu0 0.0
      %486 = vmatpush1.xpose.msra.mxu0 0.0
      %487 = vmatprep.subr.mxu0 0.0
      %488 = vmatpush1.xpose.msra.mxu0 0.0
      %489 = vmatprep.subr.mxu0 0.0
      %490 = vmatpush1.xpose.msra.mxu0 0.0
      %491 = vmatprep.mubr.f32.mxu0 0.0
      %492 = vmatmul.mubr.f32.gmra.mrb[0].mxu0 %v422
      %v493 = vpop.f32.mrb[0].mxu0
      %v494 = vadd.f32 0.0, %v493
      %v495 = vpop.f32.mrb[0].mxu0
      %496 = vdwg.mxu0
      %v498 = vsel %vm268, %v258, 0
      %v501 = vsel %vm268, %v262, 0
      %503 = vmatprep.subr.mxu0 0.0
      %504 = vmatpush1.xpose.msra.mxu0 %v501
      %505 = vmatprep.subr.mxu0 0.0
      %506 = vmatpush1.xpose.msra.mxu0 0.0
      %507 = vmatprep.subr.mxu0 0.0
      %508 = vmatpush1.xpose.msra.mxu0 0.0
      %509 = vmatprep.subr.mxu0 0.0
      %510 = vmatpush1.xpose.msra.mxu0 0.0
      %511 = vmatprep.subr.mxu0 0.0
      %512 = vmatpush1.xpose.msra.mxu0 0.0
      %513 = vmatprep.subr.mxu0 0.0
      %514 = vmatpush1.xpose.msra.mxu0 0.0
      %515 = vmatprep.subr.mxu0 0.0
      %516 = vmatpush1.xpose.msra.mxu0 0.0
      %517 = vmatprep.subr.mxu0 0.0
      %518 = vmatpush1.xpose.msra.mxu0 0.0
      %519 = vmatprep.subr.mxu0 0.0
      %520 = vmatpush1.xpose.msra.mxu0 0.0
      %521 = vmatprep.subr.mxu0 0.0
      %522 = vmatpush1.xpose.msra.mxu0 0.0
      %523 = vmatprep.subr.mxu0 0.0
      %524 = vmatpush1.xpose.msra.mxu0 0.0
      %525 = vmatprep.subr.mxu0 0.0
      %526 = vmatpush1.xpose.msra.mxu0 0.0
      %527 = vmatprep.subr.mxu0 0.0
      %528 = vmatpush1.xpose.msra.mxu0 0.0
      %529 = vmatprep.subr.mxu0 0.0
      %530 = vmatpush1.xpose.msra.mxu0 0.0
      %531 = vmatprep.subr.mxu0 0.0
      %532 = vmatpush1.xpose.msra.mxu0 0.0
      %533 = vmatprep.subr.mxu0 0.0
      %534 = vmatpush1.xpose.msra.mxu0 0.0
      %535 = vmatprep.subr.mxu0 0.0
      %536 = vmatpush1.xpose.msra.mxu0 0.0
      %537 = vmatprep.subr.mxu0 0.0
      %538 = vmatpush1.xpose.msra.mxu0 0.0
      %539 = vmatprep.subr.mxu0 0.0
      %540 = vmatpush1.xpose.msra.mxu0 0.0
      %541 = vmatprep.subr.mxu0 0.0
      %542 = vmatpush1.xpose.msra.mxu0 0.0
      %543 = vmatprep.subr.mxu0 0.0
      %544 = vmatpush1.xpose.msra.mxu0 0.0
      %545 = vmatprep.subr.mxu0 0.0
      %546 = vmatpush1.xpose.msra.mxu0 0.0
      %547 = vmatprep.subr.mxu0 0.0
      %548 = vmatpush1.xpose.msra.mxu0 0.0
      %549 = vmatprep.subr.mxu0 0.0
      %550 = vmatpush1.xpose.msra.mxu0 0.0
      %551 = vmatprep.subr.mxu0 0.0
      %552 = vmatpush1.xpose.msra.mxu0 0.0
      %553 = vmatprep.subr.mxu0 0.0
      %554 = vmatpush1.xpose.msra.mxu0 0.0
      %555 = vmatprep.subr.mxu0 0.0
      %556 = vmatpush1.xpose.msra.mxu0 0.0
      %557 = vmatprep.subr.mxu0 0.0
      %558 = vmatpush1.xpose.msra.mxu0 0.0
      %559 = vmatprep.subr.mxu0 0.0
      %560 = vmatpush1.xpose.msra.mxu0 0.0
      %561 = vmatprep.subr.mxu0 0.0
      %562 = vmatpush1.xpose.msra.mxu0 0.0
      %563 = vmatprep.subr.mxu0 0.0
      %564 = vmatpush1.xpose.msra.mxu0 0.0
      %565 = vmatprep.subr.mxu0 0.0
      %566 = vmatpush1.xpose.msra.mxu0 0.0
      %567 = vmatprep.mubr.f32.mxu0 0.0
      %568 = vmatmul.mubr.f32.gmra.mrb[0].mxu0 %v498
      %v569 = vpop.f32.mrb[0].mxu0
      %v570 = vadd.f32 0.0, %v569
      %v571 = vpop.f32.mrb[0].mxu0
      %572 = vdwg.mxu0
      %v573 = vmul.f32 %v342, 0.25
      %v574 = vmul.f32 %v418, 0.25
      %v575 = vmul.f32 %v494, 0.25
      %v576 = vmul.f32 %v570, 0.25
      %v577 = vadd.f32 %v573, %v267
      %v578 = vadd.f32 %v574, %v267
      %v579 = vadd.f32 %v575, %v267
      %v580 = vadd.f32 %v576, %v267
      %vm581 = vcmask 64512
      %v582 = vsel %vm581, %v577, -inf
      %583 = vmax.xlane.f32.xlu0 %v582
      %v584 = vpop.xlane.xlu0 %583
      %v585 = vsel %vm581, %v578, -inf
      %586 = vmax.xlane.f32.xlu0 %v585
      %v587 = vpop.xlane.xlu0 %586
      %v588 = vsel %vm581, %v579, -inf
      %589 = vmax.xlane.f32.xlu0 %v588
      %v590 = vpop.xlane.xlu0 %589
      %v591 = vsel %vm581, %v580, -inf
      %592 = vmax.xlane.f32.xlu0 %v591
      %v593 = vpop.xlane.xlu0 %592
      %v594 = vsub.f32 %v577, %v584
      %v595 = vsub.f32 %v578, %v587
      %v596 = vsub.f32 %v579, %v590
      %v597 = vsub.f32 %v580, %v593
      %v598 = vmul.f32 %v594, 1.442695
      %v599 = vpow.pop %v598
      %v600 = vmul.f32 %v595, 1.442695
      %v601 = vpow.pop %v600
      %v602 = vmul.f32 %v596, 1.442695
      %v603 = vpow.pop %v602
      %v604 = vmul.f32 %v597, 1.442695
      %v605 = vpow.pop %v604
      %v606 = vsel %vm581, %v599, 0.0
      %607 = vadd.xlane.f32.xlu0 %v606
      %v608 = vpop.xlane.xlu0 %607
      %v609 = vsel %vm581, %v601, 0.0
      %610 = vadd.xlane.f32.xlu0 %v609
      %v611 = vpop.xlane.xlu0 %610
      %v612 = vsel %vm581, %v603, 0.0
      %613 = vadd.xlane.f32.xlu0 %v612
      %v614 = vpop.xlane.xlu0 %613
      %v615 = vsel %vm581, %v605, 0.0
      %616 = vadd.xlane.f32.xlu0 %v615
      %v617 = vpop.xlane.xlu0 %616
      %v618 = vrcp.pop %v608
      %v619 = vrcp.pop %v611
      %v620 = vrcp.pop %v614
      %v621 = vrcp.pop %v617
      %v622 = vmul.f32 %v599, %v618
      %v623 = vmul.f32 %v601, %v619
      %v624 = vmul.f32 %v603, %v620
      %v625 = vmul.f32 %v605, %v621
      %v627 = vsel %vm581, %v622, 0
      %629 = vmatprep.subr.mxu0 0.0
      %630 = vmatpush1.msra.mxu0 %v263
      %631 = vmatprep.subr.mxu0 0.0
      %632 = vmatpush1.msra.mxu0 0.0
      %633 = vmatprep.subr.mxu0 0.0
      %634 = vmatpush1.msra.mxu0 0.0
      %635 = vmatprep.subr.mxu0 0.0
      %636 = vmatpush1.msra.mxu0 0.0
      %637 = vmatprep.subr.mxu0 0.0
      %638 = vmatpush1.msra.mxu0 0.0
      %639 = vmatprep.subr.mxu0 0.0
      %640 = vmatpush1.msra.mxu0 0.0
      %641 = vmatprep.subr.mxu0 0.0
      %642 = vmatpush1.msra.mxu0 0.0
      %643 = vmatprep.subr.mxu0 0.0
      %644 = vmatpush1.msra.mxu0 0.0
      %645 = vmatprep.subr.mxu0 0.0
      %646 = vmatpush1.msra.mxu0 0.0
      %647 = vmatprep.subr.mxu0 0.0
      %648 = vmatpush1.msra.mxu0 0.0
      %649 = vmatprep.subr.mxu0 0.0
      %650 = vmatpush1.msra.mxu0 0.0
      %651 = vmatprep.subr.mxu0 0.0
      %652 = vmatpush1.msra.mxu0 0.0
      %653 = vmatprep.subr.mxu0 0.0
      %654 = vmatpush1.msra.mxu0 0.0
      %655 = vmatprep.subr.mxu0 0.0
      %656 = vmatpush1.msra.mxu0 0.0
      %657 = vmatprep.subr.mxu0 0.0
      %658 = vmatpush1.msra.mxu0 0.0
      %659 = vmatprep.subr.mxu0 0.0
      %660 = vmatpush1.msra.mxu0 0.0
      %661 = vmatprep.subr.mxu0 0.0
      %662 = vmatpush1.msra.mxu0 0.0
      %663 = vmatprep.subr.mxu0 0.0
      %664 = vmatpush1.msra.mxu0 0.0
      %665 = vmatprep.subr.mxu0 0.0
      %666 = vmatpush1.msra.mxu0 0.0
      %667 = vmatprep.subr.mxu0 0.0
      %668 = vmatpush1.msra.mxu0 0.0
      %669 = vmatprep.subr.mxu0 0.0
      %670 = vmatpush1.msra.mxu0 0.0
      %671 = vmatprep.subr.mxu0 0.0
      %672 = vmatpush1.msra.mxu0 0.0
      %673 = vmatprep.subr.mxu0 0.0
      %674 = vmatpush1.msra.mxu0 0.0
      %675 = vmatprep.subr.mxu0 0.0
      %676 = vmatpush1.msra.mxu0 0.0
      %677 = vmatprep.subr.mxu0 0.0
      %678 = vmatpush1.msra.mxu0 0.0
      %679 = vmatprep.subr.mxu0 0.0
      %680 = vmatpush1.msra.mxu0 0.0
      %681 = vmatprep.subr.mxu0 0.0
      %682 = vmatpush1.msra.mxu0 0.0
      %683 = vmatprep.subr.mxu0 0.0
      %684 = vmatpush1.msra.mxu0 0.0
      %685 = vmatprep.subr.mxu0 0.0
      %686 = vmatpush1.msra.mxu0 0.0
      %687 = vmatprep.subr.mxu0 0.0
      %688 = vmatpush1.msra.mxu0 0.0
      %689 = vmatprep.subr.mxu0 0.0
      %690 = vmatpush1.msra.mxu0 0.0
      %691 = vmatprep.subr.mxu0 0.0
      %692 = vmatpush1.msra.mxu0 0.0
      %693 = vmatprep.mubr.f32.mxu0 0.0
      %694 = vmatmul.mubr.f32.gmra.mrb[0].mxu0 %v627
      %v695 = vpop.f32.mrb[0].mxu0
      %v696 = vadd.f32 0.0, %v695
      %v697 = vpop.f32.mrb[0].mxu0
      %698 = vdwg.mxu0
      %v700 = vsel %vm581, %v623, 0
      %702 = vmatprep.subr.mxu0 0.0
      %703 = vmatpush1.msra.mxu0 %v264
      %704 = vmatprep.subr.mxu0 0.0
      %705 = vmatpush1.msra.mxu0 0.0
      %706 = vmatprep.subr.mxu0 0.0
      %707 = vmatpush1.msra.mxu0 0.0
      %708 = vmatprep.subr.mxu0 0.0
      %709 = vmatpush1.msra.mxu0 0.0
      %710 = vmatprep.subr.mxu0 0.0
      %711 = vmatpush1.msra.mxu0 0.0
      %712 = vmatprep.subr.mxu0 0.0
      %713 = vmatpush1.msra.mxu0 0.0
      %714 = vmatprep.subr.mxu0 0.0
      %715 = vmatpush1.msra.mxu0 0.0
      %716 = vmatprep.subr.mxu0 0.0
      %717 = vmatpush1.msra.mxu0 0.0
      %718 = vmatprep.subr.mxu0 0.0
      %719 = vmatpush1.msra.mxu0 0.0
      %720 = vmatprep.subr.mxu0 0.0
      %721 = vmatpush1.msra.mxu0 0.0
      %722 = vmatprep.subr.mxu0 0.0
      %723 = vmatpush1.msra.mxu0 0.0
      %724 = vmatprep.subr.mxu0 0.0
      %725 = vmatpush1.msra.mxu0 0.0
      %726 = vmatprep.subr.mxu0 0.0
      %727 = vmatpush1.msra.mxu0 0.0
      %728 = vmatprep.subr.mxu0 0.0
      %729 = vmatpush1.msra.mxu0 0.0
      %730 = vmatprep.subr.mxu0 0.0
      %731 = vmatpush1.msra.mxu0 0.0
      %732 = vmatprep.subr.mxu0 0.0
      %733 = vmatpush1.msra.mxu0 0.0
      %734 = vmatprep.subr.mxu0 0.0
      %735 = vmatpush1.msra.mxu0 0.0
      %736 = vmatprep.subr.mxu0 0.0
      %737 = vmatpush1.msra.mxu0 0.0
      %738 = vmatprep.subr.mxu0 0.0
      %739 = vmatpush1.msra.mxu0 0.0
      %740 = vmatprep.subr.mxu0 0.0
      %741 = vmatpush1.msra.mxu0 0.0
      %742 = vmatprep.subr.mxu0 0.0
      %743 = vmatpush1.msra.mxu0 0.0
      %744 = vmatprep.subr.mxu0 0.0
      %745 = vmatpush1.msra.mxu0 0.0
      %746 = vmatprep.subr.mxu0 0.0
      %747 = vmatpush1.msra.mxu0 0.0
      %748 = vmatprep.subr.mxu0 0.0
      %749 = vmatpush1.msra.mxu0 0.0
      %750 = vmatprep.subr.mxu0 0.0
      %751 = vmatpush1.msra.mxu0 0.0
      %752 = vmatprep.subr.mxu0 0.0
      %753 = vmatpush1.msra.mxu0 0.0
      %754 = vmatprep.subr.mxu0 0.0
      %755 = vmatpush1.msra.mxu0 0.0
      %756 = vmatprep.subr.mxu0 0.0
      %757 = vmatpush1.msra.mxu0 0.0
      %758 = vmatprep.subr.mxu0 0.0
      %759 = vmatpush1.msra.mxu0 0.0
      %760 = vmatprep.subr.mxu0 0.0
      %761 = vmatpush1.msra.mxu0 0.0
      %762 = vmatprep.subr.mxu0 0.0
      %763 = vmatpush1.msra.mxu0 0.0
      %764 = vmatprep.subr.mxu0 0.0
      %765 = vmatpush1.msra.mxu0 0.0
      %766 = vmatprep.mubr.f32.mxu0 0.0
      %767 = vmatmul.mubr.f32.gmra.mrb[0].mxu0 %v700
      %v768 = vpop.f32.mrb[0].mxu0
      %v769 = vadd.f32 0.0, %v768
      %v770 = vpop.f32.mrb[0].mxu0
      %771 = vdwg.mxu0
      %v773 = vsel %vm581, %v624, 0
      %775 = vmatprep.subr.mxu0 0.0
      %776 = vmatpush1.msra.mxu0 %v265
      %777 = vmatprep.subr.mxu0 0.0
      %778 = vmatpush1.msra.mxu0 0.0
      %779 = vmatprep.subr.mxu0 0.0
      %780 = vmatpush1.msra.mxu0 0.0
      %781 = vmatprep.subr.mxu0 0.0
      %782 = vmatpush1.msra.mxu0 0.0
      %783 = vmatprep.subr.mxu0 0.0
      %784 = vmatpush1.msra.mxu0 0.0
      %785 = vmatprep.subr.mxu0 0.0
      %786 = vmatpush1.msra.mxu0 0.0
      %787 = vmatprep.subr.mxu0 0.0
      %788 = vmatpush1.msra.mxu0 0.0
      %789 = vmatprep.subr.mxu0 0.0
      %790 = vmatpush1.msra.mxu0 0.0
      %791 = vmatprep.subr.mxu0 0.0
      %792 = vmatpush1.msra.mxu0 0.0
      %793 = vmatprep.subr.mxu0 0.0
      %794 = vmatpush1.msra.mxu0 0.0
      %795 = vmatprep.subr.mxu0 0.0
      %796 = vmatpush1.msra.mxu0 0.0
      %797 = vmatprep.subr.mxu0 0.0
      %798 = vmatpush1.msra.mxu0 0.0
      %799 = vmatprep.subr.mxu0 0.0
      %800 = vmatpush1.msra.mxu0 0.0
      %801 = vmatprep.subr.mxu0 0.0
      %802 = vmatpush1.msra.mxu0 0.0
      %803 = vmatprep.subr.mxu0 0.0
      %804 = vmatpush1.msra.mxu0 0.0
      %805 = vmatprep.subr.mxu0 0.0
      %806 = vmatpush1.msra.mxu0 0.0
      %807 = vmatprep.subr.mxu0 0.0
      %808 = vmatpush1.msra.mxu0 0.0
      %809 = vmatprep.subr.mxu0 0.0
      %810 = vmatpush1.msra.mxu0 0.0
      %811 = vmatprep.subr.mxu0 0.0
      %812 = vmatpush1.msra.mxu0 0.0
      %813 = vmatprep.subr.mxu0 0.0
      %814 = vmatpush1.msra.mxu0 0.0
      %815 = vmatprep.subr.mxu0 0.0
      %816 = vmatpush1.msra.mxu0 0.0
      %817 = vmatprep.subr.mxu0 0.0
      %818 = vmatpush1.msra.mxu0 0.0
      %819 = vmatprep.subr.mxu0 0.0
      %820 = vmatpush1.msra.mxu0 0.0
      %821 = vmatprep.subr.mxu0 0.0
      %822 = vmatpush1.msra.mxu0 0.0
      %823 = vmatprep.subr.mxu0 0.0
      %824 = vmatpush1.msra.mxu0 0.0
      %825 = vmatprep.subr.mxu0 0.0
      %826 = vmatpush1.msra.mxu0 0.0
      %827 = vmatprep.subr.mxu0 0.0
      %828 = vmatpush1.msra.mxu0 0.0
      %829 = vmatprep.subr.mxu0 0.0
      %830 = vmatpush1.msra.mxu0 0.0
      %831 = vmatprep.subr.mxu0 0.0
      %832 = vmatpush1.msra.mxu0 0.0
      %833 = vmatprep.subr.mxu0 0.0
      %834 = vmatpush1.msra.mxu0 0.0
      %835 = vmatprep.subr.mxu0 0.0
      %836 = vmatpush1.msra.mxu0 0.0
      %837 = vmatprep.subr.mxu0 0.0
      %838 = vmatpush1.msra.mxu0 0.0
      %839 = vmatprep.mubr.f32.mxu0 0.0
      %840 = vmatmul.mubr.f32.gmra.mrb[0].mxu0 %v773
      %v841 = vpop.f32.mrb[0].mxu0
      %v842 = vadd.f32 0.0, %v841
      %v843 = vpop.f32.mrb[0].mxu0
      %844 = vdwg.mxu0
      %v846 = vsel %vm581, %v625, 0
      %848 = vmatprep.subr.mxu0 0.0
      %849 = vmatpush1.msra.mxu0 %v266
      %850 = vmatprep.subr.mxu0 0.0
      %851 = vmatpush1.msra.mxu0 0.0
      %852 = vmatprep.subr.mxu0 0.0
      %853 = vmatpush1.msra.mxu0 0.0
      %854 = vmatprep.subr.mxu0 0.0
      %855 = vmatpush1.msra.mxu0 0.0
      %856 = vmatprep.subr.mxu0 0.0
      %857 = vmatpush1.msra.mxu0 0.0
      %858 = vmatprep.subr.mxu0 0.0
      %859 = vmatpush1.msra.mxu0 0.0
      %860 = vmatprep.subr.mxu0 0.0
      %861 = vmatpush1.msra.mxu0 0.0
      %862 = vmatprep.subr.mxu0 0.0
      %863 = vmatpush1.msra.mxu0 0.0
      %864 = vmatprep.subr.mxu0 0.0
      %865 = vmatpush1.msra.mxu0 0.0
      %866 = vmatprep.subr.mxu0 0.0
      %867 = vmatpush1.msra.mxu0 0.0
      %868 = vmatprep.subr.mxu0 0.0
      %869 = vmatpush1.msra.mxu0 0.0
      %870 = vmatprep.subr.mxu0 0.0
      %871 = vmatpush1.msra.mxu0 0.0
      %872 = vmatprep.subr.mxu0 0.0
      %873 = vmatpush1.msra.mxu0 0.0
      %874 = vmatprep.subr.mxu0 0.0
      %875 = vmatpush1.msra.mxu0 0.0
      %876 = vmatprep.subr.mxu0 0.0
      %877 = vmatpush1.msra.mxu0 0.0
      %878 = vmatprep.subr.mxu0 0.0
      %879 = vmatpush1.msra.mxu0 0.0
      %880 = vmatprep.subr.mxu0 0.0
      %881 = vmatpush1.msra.mxu0 0.0
      %882 = vmatprep.subr.mxu0 0.0
      %883 = vmatpush1.msra.mxu0 0.0
      %884 = vmatprep.subr.mxu0 0.0
      %885 = vmatpush1.msra.mxu0 0.0
      %886 = vmatprep.subr.mxu0 0.0
      %887 = vmatpush1.msra.mxu0 0.0
      %888 = vmatprep.subr.mxu0 0.0
      %889 = vmatpush1.msra.mxu0 0.0
      %890 = vmatprep.subr.mxu0 0.0
      %891 = vmatpush1.msra.mxu0 0.0
      %892 = vmatprep.subr.mxu0 0.0
      %893 = vmatpush1.msra.mxu0 0.0
      %894 = vmatprep.subr.mxu0 0.0
      %895 = vmatpush1.msra.mxu0 0.0
      %896 = vmatprep.subr.mxu0 0.0
      %897 = vmatpush1.msra.mxu0 0.0
      %898 = vmatprep.subr.mxu0 0.0
      %899 = vmatpush1.msra.mxu0 0.0
      %900 = vmatprep.subr.mxu0 0.0
      %901 = vmatpush1.msra.mxu0 0.0
      %902 = vmatprep.subr.mxu0 0.0
      %903 = vmatpush1.msra.mxu0 0.0
      %904 = vmatprep.subr.mxu0 0.0
      %905 = vmatpush1.msra.mxu0 0.0
      %906 = vmatprep.subr.mxu0 0.0
      %907 = vmatpush1.msra.mxu0 0.0
      %908 = vmatprep.subr.mxu0 0.0
      %909 = vmatpush1.msra.mxu0 0.0
      %910 = vmatprep.subr.mxu0 0.0
      %911 = vmatpush1.msra.mxu0 0.0
      %912 = vmatprep.mubr.f32.mxu0 0.0
      %913 = vmatmul.mubr.f32.gmra.mrb[0].mxu0 %v846
      %v914 = vpop.f32.mrb[0].mxu0
      %v915 = vadd.f32 0.0, %v914
      %v916 = vpop.f32.mrb[0].mxu0
      %917 = vdwg.mxu0
      %918 = vst.msk [vmem:[%s254] sm:$0xff] %vm268, %v696
      %919 = vst.msk [vmem:[%s254 + $0x8] sm:$0xff] %vm268, %v769
      %920 = vst.msk [vmem:[%s254 + $0x10] sm:$0xff] %vm268, %v842
      %921 = vst.msk [vmem:[%s254 + $0x18] sm:$0xff] %vm268, %v915
      %p922 = scmp.lt.s32.totalorder %s15, 7
      %s923 = scalar_select %p922, %s15, 7
      %s924 = smul.addr %s923, 4
      %s925 = smul.addr %s924, 8
      %s926 = scalar_lea.vmem %s4, %s925
      // Predicated region
      $region37: #{run_pallas.30} parent=35 // pred_check
        %p927 = pneg %p137
      $region38: #{run_pallas.30} parent=35 // pred_check_branch
        %929 = sbr.rel (%p927) target = $region40
      $region39: #{run_pallas.30} parent=35 // pred_region
        _
      $region40: #{run_pallas.30} parent=35 // pred_fallthru
        _
    $region36: #{run_pallas.30} parent=5 // pred_fallthru
      _
    %p930 = scmp.le.s32.totalorder 2, %s10
    // Predicated region
    $region41: #{run_pallas.30} parent=5 // pred_check
      %p931 = pneg %p930
    $region42: #{run_pallas.30} parent=5 // pred_check_branch
      %933 = sbr.rel (%p931) target = $region44
    $region43: #{run_pallas.30} parent=5 // pred_region
      %s934 = ssub.s32 %s10, 2
      // Predicated region
      $region45: #{run_pallas.30} parent=43 // pred_check
        %p935 = pneg %p143
      $region46: #{run_pallas.30} parent=43 // pred_check_branch
        %937 = sbr.rel (%p935) target = $region48
      $region47: #{run_pallas.30} parent=43 // pred_region
        %p938 = scmp.lt.s32.totalorder %s16, 7
        %s939 = scalar_select %p938, %s16, 7
        %s940 = smul.addr %s939, 4
        %s941 = smul.addr %s940, 8
        %s942 = scalar_lea.vmem %s4, %s941
      $region48: #{run_pallas.30} parent=43 // pred_fallthru
        _
    $region44: #{run_pallas.30} parent=5 // pred_fallthru
      _
  $region6: #{run_pallas.30} parent=0 // loop_footer
    %s14 = sadd.s32 1, %s10
  $region7: #{run_pallas.30} parent=0 // loop_footer_branch
    %9 = sbr.rel target = $region3
  $region8: #{run_pallas.30} parent=0 // loop_exit
    _

// kernel: run_pallas.31
$region0: #{run_pallas.31}
  #allocation0 [shape = 'u32[]', space=smem, size = 0x4, offset = 0x4, fixed_abs, tag = 'smem constant byte address 0x4 - core index']
  #allocation1 [shape = 'u32[144,128]{1,0:T(1,128)}', space=vmem, size = 0x12000, scoped, tag = 'internal scratch']
  #allocation2 [shape = 'f32[64,64]{1,0:T(8,128)}', space=vmem, size = 0x8000, scoped, tag = 'scratch operand']
  %s0 = inlined_call_operand.vmem [shape: f32[64,64], index: 0, kind: input, shape index: {}]
  %s1 = inlined_call_operand.vmem [shape: f32[64,64], index: 1, kind: input, shape index: {}]
  %s2 = inlined_call_operand.vmem [shape: f32[1,64], index: 2, kind: input, shape index: {}]
  %s3 = inlined_call_operand.vmem [shape: f32[64,64], index: 3, kind: input, shape index: {}]
  %s4 = inlined_call_operand.vmem [shape: f32[1,64], index: 4, kind: input, shape index: {}]
  %s5 = inlined_call_operand.vmem [shape: f32[1,64], index: 5, kind: input, shape index: {}]
  %s6 = inlined_call_operand.vmem [shape: f32[64,64], index: 6, kind: output, shape index: {}]
  %s7 = sld [smem:[#allocation0]]
  $region42: #{run_pallas.31} parent=0
    _
  %s9 = ssub.s32 1, %s7
  %s10 = scalar_select 0, %s9, %s7
  // Predicated region
  $region2: #{run_pallas.31} parent=0 // pred_check
    _
  $region3: #{run_pallas.31} parent=0 // pred_check_branch
    %12 = sbr.rel (0) target = $region5
  $region4: #{run_pallas.31} parent=0 // pred_region
    _
  $region5: #{run_pallas.31} parent=0 // pred_fallthru
    _
  // Predicated region
  $region6: #{run_pallas.31} parent=0 // pred_check
    _
  $region7: #{run_pallas.31} parent=0 // pred_check_branch
    %14 = sbr.rel (0) target = $region9
  $region8: #{run_pallas.31} parent=0 // pred_region
    _
  $region9: #{run_pallas.31} parent=0 // pred_fallthru
    _
  // Predicated region
  $region10: #{run_pallas.31} parent=0 // pred_check
    _
  $region11: #{run_pallas.31} parent=0 // pred_check_branch
    %16 = sbr.rel (0) target = $region13
  $region12: #{run_pallas.31} parent=0 // pred_region
    _
  $region13: #{run_pallas.31} parent=0 // pred_fallthru
    _
  // Predicated region
  $region14: #{run_pallas.31} parent=0 // pred_check
    _
  $region15: #{run_pallas.31} parent=0 // pred_check_branch
    %18 = sbr.rel (0) target = $region17
  $region16: #{run_pallas.31} parent=0 // pred_region
    _
  $region17: #{run_pallas.31} parent=0 // pred_fallthru
    _
  // Predicated region
  $region18: #{run_pallas.31} parent=0 // pred_check
    _
  $region19: #{run_pallas.31} parent=0 // pred_check_branch
    %20 = sbr.rel (0) target = $region21
  $region20: #{run_pallas.31} parent=0 // pred_region
    _
  $region21: #{run_pallas.31} parent=0 // pred_fallthru
    _
  // Predicated region
  $region22: #{run_pallas.31} parent=0 // pred_check
    _
  $region23: #{run_pallas.31} parent=0 // pred_check_branch
    %22 = sbr.rel (0) target = $region25
  $region24: #{run_pallas.31} parent=0 // pred_region
    _
  $region25: #{run_pallas.31} parent=0 // pred_fallthru
    _
  %p23 = scmp.eq.s32.totalorder 0, 0
  // Predicated region
  $region26: #{run_pallas.31} parent=0 // pred_check
    %p24 = pneg %p23
  $region27: #{run_pallas.31} parent=0 // pred_check_branch
    %26 = sbr.rel (%p24) target = $region29
  $region28: #{run_pallas.31} parent=0 // pred_region
    %vm27 = vcmask 523264
    %28 = vst.msk [vmem:[#allocation2] sm:$0xff] %vm27, 0.0
    %29 = vst.msk [vmem:[#allocation2 + $0x8] sm:$0xff] %vm27, 0.0
    %30 = vst.msk [vmem:[#allocation2 + $0x10] sm:$0xff] %vm27, 0.0
    %31 = vst.msk [vmem:[#allocation2 + $0x18] sm:$0xff] %vm27, 0.0
    %32 = vst.msk [vmem:[#allocation2 + $0x20] sm:$0xff] %vm27, 0.0
    %33 = vst.msk [vmem:[#allocation2 + $0x28] sm:$0xff] %vm27, 0.0
    %34 = vst.msk [vmem:[#allocation2 + $0x30] sm:$0xff] %vm27, 0.0
    %35 = vst.msk [vmem:[#allocation2 + $0x38] sm:$0xff] %vm27, 0.0
  $region29: #{run_pallas.31} parent=0 // pred_fallthru
    _
  %v36 = vld [vmem:[#allocation2] sm:$0xff]
  %v37 = vld [vmem:[#allocation2 + $0x8] sm:$0xff]
  %v38 = vld [vmem:[#allocation2 + $0x10] sm:$0xff]
  %v39 = vld [vmem:[#allocation2 + $0x18] sm:$0xff]
  %v40 = vld [vmem:[#allocation2 + $0x20] sm:$0xff]
  %v41 = vld [vmem:[#allocation2 + $0x28] sm:$0xff]
  %v42 = vld [vmem:[#allocation2 + $0x30] sm:$0xff]
  %v43 = vld [vmem:[#allocation2 + $0x38] sm:$0xff]
  %v44 = vld [vmem:[%s0] sm:$0xff]
  %v45 = vld [vmem:[%s0 + $0x8] sm:$0xff]
  %v46 = vld [vmem:[%s0 + $0x10] sm:$0xff]
  %v47 = vld [vmem:[%s0 + $0x18] sm:$0xff]
  %v48 = vld [vmem:[%s0 + $0x20] sm:$0xff]
  %v49 = vld [vmem:[%s0 + $0x28] sm:$0xff]
  %v50 = vld [vmem:[%s0 + $0x30] sm:$0xff]
  %v51 = vld [vmem:[%s0 + $0x38] sm:$0xff]
  %v52 = vld [vmem:[%s1] sm:$0xff]
  %v53 = vld [vmem:[%s1 + $0x8] sm:$0xff]
  %v54 = vld [vmem:[%s1 + $0x10] sm:$0xff]
  %v55 = vld [vmem:[%s1 + $0x18] sm:$0xff]
  %v56 = vld [vmem:[%s1 + $0x20] sm:$0xff]
  %v57 = vld [vmem:[%s1 + $0x28] sm:$0xff]
  %v58 = vld [vmem:[%s1 + $0x30] sm:$0xff]
  %v59 = vld [vmem:[%s1 + $0x38] sm:$0xff]
  %vm60 = vcmask 523264
  %v62 = vsel %vm60, %v44, 0
  %v65 = vsel %vm60, %v45, 0
  %v68 = vsel %vm60, %v46, 0
  %v71 = vsel %vm60, %v47, 0
  %v74 = vsel %vm60, %v48, 0
  %v77 = vsel %vm60, %v49, 0
  %v80 = vsel %vm60, %v50, 0
  %v83 = vsel %vm60, %v51, 0
  %85 = vmatprep.subr.mxu0 0.0
  %86 = vmatpush1.msra.mxu0 %v52
  %87 = vmatprep.subr.mxu0 0.0
  %88 = vmatpush1.msra.mxu0 %v53
  %89 = vmatprep.subr.mxu0 0.0
  %90 = vmatpush1.msra.mxu0 %v54
  %91 = vmatprep.subr.mxu0 0.0
  %92 = vmatpush1.msra.mxu0 %v55
  %93 = vmatprep.subr.mxu0 0.0
  %94 = vmatpush1.msra.mxu0 %v56
  %95 = vmatprep.subr.mxu0 0.0
  %96 = vmatpush1.msra.mxu0 %v57
  %97 = vmatprep.subr.mxu0 0.0
  %98 = vmatpush1.msra.mxu0 %v58
  %99 = vmatprep.subr.mxu0 0.0
  %100 = vmatpush1.msra.mxu0 %v59
  %101 = vmatprep.subr.mxu0 0.0
  %102 = vmatpush1.msra.mxu0 0.0
  %103 = vmatprep.subr.mxu0 0.0
  %104 = vmatpush1.msra.mxu0 0.0
  %105 = vmatprep.subr.mxu0 0.0
  %106 = vmatpush1.msra.mxu0 0.0
  %107 = vmatprep.subr.mxu0 0.0
  %108 = vmatpush1.msra.mxu0 0.0
  %109 = vmatprep.subr.mxu0 0.0
  %110 = vmatpush1.msra.mxu0 0.0
  %111 = vmatprep.subr.mxu0 0.0
  %112 = vmatpush1.msra.mxu0 0.0
  %113 = vmatprep.subr.mxu0 0.0
  %114 = vmatpush1.msra.mxu0 0.0
  %115 = vmatprep.subr.mxu0 0.0
  %116 = vmatpush1.msra.mxu0 0.0
  %117 = vmatprep.subr.mxu0 0.0
  %118 = vmatpush1.msra.mxu0 0.0
  %119 = vmatprep.subr.mxu0 0.0
  %120 = vmatpush1.msra.mxu0 0.0
  %121 = vmatprep.subr.mxu0 0.0
  %122 = vmatpush1.msra.mxu0 0.0
  %123 = vmatprep.subr.mxu0 0.0
  %124 = vmatpush1.msra.mxu0 0.0
  %125 = vmatprep.subr.mxu0 0.0
  %126 = vmatpush1.msra.mxu0 0.0
  %127 = vmatprep.subr.mxu0 0.0
  %128 = vmatpush1.msra.mxu0 0.0
  %129 = vmatprep.subr.mxu0 0.0
  %130 = vmatpush1.msra.mxu0 0.0
  %131 = vmatprep.subr.mxu0 0.0
  %132 = vmatpush1.msra.mxu0 0.0
  %133 = vmatprep.subr.mxu0 0.0
  %134 = vmatpush1.msra.mxu0 0.0
  %135 = vmatprep.subr.mxu0 0.0
  %136 = vmatpush1.msra.mxu0 0.0
  %137 = vmatprep.subr.mxu0 0.0
  %138 = vmatpush1.msra.mxu0 0.0
  %139 = vmatprep.subr.mxu0 0.0
  %140 = vmatpush1.msra.mxu0 0.0
  %141 = vmatprep.subr.mxu0 0.0
  %142 = vmatpush1.msra.mxu0 0.0
  %143 = vmatprep.subr.mxu0 0.0
  %144 = vmatpush1.msra.mxu0 0.0
  %145 = vmatprep.subr.mxu0 0.0
  %146 = vmatpush1.msra.mxu0 0.0
  %147 = vmatprep.subr.mxu0 0.0
  %148 = vmatpush1.msra.mxu0 0.0
  %149 = vmatprep.mubr.f32.mxu0 0.0
  %150 = vmatmul.mubr.f32.gmra.mrb[0].mxu0 %v62
  %v151 = vpop.f32.mrb[0].mxu0
  %v152 = vadd.f32 0.0, %v151
  %v153 = vpop.f32.mrb[0].mxu0
  %154 = vmatprep.mubr.f32.mxu0 0.0
  %155 = vmatmul.mubr.f32.gmra.mrb[0].mxu0 %v65
  %v156 = vpop.f32.mrb[0].mxu0
  %v157 = vadd.f32 0.0, %v156
  %v158 = vpop.f32.mrb[0].mxu0
  %159 = vmatprep.mubr.f32.mxu0 0.0
  %160 = vmatmul.mubr.f32.gmra.mrb[0].mxu0 %v68
  %v161 = vpop.f32.mrb[0].mxu0
  %v162 = vadd.f32 0.0, %v161
  %v163 = vpop.f32.mrb[0].mxu0
  %164 = vmatprep.mubr.f32.mxu0 0.0
  %165 = vmatmul.mubr.f32.gmra.mrb[0].mxu0 %v71
  %v166 = vpop.f32.mrb[0].mxu0
  %v167 = vadd.f32 0.0, %v166
  %v168 = vpop.f32.mrb[0].mxu0
  %169 = vmatprep.mubr.f32.mxu0 0.0
  %170 = vmatmul.mubr.f32.gmra.mrb[0].mxu0 %v74
  %v171 = vpop.f32.mrb[0].mxu0
  %v172 = vadd.f32 0.0, %v171
  %v173 = vpop.f32.mrb[0].mxu0
  %174 = vmatprep.mubr.f32.mxu0 0.0
  %175 = vmatmul.mubr.f32.gmra.mrb[0].mxu0 %v77
  %v176 = vpop.f32.mrb[0].mxu0
  %v177 = vadd.f32 0.0, %v176
  %v178 = vpop.f32.mrb[0].mxu0
  %179 = vmatprep.mubr.f32.mxu0 0.0
  %180 = vmatmul.mubr.f32.gmra.mrb[0].mxu0 %v80
  %v181 = vpop.f32.mrb[0].mxu0
  %v182 = vadd.f32 0.0, %v181
  %v183 = vpop.f32.mrb[0].mxu0
  %184 = vmatprep.mubr.f32.mxu0 0.0
  %185 = vmatmul.mubr.f32.gmra.mrb[0].mxu0 %v83
  %v186 = vpop.f32.mrb[0].mxu0
  %v187 = vadd.f32 0.0, %v186
  %v188 = vpop.f32.mrb[0].mxu0
  %189 = vdwg.mxu0
  %v190 = vadd.f32 %v36, %v152
  %v191 = vadd.f32 %v37, %v157
  %v192 = vadd.f32 %v38, %v162
  %v193 = vadd.f32 %v39, %v167
  %v194 = vadd.f32 %v40, %v172
  %v195 = vadd.f32 %v41, %v177
  %v196 = vadd.f32 %v42, %v182
  %v197 = vadd.f32 %v43, %v187
  %198 = vst.msk [vmem:[#allocation2] sm:$0xff] %vm60, %v190
  %199 = vst.msk [vmem:[#allocation2 + $0x8] sm:$0xff] %vm60, %v191
  %200 = vst.msk [vmem:[#allocation2 + $0x10] sm:$0xff] %vm60, %v192
  %201 = vst.msk [vmem:[#allocation2 + $0x18] sm:$0xff] %vm60, %v193
  %202 = vst.msk [vmem:[#allocation2 + $0x20] sm:$0xff] %vm60, %v194
  %203 = vst.msk [vmem:[#allocation2 + $0x28] sm:$0xff] %vm60, %v195
  %204 = vst.msk [vmem:[#allocation2 + $0x30] sm:$0xff] %vm60, %v196
  %205 = vst.msk [vmem:[#allocation2 + $0x38] sm:$0xff] %vm60, %v197
  // Predicated region
  $region30: #{run_pallas.31} parent=0 // pred_check
    %p206 = pneg %p23
  $region31: #{run_pallas.31} parent=0 // pred_check_branch
    %208 = sbr.rel (%p206) target = $region33
  $region32: #{run_pallas.31} parent=0 // pred_region
    %v209 = vld [vmem:[#allocation2] sm:$0xff]
    %v210 = vld [vmem:[#allocation2 + $0x8] sm:$0xff]
    %v211 = vld [vmem:[#allocation2 + $0x10] sm:$0xff]
    %v212 = vld [vmem:[#allocation2 + $0x18] sm:$0xff]
    %v213 = vld [vmem:[#allocation2 + $0x20] sm:$0xff]
    %v214 = vld [vmem:[#allocation2 + $0x28] sm:$0xff]
    %v215 = vld [vmem:[#allocation2 + $0x30] sm:$0xff]
    %v216 = vld [vmem:[#allocation2 + $0x38] sm:$0xff]
    %v217 = vld [vmem:[%s2] sm:$0x1]
    %v219 = vlaneseq
    %v220 = vshrl.u32 %v219, 7
    %v221 = vsub.s32 0, %v220
    %v222 = vrot.slane %v217, %v221
    %v224 = vadd.f32 %v209, %v222
    %v225 = vadd.f32 %v210, %v222
    %v226 = vadd.f32 %v211, %v222
    %v227 = vadd.f32 %v212, %v222
    %v228 = vadd.f32 %v213, %v222
    %v229 = vadd.f32 %v214, %v222
    %v230 = vadd.f32 %v215, %v222
    %v231 = vadd.f32 %v216, %v222
    %v232 = vld [vmem:[%s3] sm:$0xff]
    %v233 = vld [vmem:[%s3 + $0x8] sm:$0xff]
    %v234 = vld [vmem:[%s3 + $0x10] sm:$0xff]
    %v235 = vld [vmem:[%s3 + $0x18] sm:$0xff]
    %v236 = vld [vmem:[%s3 + $0x20] sm:$0xff]
    %v237 = vld [vmem:[%s3 + $0x28] sm:$0xff]
    %v238 = vld [vmem:[%s3 + $0x30] sm:$0xff]
    %v239 = vld [vmem:[%s3 + $0x38] sm:$0xff]
    %v240 = vadd.f32 %v224, %v232
    %v241 = vadd.f32 %v225, %v233
    %v242 = vadd.f32 %v226, %v234
    %v243 = vadd.f32 %v227, %v235
    %v244 = vadd.f32 %v228, %v236
    %v245 = vadd.f32 %v229, %v237
    %v246 = vadd.f32 %v230, %v238
    %v247 = vadd.f32 %v231, %v239
    %v248 = vsel %vm60, %v240, 0.0
    %249 = vadd.xlane.f32.xlu0 %v248
    %v250 = vpop.xlane.xlu0 %249
    %v251 = vsel %vm60, %v241, 0.0
    %252 = vadd.xlane.f32.xlu0 %v251
    %v253 = vpop.xlane.xlu0 %252
    %v254 = vsel %vm60, %v242, 0.0
    %255 = vadd.xlane.f32.xlu0 %v254
    %v256 = vpop.xlane.xlu0 %255
    %v257 = vsel %vm60, %v243, 0.0
    %258 = vadd.xlane.f32.xlu0 %v257
    %v259 = vpop.xlane.xlu0 %258
    %v260 = vsel %vm60, %v244, 0.0
    %261 = vadd.xlane.f32.xlu0 %v260
    %v262 = vpop.xlane.xlu0 %261
    %v263 = vsel %vm60, %v245, 0.0
    %264 = vadd.xlane.f32.xlu0 %v263
    %v265 = vpop.xlane.xlu0 %264
    %v266 = vsel %vm60, %v246, 0.0
    %267 = vadd.xlane.f32.xlu0 %v266
    %v268 = vpop.xlane.xlu0 %267
    %v269 = vsel %vm60, %v247, 0.0
    %270 = vadd.xlane.f32.xlu0 %v269
    %v271 = vpop.xlane.xlu0 %270
    %v272 = vrcp.pop 64.0
    %v273 = vmul.f32 %v250, %v272
    %v274 = vmul.f32 %v253, %v272
    %v275 = vmul.f32 %v256, %v272
    %v276 = vmul.f32 %v259, %v272
    %v277 = vmul.f32 %v262, %v272
    %v278 = vmul.f32 %v265, %v272
    %v279 = vmul.f32 %v268, %v272
    %v280 = vmul.f32 %v271, %v272
    %v281 = vsub.f32 %v240, %v273
    %v282 = vsub.f32 %v241, %v274
    %v283 = vsub.f32 %v242, %v275
    %v284 = vsub.f32 %v243, %v276
    %v285 = vsub.f32 %v244, %v277
    %v286 = vsub.f32 %v245, %v278
    %v287 = vsub.f32 %v246, %v279
    %v288 = vsub.f32 %v247, %v280
    %v289 = vmul.f32 %v281, %v281
    %v290 = vmul.f32 %v282, %v282
    %v291 = vmul.f32 %v283, %v283
    %v292 = vmul.f32 %v284, %v284
    %v293 = vmul.f32 %v285, %v285
    %v294 = vmul.f32 %v286, %v286
    %v295 = vmul.f32 %v287, %v287
    %v296 = vmul.f32 %v288, %v288
    %v297 = vsel %vm60, %v289, 0.0
    %298 = vadd.xlane.f32.xlu0 %v297
    %v299 = vpop.xlane.xlu0 %298
    %v300 = vsel %vm60, %v290, 0.0
    %301 = vadd.xlane.f32.xlu0 %v300
    %v302 = vpop.xlane.xlu0 %301
    %v303 = vsel %vm60, %v291, 0.0
    %304 = vadd.xlane.f32.xlu0 %v303
    %v305 = vpop.xlane.xlu0 %304
    %v306 = vsel %vm60, %v292, 0.0
    %307 = vadd.xlane.f32.xlu0 %v306
    %v308 = vpop.xlane.xlu0 %307
    %v309 = vsel %vm60, %v293, 0.0
    %310 = vadd.xlane.f32.xlu0 %v309
    %v311 = vpop.xlane.xlu0 %310
    %v312 = vsel %vm60, %v294, 0.0
    %313 = vadd.xlane.f32.xlu0 %v312
    %v314 = vpop.xlane.xlu0 %313
    %v315 = vsel %vm60, %v295, 0.0
    %316 = vadd.xlane.f32.xlu0 %v315
    %v317 = vpop.xlane.xlu0 %316
    %v318 = vsel %vm60, %v296, 0.0
    %319 = vadd.xlane.f32.xlu0 %v318
    %v320 = vpop.xlane.xlu0 %319
    %v321 = vmul.f32 %v299, %v272
    %v322 = vmul.f32 %v302, %v272
    %v323 = vmul.f32 %v305, %v272
    %v324 = vmul.f32 %v308, %v272
    %v325 = vmul.f32 %v311, %v272
    %v326 = vmul.f32 %v314, %v272
    %v327 = vmul.f32 %v317, %v272
    %v328 = vmul.f32 %v320, %v272
    %v329 = vadd.f32 %v321, 1e-06
    %v330 = vadd.f32 %v322, 1e-06
    %v331 = vadd.f32 %v323, 1e-06
    %v332 = vadd.f32 %v324, 1e-06
    %v333 = vadd.f32 %v325, 1e-06
    %v334 = vadd.f32 %v326, 1e-06
    %v335 = vadd.f32 %v327, 1e-06
    %v336 = vadd.f32 %v328, 1e-06
    %v337 = vrsqrt.pop %v329
    %v338 = vrsqrt.pop %v330
    %v339 = vrsqrt.pop %v331
    %v340 = vrsqrt.pop %v332
    %v341 = vrsqrt.pop %v333
    %v342 = vrsqrt.pop %v334
    %v343 = vrsqrt.pop %v335
    %v344 = vrsqrt.pop %v336
    %v345 = vmul.f32 %v281, %v337
    %v346 = vmul.f32 %v282, %v338
    %v347 = vmul.f32 %v283, %v339
    %v348 = vmul.f32 %v284, %v340
    %v349 = vmul.f32 %v285, %v341
    %v350 = vmul.f32 %v286, %v342
    %v351 = vmul.f32 %v287, %v343
    %v352 = vmul.f32 %v288, %v344
    %v353 = vld [vmem:[%s4] sm:$0x1]
    %v355 = vlaneseq
    %v356 = vshrl.u32 %v355, 7
    %v357 = vsub.s32 0, %v356
    %v358 = vrot.slane %v353, %v357
    %v360 = vmul.f32 %v345, %v358
    %v361 = vmul.f32 %v346, %v358
    %v362 = vmul.f32 %v347, %v358
    %v363 = vmul.f32 %v348, %v358
    %v364 = vmul.f32 %v349, %v358
    %v365 = vmul.f32 %v350, %v358
    %v366 = vmul.f32 %v351, %v358
    %v367 = vmul.f32 %v352, %v358
    %v368 = vld [vmem:[%s5] sm:$0x1]
    %v370 = vlaneseq
    %v371 = vshrl.u32 %v370, 7
    %v372 = vsub.s32 0, %v371
    %v373 = vrot.slane %v368, %v372
    %v375 = vadd.f32 %v360, %v373
    %v376 = vadd.f32 %v361, %v373
    %v377 = vadd.f32 %v362, %v373
    %v378 = vadd.f32 %v363, %v373
    %v379 = vadd.f32 %v364, %v373
    %v380 = vadd.f32 %v365, %v373
    %v381 = vadd.f32 %v366, %v373
    %v382 = vadd.f32 %v367, %v373
    %383 = vst.msk [vmem:[%s6] sm:$0xff] %vm60, %v375
    %384 = vst.msk [vmem:[%s6 + $0x8] sm:$0xff] %vm60, %v376
    %385 = vst.msk [vmem:[%s6 + $0x10] sm:$0xff] %vm60, %v377
    %386 = vst.msk [vmem:[%s6 + $0x18] sm:$0xff] %vm60, %v378
    %387 = vst.msk [vmem:[%s6 + $0x20] sm:$0xff] %vm60, %v379
    %388 = vst.msk [vmem:[%s6 + $0x28] sm:$0xff] %vm60, %v380
    %389 = vst.msk [vmem:[%s6 + $0x30] sm:$0xff] %vm60, %v381
    %390 = vst.msk [vmem:[%s6 + $0x38] sm:$0xff] %vm60, %v382
  $region33: #{run_pallas.31} parent=0 // pred_fallthru
    _
  // Predicated region
  $region34: #{run_pallas.31} parent=0 // pred_check
    _
  $region35: #{run_pallas.31} parent=0 // pred_check_branch
    %392 = sbr.rel (0) target = $region37
  $region36: #{run_pallas.31} parent=0 // pred_region
    _
  $region37: #{run_pallas.31} parent=0 // pred_fallthru
    _
  // Predicated region
  $region38: #{run_pallas.31} parent=0 // pred_check
    _
  $region39: #{run_pallas.31} parent=0 // pred_check_branch
    %394 = sbr.rel (0) target = $region41
  $region40: #{run_pallas.31} parent=0 // pred_region
    _
  $region41: #{run_pallas.31} parent=0 // pred_fallthru
    _

// kernel: run_pallas.42
$region0: #{run_pallas.42}
  #allocation0 [shape = 'u32[]', space=smem, size = 0x4, offset = 0x4, fixed_abs, tag = 'smem constant byte address 0x4 - core index']
  #allocation1 [shape = 'u32[144,128]{1,0:T(1,128)}', space=vmem, size = 0x12000, scoped, tag = 'internal scratch']
  #allocation2 [shape = 'f32[64,128]{1,0:T(8,128)}', space=vmem, size = 0x8000, scoped, tag = 'scratch operand']
  %s0 = inlined_call_operand.vmem [shape: f32[64,64], index: 0, kind: input, shape index: {}]
  %s1 = inlined_call_operand.vmem [shape: f32[64,128], index: 1, kind: input, shape index: {}]
  %s2 = inlined_call_operand.vmem [shape: f32[1,128], index: 2, kind: input, shape index: {}]
  %s3 = inlined_call_operand.vmem [shape: f32[64,128], index: 3, kind: output, shape index: {}]
  %s4 = sld [smem:[#allocation0]]
  $region30: #{run_pallas.42} parent=0
    _
  %s6 = ssub.s32 1, %s4
  %s7 = scalar_select 0, %s6, %s4
  // Predicated region
  $region2: #{run_pallas.42} parent=0 // pred_check
    _
  $region3: #{run_pallas.42} parent=0 // pred_check_branch
    %9 = sbr.rel (0) target = $region5
  $region4: #{run_pallas.42} parent=0 // pred_region
    _
  $region5: #{run_pallas.42} parent=0 // pred_fallthru
    _
  // Predicated region
  $region6: #{run_pallas.42} parent=0 // pred_check
    _
  $region7: #{run_pallas.42} parent=0 // pred_check_branch
    %11 = sbr.rel (0) target = $region9
  $region8: #{run_pallas.42} parent=0 // pred_region
    _
  $region9: #{run_pallas.42} parent=0 // pred_fallthru
    _
  // Predicated region
  $region10: #{run_pallas.42} parent=0 // pred_check
    _
  $region11: #{run_pallas.42} parent=0 // pred_check_branch
    %13 = sbr.rel (0) target = $region13
  $region12: #{run_pallas.42} parent=0 // pred_region
    _
  $region13: #{run_pallas.42} parent=0 // pred_fallthru
    _
  %p14 = scmp.eq.s32.totalorder 0, 0
  // Predicated region
  $region14: #{run_pallas.42} parent=0 // pred_check
    %p15 = pneg %p14
  $region15: #{run_pallas.42} parent=0 // pred_check_branch
    %17 = sbr.rel (%p15) target = $region17
  $region16: #{run_pallas.42} parent=0 // pred_region
    %18 = vst [vmem:[#allocation2] sm:$0xff] 0.0
    %19 = vst [vmem:[#allocation2 + $0x8] sm:$0xff] 0.0
    %20 = vst [vmem:[#allocation2 + $0x10] sm:$0xff] 0.0
    %21 = vst [vmem:[#allocation2 + $0x18] sm:$0xff] 0.0
    %22 = vst [vmem:[#allocation2 + $0x20] sm:$0xff] 0.0
    %23 = vst [vmem:[#allocation2 + $0x28] sm:$0xff] 0.0
    %24 = vst [vmem:[#allocation2 + $0x30] sm:$0xff] 0.0
    %25 = vst [vmem:[#allocation2 + $0x38] sm:$0xff] 0.0
  $region17: #{run_pallas.42} parent=0 // pred_fallthru
    _
  %v26 = vld [vmem:[#allocation2] sm:$0xff]
  %v27 = vld [vmem:[#allocation2 + $0x8] sm:$0xff]
  %v28 = vld [vmem:[#allocation2 + $0x10] sm:$0xff]
  %v29 = vld [vmem:[#allocation2 + $0x18] sm:$0xff]
  %v30 = vld [vmem:[#allocation2 + $0x20] sm:$0xff]
  %v31 = vld [vmem:[#allocation2 + $0x28] sm:$0xff]
  %v32 = vld [vmem:[#allocation2 + $0x30] sm:$0xff]
  %v33 = vld [vmem:[#allocation2 + $0x38] sm:$0xff]
  %v34 = vld [vmem:[%s0] sm:$0xff]
  %v35 = vld [vmem:[%s0 + $0x8] sm:$0xff]
  %v36 = vld [vmem:[%s0 + $0x10] sm:$0xff]
  %v37 = vld [vmem:[%s0 + $0x18] sm:$0xff]
  %v38 = vld [vmem:[%s0 + $0x20] sm:$0xff]
  %v39 = vld [vmem:[%s0 + $0x28] sm:$0xff]
  %v40 = vld [vmem:[%s0 + $0x30] sm:$0xff]
  %v41 = vld [vmem:[%s0 + $0x38] sm:$0xff]
  %v42 = vld [vmem:[%s1] sm:$0xff]
  %v43 = vld [vmem:[%s1 + $0x8] sm:$0xff]
  %v44 = vld [vmem:[%s1 + $0x10] sm:$0xff]
  %v45 = vld [vmem:[%s1 + $0x18] sm:$0xff]
  %v46 = vld [vmem:[%s1 + $0x20] sm:$0xff]
  %v47 = vld [vmem:[%s1 + $0x28] sm:$0xff]
  %v48 = vld [vmem:[%s1 + $0x30] sm:$0xff]
  %v49 = vld [vmem:[%s1 + $0x38] sm:$0xff]
  %vm50 = vcmask 523264
  %v52 = vsel %vm50, %v34, 0
  %v55 = vsel %vm50, %v35, 0
  %v58 = vsel %vm50, %v36, 0
  %v61 = vsel %vm50, %v37, 0
  %v64 = vsel %vm50, %v38, 0
  %v67 = vsel %vm50, %v39, 0
  %v70 = vsel %vm50, %v40, 0
  %v73 = vsel %vm50, %v41, 0
  %75 = vmatprep.subr.mxu0 0.0
  %76 = vmatpush1.msra.mxu0 %v42
  %77 = vmatprep.subr.mxu0 0.0
  %78 = vmatpush1.msra.mxu0 %v43
  %79 = vmatprep.subr.mxu0 0.0
  %80 = vmatpush1.msra.mxu0 %v44
  %81 = vmatprep.subr.mxu0 0.0
  %82 = vmatpush1.msra.mxu0 %v45
  %83 = vmatprep.subr.mxu0 0.0
  %84 = vmatpush1.msra.mxu0 %v46
  %85 = vmatprep.subr.mxu0 0.0
  %86 = vmatpush1.msra.mxu0 %v47
  %87 = vmatprep.subr.mxu0 0.0
  %88 = vmatpush1.msra.mxu0 %v48
  %89 = vmatprep.subr.mxu0 0.0
  %90 = vmatpush1.msra.mxu0 %v49
  %91 = vmatprep.subr.mxu0 0.0
  %92 = vmatpush1.msra.mxu0 0.0
  %93 = vmatprep.subr.mxu0 0.0
  %94 = vmatpush1.msra.mxu0 0.0
  %95 = vmatprep.subr.mxu0 0.0
  %96 = vmatpush1.msra.mxu0 0.0
  %97 = vmatprep.subr.mxu0 0.0
  %98 = vmatpush1.msra.mxu0 0.0
  %99 = vmatprep.subr.mxu0 0.0
  %100 = vmatpush1.msra.mxu0 0.0
  %101 = vmatprep.subr.mxu0 0.0
  %102 = vmatpush1.msra.mxu0 0.0
  %103 = vmatprep.subr.mxu0 0.0
  %104 = vmatpush1.msra.mxu0 0.0
  %105 = vmatprep.subr.mxu0 0.0
  %106 = vmatpush1.msra.mxu0 0.0
  %107 = vmatprep.subr.mxu0 0.0
  %108 = vmatpush1.msra.mxu0 0.0
  %109 = vmatprep.subr.mxu0 0.0
  %110 = vmatpush1.msra.mxu0 0.0
  %111 = vmatprep.subr.mxu0 0.0
  %112 = vmatpush1.msra.mxu0 0.0
  %113 = vmatprep.subr.mxu0 0.0
  %114 = vmatpush1.msra.mxu0 0.0
  %115 = vmatprep.subr.mxu0 0.0
  %116 = vmatpush1.msra.mxu0 0.0
  %117 = vmatprep.subr.mxu0 0.0
  %118 = vmatpush1.msra.mxu0 0.0
  %119 = vmatprep.subr.mxu0 0.0
  %120 = vmatpush1.msra.mxu0 0.0
  %121 = vmatprep.subr.mxu0 0.0
  %122 = vmatpush1.msra.mxu0 0.0
  %123 = vmatprep.subr.mxu0 0.0
  %124 = vmatpush1.msra.mxu0 0.0
  %125 = vmatprep.subr.mxu0 0.0
  %126 = vmatpush1.msra.mxu0 0.0
  %127 = vmatprep.subr.mxu0 0.0
  %128 = vmatpush1.msra.mxu0 0.0
  %129 = vmatprep.subr.mxu0 0.0
  %130 = vmatpush1.msra.mxu0 0.0
  %131 = vmatprep.subr.mxu0 0.0
  %132 = vmatpush1.msra.mxu0 0.0
  %133 = vmatprep.subr.mxu0 0.0
  %134 = vmatpush1.msra.mxu0 0.0
  %135 = vmatprep.subr.mxu0 0.0
  %136 = vmatpush1.msra.mxu0 0.0
  %137 = vmatprep.subr.mxu0 0.0
  %138 = vmatpush1.msra.mxu0 0.0
  %139 = vmatprep.mubr.f32.mxu0 0.0
  %140 = vmatmul.mubr.f32.gmra.mrb[0].mxu0 %v52
  %v141 = vpop.f32.mrb[0].mxu0
  %v142 = vadd.f32 0.0, %v141
  %v143 = vpop.f32.mrb[0].mxu0
  %144 = vmatprep.mubr.f32.mxu0 0.0
  %145 = vmatmul.mubr.f32.gmra.mrb[0].mxu0 %v55
  %v146 = vpop.f32.mrb[0].mxu0
  %v147 = vadd.f32 0.0, %v146
  %v148 = vpop.f32.mrb[0].mxu0
  %149 = vmatprep.mubr.f32.mxu0 0.0
  %150 = vmatmul.mubr.f32.gmra.mrb[0].mxu0 %v58
  %v151 = vpop.f32.mrb[0].mxu0
  %v152 = vadd.f32 0.0, %v151
  %v153 = vpop.f32.mrb[0].mxu0
  %154 = vmatprep.mubr.f32.mxu0 0.0
  %155 = vmatmul.mubr.f32.gmra.mrb[0].mxu0 %v61
  %v156 = vpop.f32.mrb[0].mxu0
  %v157 = vadd.f32 0.0, %v156
  %v158 = vpop.f32.mrb[0].mxu0
  %159 = vmatprep.mubr.f32.mxu0 0.0
  %160 = vmatmul.mubr.f32.gmra.mrb[0].mxu0 %v64
  %v161 = vpop.f32.mrb[0].mxu0
  %v162 = vadd.f32 0.0, %v161
  %v163 = vpop.f32.mrb[0].mxu0
  %164 = vmatprep.mubr.f32.mxu0 0.0
  %165 = vmatmul.mubr.f32.gmra.mrb[0].mxu0 %v67
  %v166 = vpop.f32.mrb[0].mxu0
  %v167 = vadd.f32 0.0, %v166
  %v168 = vpop.f32.mrb[0].mxu0
  %169 = vmatprep.mubr.f32.mxu0 0.0
  %170 = vmatmul.mubr.f32.gmra.mrb[0].mxu0 %v70
  %v171 = vpop.f32.mrb[0].mxu0
  %v172 = vadd.f32 0.0, %v171
  %v173 = vpop.f32.mrb[0].mxu0
  %174 = vmatprep.mubr.f32.mxu0 0.0
  %175 = vmatmul.mubr.f32.gmra.mrb[0].mxu0 %v73
  %v176 = vpop.f32.mrb[0].mxu0
  %v177 = vadd.f32 0.0, %v176
  %v178 = vpop.f32.mrb[0].mxu0
  %179 = vdwg.mxu0
  %v180 = vadd.f32 %v26, %v142
  %v181 = vadd.f32 %v27, %v147
  %v182 = vadd.f32 %v28, %v152
  %v183 = vadd.f32 %v29, %v157
  %v184 = vadd.f32 %v30, %v162
  %v185 = vadd.f32 %v31, %v167
  %v186 = vadd.f32 %v32, %v172
  %v187 = vadd.f32 %v33, %v177
  %188 = vst [vmem:[#allocation2] sm:$0xff] %v180
  %189 = vst [vmem:[#allocation2 + $0x8] sm:$0xff] %v181
  %190 = vst [vmem:[#allocation2 + $0x10] sm:$0xff] %v182
  %191 = vst [vmem:[#allocation2 + $0x18] sm:$0xff] %v183
  %192 = vst [vmem:[#allocation2 + $0x20] sm:$0xff] %v184
  %193 = vst [vmem:[#allocation2 + $0x28] sm:$0xff] %v185
  %194 = vst [vmem:[#allocation2 + $0x30] sm:$0xff] %v186
  %195 = vst [vmem:[#allocation2 + $0x38] sm:$0xff] %v187
  // Predicated region
  $region18: #{run_pallas.42} parent=0 // pred_check
    %p196 = pneg %p14
  $region19: #{run_pallas.42} parent=0 // pred_check_branch
    %198 = sbr.rel (%p196) target = $region21
  $region20: #{run_pallas.42} parent=0 // pred_region
    %v199 = vld [vmem:[#allocation2] sm:$0xff]
    %v200 = vld [vmem:[#allocation2 + $0x8] sm:$0xff]
    %v201 = vld [vmem:[#allocation2 + $0x10] sm:$0xff]
    %v202 = vld [vmem:[#allocation2 + $0x18] sm:$0xff]
    %v203 = vld [vmem:[#allocation2 + $0x20] sm:$0xff]
    %v204 = vld [vmem:[#allocation2 + $0x28] sm:$0xff]
    %v205 = vld [vmem:[#allocation2 + $0x30] sm:$0xff]
    %v206 = vld [vmem:[#allocation2 + $0x38] sm:$0xff]
    %v207 = vld [vmem:[%s2] sm:$0x1]
    %v209 = vlaneseq
    %v210 = vshrl.u32 %v209, 7
    %v211 = vsub.s32 0, %v210
    %v212 = vrot.slane %v207, %v211
    %v214 = vadd.f32 %v199, %v212
    %v215 = vadd.f32 %v200, %v212
    %v216 = vadd.f32 %v201, %v212
    %v217 = vadd.f32 %v202, %v212
    %v218 = vadd.f32 %v203, %v212
    %v219 = vadd.f32 %v204, %v212
    %v220 = vadd.f32 %v205, %v212
    %v221 = vadd.f32 %v206, %v212
    %222 = vst [vmem:[%s3] sm:$0xff] %v214
    %223 = vst [vmem:[%s3 + $0x8] sm:$0xff] %v215
    %224 = vst [vmem:[%s3 + $0x10] sm:$0xff] %v216
    %225 = vst [vmem:[%s3 + $0x18] sm:$0xff] %v217
    %226 = vst [vmem:[%s3 + $0x20] sm:$0xff] %v218
    %227 = vst [vmem:[%s3 + $0x28] sm:$0xff] %v219
    %228 = vst [vmem:[%s3 + $0x30] sm:$0xff] %v220
    %229 = vst [vmem:[%s3 + $0x38] sm:$0xff] %v221
  $region21: #{run_pallas.42} parent=0 // pred_fallthru
    _
  // Predicated region
  $region22: #{run_pallas.42} parent=0 // pred_check
    _
  $region23: #{run_pallas.42} parent=0 // pred_check_branch
    %231 = sbr.rel (0) target = $region25
  $region24: #{run_pallas.42} parent=0 // pred_region
    _
  $region25: #{run_pallas.42} parent=0 // pred_fallthru
    _
  // Predicated region
  $region26: #{run_pallas.42} parent=0 // pred_check
    _
  $region27: #{run_pallas.42} parent=0 // pred_check_branch
    %233 = sbr.rel (0) target = $region29
  $region28: #{run_pallas.42} parent=0 // pred_region
    _
  $region29: #{run_pallas.42} parent=0 // pred_fallthru
    _

// kernel: run_pallas.33
$region0: #{run_pallas.33}
  #allocation0 [shape = 'u32[]', space=smem, size = 0x4, offset = 0x4, fixed_abs, tag = 'smem constant byte address 0x4 - core index']
  #allocation1 [shape = 'u32[144,128]{1,0:T(1,128)}', space=vmem, size = 0x12000, scoped, tag = 'internal scratch']
  #allocation2 [shape = 'f32[64,64]{1,0:T(8,128)}', space=vmem, size = 0x8000, scoped, tag = 'scratch operand']
  %s0 = inlined_call_operand.vmem [shape: f32[64,128], index: 0, kind: input, shape index: {}]
  %s1 = inlined_call_operand.vmem [shape: f32[128,64], index: 1, kind: input, shape index: {}]
  %s2 = inlined_call_operand.vmem [shape: f32[1,64], index: 2, kind: input, shape index: {}]
  %s3 = inlined_call_operand.vmem [shape: f32[64,64], index: 3, kind: input, shape index: {}]
  %s4 = inlined_call_operand.vmem [shape: f32[1,64], index: 4, kind: input, shape index: {}]
  %s5 = inlined_call_operand.vmem [shape: f32[1,64], index: 5, kind: input, shape index: {}]
  %s6 = inlined_call_operand.vmem [shape: f32[64,64], index: 6, kind: output, shape index: {}]
  %s7 = sld [smem:[#allocation0]]
  $region42: #{run_pallas.33} parent=0
    _
  %s9 = ssub.s32 1, %s7
  %s10 = scalar_select 0, %s9, %s7
  // Predicated region
  $region2: #{run_pallas.33} parent=0 // pred_check
    _
  $region3: #{run_pallas.33} parent=0 // pred_check_branch
    %12 = sbr.rel (0) target = $region5
  $region4: #{run_pallas.33} parent=0 // pred_region
    _
  $region5: #{run_pallas.33} parent=0 // pred_fallthru
    _
  // Predicated region
  $region6: #{run_pallas.33} parent=0 // pred_check
    _
  $region7: #{run_pallas.33} parent=0 // pred_check_branch
    %14 = sbr.rel (0) target = $region9
  $region8: #{run_pallas.33} parent=0 // pred_region
    _
  $region9: #{run_pallas.33} parent=0 // pred_fallthru
    _
  // Predicated region
  $region10: #{run_pallas.33} parent=0 // pred_check
    _
  $region11: #{run_pallas.33} parent=0 // pred_check_branch
    %16 = sbr.rel (0) target = $region13
  $region12: #{run_pallas.33} parent=0 // pred_region
    _
  $region13: #{run_pallas.33} parent=0 // pred_fallthru
    _
  // Predicated region
  $region14: #{run_pallas.33} parent=0 // pred_check
    _
  $region15: #{run_pallas.33} parent=0 // pred_check_branch
    %18 = sbr.rel (0) target = $region17
  $region16: #{run_pallas.33} parent=0 // pred_region
    _
  $region17: #{run_pallas.33} parent=0 // pred_fallthru
    _
  // Predicated region
  $region18: #{run_pallas.33} parent=0 // pred_check
    _
  $region19: #{run_pallas.33} parent=0 // pred_check_branch
    %20 = sbr.rel (0) target = $region21
  $region20: #{run_pallas.33} parent=0 // pred_region
    _
  $region21: #{run_pallas.33} parent=0 // pred_fallthru
    _
  // Predicated region
  $region22: #{run_pallas.33} parent=0 // pred_check
    _
  $region23: #{run_pallas.33} parent=0 // pred_check_branch
    %22 = sbr.rel (0) target = $region25
  $region24: #{run_pallas.33} parent=0 // pred_region
    _
  $region25: #{run_pallas.33} parent=0 // pred_fallthru
    _
  %p23 = scmp.eq.s32.totalorder 0, 0
  // Predicated region
  $region26: #{run_pallas.33} parent=0 // pred_check
    %p24 = pneg %p23
  $region27: #{run_pallas.33} parent=0 // pred_check_branch
    %26 = sbr.rel (%p24) target = $region29
  $region28: #{run_pallas.33} parent=0 // pred_region
    %vm27 = vcmask 523264
    %28 = vst.msk [vmem:[#allocation2] sm:$0xff] %vm27, 0.0
    %29 = vst.msk [vmem:[#allocation2 + $0x8] sm:$0xff] %vm27, 0.0
    %30 = vst.msk [vmem:[#allocation2 + $0x10] sm:$0xff] %vm27, 0.0
    %31 = vst.msk [vmem:[#allocation2 + $0x18] sm:$0xff] %vm27, 0.0
    %32 = vst.msk [vmem:[#allocation2 + $0x20] sm:$0xff] %vm27, 0.0
    %33 = vst.msk [vmem:[#allocation2 + $0x28] sm:$0xff] %vm27, 0.0
    %34 = vst.msk [vmem:[#allocation2 + $0x30] sm:$0xff] %vm27, 0.0
    %35 = vst.msk [vmem:[#allocation2 + $0x38] sm:$0xff] %vm27, 0.0
  $region29: #{run_pallas.33} parent=0 // pred_fallthru
    _
  %v36 = vld [vmem:[#allocation2] sm:$0xff]
  %v37 = vld [vmem:[#allocation2 + $0x8] sm:$0xff]
  %v38 = vld [vmem:[#allocation2 + $0x10] sm:$0xff]
  %v39 = vld [vmem:[#allocation2 + $0x18] sm:$0xff]
  %v40 = vld [vmem:[#allocation2 + $0x20] sm:$0xff]
  %v41 = vld [vmem:[#allocation2 + $0x28] sm:$0xff]
  %v42 = vld [vmem:[#allocation2 + $0x30] sm:$0xff]
  %v43 = vld [vmem:[#allocation2 + $0x38] sm:$0xff]
  %v44 = vld [vmem:[%s0] sm:$0xff]
  %v45 = vld [vmem:[%s0 + $0x8] sm:$0xff]
  %v46 = vld [vmem:[%s0 + $0x10] sm:$0xff]
  %v47 = vld [vmem:[%s0 + $0x18] sm:$0xff]
  %v48 = vld [vmem:[%s0 + $0x20] sm:$0xff]
  %v49 = vld [vmem:[%s0 + $0x28] sm:$0xff]
  %v50 = vld [vmem:[%s0 + $0x30] sm:$0xff]
  %v51 = vld [vmem:[%s0 + $0x38] sm:$0xff]
  %v52 = vld [vmem:[%s1] sm:$0xff]
  %v53 = vld [vmem:[%s1 + $0x8] sm:$0xff]
  %v54 = vld [vmem:[%s1 + $0x10] sm:$0xff]
  %v55 = vld [vmem:[%s1 + $0x18] sm:$0xff]
  %v56 = vld [vmem:[%s1 + $0x20] sm:$0xff]
  %v57 = vld [vmem:[%s1 + $0x28] sm:$0xff]
  %v58 = vld [vmem:[%s1 + $0x30] sm:$0xff]
  %v59 = vld [vmem:[%s1 + $0x38] sm:$0xff]
  %v60 = vld [vmem:[%s1 + $0x40] sm:$0xff]
  %v61 = vld [vmem:[%s1 + $0x48] sm:$0xff]
  %v62 = vld [vmem:[%s1 + $0x50] sm:$0xff]
  %v63 = vld [vmem:[%s1 + $0x58] sm:$0xff]
  %v64 = vld [vmem:[%s1 + $0x60] sm:$0xff]
  %v65 = vld [vmem:[%s1 + $0x68] sm:$0xff]
  %v66 = vld [vmem:[%s1 + $0x70] sm:$0xff]
  %v67 = vld [vmem:[%s1 + $0x78] sm:$0xff]
  %68 = vmatprep.subr.mxu0 0.0
  %69 = vmatpush1.msra.mxu0 %v52
  %70 = vmatprep.subr.mxu0 0.0
  %71 = vmatpush1.msra.mxu0 %v53
  %72 = vmatprep.subr.mxu0 0.0
  %73 = vmatpush1.msra.mxu0 %v54
  %74 = vmatprep.subr.mxu0 0.0
  %75 = vmatpush1.msra.mxu0 %v55
  %76 = vmatprep.subr.mxu0 0.0
  %77 = vmatpush1.msra.mxu0 %v56
  %78 = vmatprep.subr.mxu0 0.0
  %79 = vmatpush1.msra.mxu0 %v57
  %80 = vmatprep.subr.mxu0 0.0
  %81 = vmatpush1.msra.mxu0 %v58
  %82 = vmatprep.subr.mxu0 0.0
  %83 = vmatpush1.msra.mxu0 %v59
  %84 = vmatprep.subr.mxu0 0.0
  %85 = vmatpush1.msra.mxu0 %v60
  %86 = vmatprep.subr.mxu0 0.0
  %87 = vmatpush1.msra.mxu0 %v61
  %88 = vmatprep.subr.mxu0 0.0
  %89 = vmatpush1.msra.mxu0 %v62
  %90 = vmatprep.subr.mxu0 0.0
  %91 = vmatpush1.msra.mxu0 %v63
  %92 = vmatprep.subr.mxu0 0.0
  %93 = vmatpush1.msra.mxu0 %v64
  %94 = vmatprep.subr.mxu0 0.0
  %95 = vmatpush1.msra.mxu0 %v65
  %96 = vmatprep.subr.mxu0 0.0
  %97 = vmatpush1.msra.mxu0 %v66
  %98 = vmatprep.subr.mxu0 0.0
  %99 = vmatpush1.msra.mxu0 %v67
  %100 = vmatprep.subr.mxu0 0.0
  %101 = vmatpush1.msra.mxu0 0.0
  %102 = vmatprep.subr.mxu0 0.0
  %103 = vmatpush1.msra.mxu0 0.0
  %104 = vmatprep.subr.mxu0 0.0
  %105 = vmatpush1.msra.mxu0 0.0
  %106 = vmatprep.subr.mxu0 0.0
  %107 = vmatpush1.msra.mxu0 0.0
  %108 = vmatprep.subr.mxu0 0.0
  %109 = vmatpush1.msra.mxu0 0.0
  %110 = vmatprep.subr.mxu0 0.0
  %111 = vmatpush1.msra.mxu0 0.0
  %112 = vmatprep.subr.mxu0 0.0
  %113 = vmatpush1.msra.mxu0 0.0
  %114 = vmatprep.subr.mxu0 0.0
  %115 = vmatpush1.msra.mxu0 0.0
  %116 = vmatprep.subr.mxu0 0.0
  %117 = vmatpush1.msra.mxu0 0.0
  %118 = vmatprep.subr.mxu0 0.0
  %119 = vmatpush1.msra.mxu0 0.0
  %120 = vmatprep.subr.mxu0 0.0
  %121 = vmatpush1.msra.mxu0 0.0
  %122 = vmatprep.subr.mxu0 0.0
  %123 = vmatpush1.msra.mxu0 0.0
  %124 = vmatprep.subr.mxu0 0.0
  %125 = vmatpush1.msra.mxu0 0.0
  %126 = vmatprep.subr.mxu0 0.0
  %127 = vmatpush1.msra.mxu0 0.0
  %128 = vmatprep.subr.mxu0 0.0
  %129 = vmatpush1.msra.mxu0 0.0
  %130 = vmatprep.subr.mxu0 0.0
  %131 = vmatpush1.msra.mxu0 0.0
  %132 = vmatprep.mubr.f32.mxu0 0.0
  %133 = vmatmul.mubr.f32.gmra.mrb[0].mxu0 %v44
  %v134 = vpop.f32.mrb[0].mxu0
  %v135 = vadd.f32 0.0, %v134
  %v136 = vpop.f32.mrb[0].mxu0
  %137 = vmatprep.mubr.f32.mxu0 0.0
  %138 = vmatmul.mubr.f32.gmra.mrb[0].mxu0 %v45
  %v139 = vpop.f32.mrb[0].mxu0
  %v140 = vadd.f32 0.0, %v139
  %v141 = vpop.f32.mrb[0].mxu0
  %142 = vmatprep.mubr.f32.mxu0 0.0
  %143 = vmatmul.mubr.f32.gmra.mrb[0].mxu0 %v46
  %v144 = vpop.f32.mrb[0].mxu0
  %v145 = vadd.f32 0.0, %v144
  %v146 = vpop.f32.mrb[0].mxu0
  %147 = vmatprep.mubr.f32.mxu0 0.0
  %148 = vmatmul.mubr.f32.gmra.mrb[0].mxu0 %v47
  %v149 = vpop.f32.mrb[0].mxu0
  %v150 = vadd.f32 0.0, %v149
  %v151 = vpop.f32.mrb[0].mxu0
  %152 = vmatprep.mubr.f32.mxu0 0.0
  %153 = vmatmul.mubr.f32.gmra.mrb[0].mxu0 %v48
  %v154 = vpop.f32.mrb[0].mxu0
  %v155 = vadd.f32 0.0, %v154
  %v156 = vpop.f32.mrb[0].mxu0
  %157 = vmatprep.mubr.f32.mxu0 0.0
  %158 = vmatmul.mubr.f32.gmra.mrb[0].mxu0 %v49
  %v159 = vpop.f32.mrb[0].mxu0
  %v160 = vadd.f32 0.0, %v159
  %v161 = vpop.f32.mrb[0].mxu0
  %162 = vmatprep.mubr.f32.mxu0 0.0
  %163 = vmatmul.mubr.f32.gmra.mrb[0].mxu0 %v50
  %v164 = vpop.f32.mrb[0].mxu0
  %v165 = vadd.f32 0.0, %v164
  %v166 = vpop.f32.mrb[0].mxu0
  %167 = vmatprep.mubr.f32.mxu0 0.0
  %168 = vmatmul.mubr.f32.gmra.mrb[0].mxu0 %v51
  %v169 = vpop.f32.mrb[0].mxu0
  %v170 = vadd.f32 0.0, %v169
  %v171 = vpop.f32.mrb[0].mxu0
  %172 = vdwg.mxu0
  %v173 = vadd.f32 %v36, %v135
  %v174 = vadd.f32 %v37, %v140
  %v175 = vadd.f32 %v38, %v145
  %v176 = vadd.f32 %v39, %v150
  %v177 = vadd.f32 %v40, %v155
  %v178 = vadd.f32 %v41, %v160
  %v179 = vadd.f32 %v42, %v165
  %v180 = vadd.f32 %v43, %v170
  %vm181 = vcmask 523264
  %182 = vst.msk [vmem:[#allocation2] sm:$0xff] %vm181, %v173
  %183 = vst.msk [vmem:[#allocation2 + $0x8] sm:$0xff] %vm181, %v174
  %184 = vst.msk [vmem:[#allocation2 + $0x10] sm:$0xff] %vm181, %v175
  %185 = vst.msk [vmem:[#allocation2 + $0x18] sm:$0xff] %vm181, %v176
  %186 = vst.msk [vmem:[#allocation2 + $0x20] sm:$0xff] %vm181, %v177
  %187 = vst.msk [vmem:[#allocation2 + $0x28] sm:$0xff] %vm181, %v178
  %188 = vst.msk [vmem:[#allocation2 + $0x30] sm:$0xff] %vm181, %v179
  %189 = vst.msk [vmem:[#allocation2 + $0x38] sm:$0xff] %vm181, %v180
  // Predicated region
  $region30: #{run_pallas.33} parent=0 // pred_check
    %p190 = pneg %p23
  $region31: #{run_pallas.33} parent=0 // pred_check_branch
    %192 = sbr.rel (%p190) target = $region33
  $region32: #{run_pallas.33} parent=0 // pred_region
    %v193 = vld [vmem:[#allocation2] sm:$0xff]
    %v194 = vld [vmem:[#allocation2 + $0x8] sm:$0xff]
    %v195 = vld [vmem:[#allocation2 + $0x10] sm:$0xff]
    %v196 = vld [vmem:[#allocation2 + $0x18] sm:$0xff]
    %v197 = vld [vmem:[#allocation2 + $0x20] sm:$0xff]
    %v198 = vld [vmem:[#allocation2 + $0x28] sm:$0xff]
    %v199 = vld [vmem:[#allocation2 + $0x30] sm:$0xff]
    %v200 = vld [vmem:[#allocation2 + $0x38] sm:$0xff]
    %v201 = vld [vmem:[%s2] sm:$0x1]
    %v203 = vlaneseq
    %v204 = vshrl.u32 %v203, 7
    %v205 = vsub.s32 0, %v204
    %v206 = vrot.slane %v201, %v205
    %v208 = vadd.f32 %v193, %v206
    %v209 = vadd.f32 %v194, %v206
    %v210 = vadd.f32 %v195, %v206
    %v211 = vadd.f32 %v196, %v206
    %v212 = vadd.f32 %v197, %v206
    %v213 = vadd.f32 %v198, %v206
    %v214 = vadd.f32 %v199, %v206
    %v215 = vadd.f32 %v200, %v206
    %v216 = vld [vmem:[%s3] sm:$0xff]
    %v217 = vld [vmem:[%s3 + $0x8] sm:$0xff]
    %v218 = vld [vmem:[%s3 + $0x10] sm:$0xff]
    %v219 = vld [vmem:[%s3 + $0x18] sm:$0xff]
    %v220 = vld [vmem:[%s3 + $0x20] sm:$0xff]
    %v221 = vld [vmem:[%s3 + $0x28] sm:$0xff]
    %v222 = vld [vmem:[%s3 + $0x30] sm:$0xff]
    %v223 = vld [vmem:[%s3 + $0x38] sm:$0xff]
    %v224 = vadd.f32 %v208, %v216
    %v225 = vadd.f32 %v209, %v217
    %v226 = vadd.f32 %v210, %v218
    %v227 = vadd.f32 %v211, %v219
    %v228 = vadd.f32 %v212, %v220
    %v229 = vadd.f32 %v213, %v221
    %v230 = vadd.f32 %v214, %v222
    %v231 = vadd.f32 %v215, %v223
    %v232 = vsel %vm181, %v224, 0.0
    %233 = vadd.xlane.f32.xlu0 %v232
    %v234 = vpop.xlane.xlu0 %233
    %v235 = vsel %vm181, %v225, 0.0
    %236 = vadd.xlane.f32.xlu0 %v235
    %v237 = vpop.xlane.xlu0 %236
    %v238 = vsel %vm181, %v226, 0.0
    %239 = vadd.xlane.f32.xlu0 %v238
    %v240 = vpop.xlane.xlu0 %239
    %v241 = vsel %vm181, %v227, 0.0
    %242 = vadd.xlane.f32.xlu0 %v241
    %v243 = vpop.xlane.xlu0 %242
    %v244 = vsel %vm181, %v228, 0.0
    %245 = vadd.xlane.f32.xlu0 %v244
    %v246 = vpop.xlane.xlu0 %245
    %v247 = vsel %vm181, %v229, 0.0
    %248 = vadd.xlane.f32.xlu0 %v247
    %v249 = vpop.xlane.xlu0 %248
    %v250 = vsel %vm181, %v230, 0.0
    %251 = vadd.xlane.f32.xlu0 %v250
    %v252 = vpop.xlane.xlu0 %251
    %v253 = vsel %vm181, %v231, 0.0
    %254 = vadd.xlane.f32.xlu0 %v253
    %v255 = vpop.xlane.xlu0 %254
    %v256 = vrcp.pop 64.0
    %v257 = vmul.f32 %v234, %v256
    %v258 = vmul.f32 %v237, %v256
    %v259 = vmul.f32 %v240, %v256
    %v260 = vmul.f32 %v243, %v256
    %v261 = vmul.f32 %v246, %v256
    %v262 = vmul.f32 %v249, %v256
    %v263 = vmul.f32 %v252, %v256
    %v264 = vmul.f32 %v255, %v256
    %v265 = vsub.f32 %v224, %v257
    %v266 = vsub.f32 %v225, %v258
    %v267 = vsub.f32 %v226, %v259
    %v268 = vsub.f32 %v227, %v260
    %v269 = vsub.f32 %v228, %v261
    %v270 = vsub.f32 %v229, %v262
    %v271 = vsub.f32 %v230, %v263
    %v272 = vsub.f32 %v231, %v264
    %v273 = vmul.f32 %v265, %v265
    %v274 = vmul.f32 %v266, %v266
    %v275 = vmul.f32 %v267, %v267
    %v276 = vmul.f32 %v268, %v268
    %v277 = vmul.f32 %v269, %v269
    %v278 = vmul.f32 %v270, %v270
    %v279 = vmul.f32 %v271, %v271
    %v280 = vmul.f32 %v272, %v272
    %v281 = vsel %vm181, %v273, 0.0
    %282 = vadd.xlane.f32.xlu0 %v281
    %v283 = vpop.xlane.xlu0 %282
    %v284 = vsel %vm181, %v274, 0.0
    %285 = vadd.xlane.f32.xlu0 %v284
    %v286 = vpop.xlane.xlu0 %285
    %v287 = vsel %vm181, %v275, 0.0
    %288 = vadd.xlane.f32.xlu0 %v287
    %v289 = vpop.xlane.xlu0 %288
    %v290 = vsel %vm181, %v276, 0.0
    %291 = vadd.xlane.f32.xlu0 %v290
    %v292 = vpop.xlane.xlu0 %291
    %v293 = vsel %vm181, %v277, 0.0
    %294 = vadd.xlane.f32.xlu0 %v293
    %v295 = vpop.xlane.xlu0 %294
    %v296 = vsel %vm181, %v278, 0.0
    %297 = vadd.xlane.f32.xlu0 %v296
    %v298 = vpop.xlane.xlu0 %297
    %v299 = vsel %vm181, %v279, 0.0
    %300 = vadd.xlane.f32.xlu0 %v299
    %v301 = vpop.xlane.xlu0 %300
    %v302 = vsel %vm181, %v280, 0.0
    %303 = vadd.xlane.f32.xlu0 %v302
    %v304 = vpop.xlane.xlu0 %303
    %v305 = vmul.f32 %v283, %v256
    %v306 = vmul.f32 %v286, %v256
    %v307 = vmul.f32 %v289, %v256
    %v308 = vmul.f32 %v292, %v256
    %v309 = vmul.f32 %v295, %v256
    %v310 = vmul.f32 %v298, %v256
    %v311 = vmul.f32 %v301, %v256
    %v312 = vmul.f32 %v304, %v256
    %v313 = vadd.f32 %v305, 1e-06
    %v314 = vadd.f32 %v306, 1e-06
    %v315 = vadd.f32 %v307, 1e-06
    %v316 = vadd.f32 %v308, 1e-06
    %v317 = vadd.f32 %v309, 1e-06
    %v318 = vadd.f32 %v310, 1e-06
    %v319 = vadd.f32 %v311, 1e-06
    %v320 = vadd.f32 %v312, 1e-06
    %v321 = vrsqrt.pop %v313
    %v322 = vrsqrt.pop %v314
    %v323 = vrsqrt.pop %v315
    %v324 = vrsqrt.pop %v316
    %v325 = vrsqrt.pop %v317
    %v326 = vrsqrt.pop %v318
    %v327 = vrsqrt.pop %v319
    %v328 = vrsqrt.pop %v320
    %v329 = vmul.f32 %v265, %v321
    %v330 = vmul.f32 %v266, %v322
    %v331 = vmul.f32 %v267, %v323
    %v332 = vmul.f32 %v268, %v324
    %v333 = vmul.f32 %v269, %v325
    %v334 = vmul.f32 %v270, %v326
    %v335 = vmul.f32 %v271, %v327
    %v336 = vmul.f32 %v272, %v328
    %v337 = vld [vmem:[%s4] sm:$0x1]
    %v339 = vlaneseq
    %v340 = vshrl.u32 %v339, 7
    %v341 = vsub.s32 0, %v340
    %v342 = vrot.slane %v337, %v341
    %v344 = vmul.f32 %v329, %v342
    %v345 = vmul.f32 %v330, %v342
    %v346 = vmul.f32 %v331, %v342
    %v347 = vmul.f32 %v332, %v342
    %v348 = vmul.f32 %v333, %v342
    %v349 = vmul.f32 %v334, %v342
    %v350 = vmul.f32 %v335, %v342
    %v351 = vmul.f32 %v336, %v342
    %v352 = vld [vmem:[%s5] sm:$0x1]
    %v354 = vlaneseq
    %v355 = vshrl.u32 %v354, 7
    %v356 = vsub.s32 0, %v355
    %v357 = vrot.slane %v352, %v356
    %v359 = vadd.f32 %v344, %v357
    %v360 = vadd.f32 %v345, %v357
    %v361 = vadd.f32 %v346, %v357
    %v362 = vadd.f32 %v347, %v357
    %v363 = vadd.f32 %v348, %v357
    %v364 = vadd.f32 %v349, %v357
    %v365 = vadd.f32 %v350, %v357
    %v366 = vadd.f32 %v351, %v357
    %367 = vst.msk [vmem:[%s6] sm:$0xff] %vm181, %v359
    %368 = vst.msk [vmem:[%s6 + $0x8] sm:$0xff] %vm181, %v360
    %369 = vst.msk [vmem:[%s6 + $0x10] sm:$0xff] %vm181, %v361
    %370 = vst.msk [vmem:[%s6 + $0x18] sm:$0xff] %vm181, %v362
    %371 = vst.msk [vmem:[%s6 + $0x20] sm:$0xff] %vm181, %v363
    %372 = vst.msk [vmem:[%s6 + $0x28] sm:$0xff] %vm181, %v364
    %373 = vst.msk [vmem:[%s6 + $0x30] sm:$0xff] %vm181, %v365
    %374 = vst.msk [vmem:[%s6 + $0x38] sm:$0xff] %vm181, %v366
  $region33: #{run_pallas.33} parent=0 // pred_fallthru
    _
  // Predicated region
  $region34: #{run_pallas.33} parent=0 // pred_check
    _
  $region35: #{run_pallas.33} parent=0 // pred_check_branch
    %376 = sbr.rel (0) target = $region37
  $region36: #{run_pallas.33} parent=0 // pred_region
    _
  $region37: #{run_pallas.33} parent=0 // pred_fallthru
    _
  // Predicated region
  $region38: #{run_pallas.33} parent=0 // pred_check
    _
  $region39: #{run_pallas.33} parent=0 // pred_check_branch
    %378 = sbr.rel (0) target = $region41
  $region40: #{run_pallas.33} parent=0 // pred_region
    _
  $region41: #{run_pallas.33} parent=0 // pred_fallthru
    _

// kernel: run_pallas.43
$region0: #{run_pallas.43}
  #allocation0 [shape = 'u32[]', space=smem, size = 0x4, offset = 0x4, fixed_abs, tag = 'smem constant byte address 0x4 - core index']
  #allocation1 [shape = 'u32[144,128]{1,0:T(1,128)}', space=vmem, size = 0x12000, scoped, tag = 'internal scratch']
  #allocation2 [shape = 'f32[64,64]{1,0:T(8,128)}', space=vmem, size = 0x8000, scoped, tag = 'scratch operand']
  %s0 = inlined_call_operand.vmem [shape: f32[64,64], index: 0, kind: input, shape index: {}]
  %s1 = inlined_call_operand.vmem [shape: f32[64,64], index: 1, kind: input, shape index: {}]
  %s2 = inlined_call_operand.vmem [shape: f32[1,64], index: 2, kind: input, shape index: {}]
  %s3 = inlined_call_operand.vmem [shape: f32[64,64], index: 3, kind: output, shape index: {}]
  %s4 = sld [smem:[#allocation0]]
  $region30: #{run_pallas.43} parent=0
    _
  %s6 = ssub.s32 1, %s4
  %s7 = scalar_select 0, %s6, %s4
  // Predicated region
  $region2: #{run_pallas.43} parent=0 // pred_check
    _
  $region3: #{run_pallas.43} parent=0 // pred_check_branch
    %9 = sbr.rel (0) target = $region5
  $region4: #{run_pallas.43} parent=0 // pred_region
    _
  $region5: #{run_pallas.43} parent=0 // pred_fallthru
    _
  // Predicated region
  $region6: #{run_pallas.43} parent=0 // pred_check
    _
  $region7: #{run_pallas.43} parent=0 // pred_check_branch
    %11 = sbr.rel (0) target = $region9
  $region8: #{run_pallas.43} parent=0 // pred_region
    _
  $region9: #{run_pallas.43} parent=0 // pred_fallthru
    _
  // Predicated region
  $region10: #{run_pallas.43} parent=0 // pred_check
    _
  $region11: #{run_pallas.43} parent=0 // pred_check_branch
    %13 = sbr.rel (0) target = $region13
  $region12: #{run_pallas.43} parent=0 // pred_region
    _
  $region13: #{run_pallas.43} parent=0 // pred_fallthru
    _
  %p14 = scmp.eq.s32.totalorder 0, 0
  // Predicated region
  $region14: #{run_pallas.43} parent=0 // pred_check
    %p15 = pneg %p14
  $region15: #{run_pallas.43} parent=0 // pred_check_branch
    %17 = sbr.rel (%p15) target = $region17
  $region16: #{run_pallas.43} parent=0 // pred_region
    %vm18 = vcmask 523264
    %19 = vst.msk [vmem:[#allocation2] sm:$0xff] %vm18, 0.0
    %20 = vst.msk [vmem:[#allocation2 + $0x8] sm:$0xff] %vm18, 0.0
    %21 = vst.msk [vmem:[#allocation2 + $0x10] sm:$0xff] %vm18, 0.0
    %22 = vst.msk [vmem:[#allocation2 + $0x18] sm:$0xff] %vm18, 0.0
    %23 = vst.msk [vmem:[#allocation2 + $0x20] sm:$0xff] %vm18, 0.0
    %24 = vst.msk [vmem:[#allocation2 + $0x28] sm:$0xff] %vm18, 0.0
    %25 = vst.msk [vmem:[#allocation2 + $0x30] sm:$0xff] %vm18, 0.0
    %26 = vst.msk [vmem:[#allocation2 + $0x38] sm:$0xff] %vm18, 0.0
  $region17: #{run_pallas.43} parent=0 // pred_fallthru
    _
  %v27 = vld [vmem:[#allocation2] sm:$0xff]
  %v28 = vld [vmem:[#allocation2 + $0x8] sm:$0xff]
  %v29 = vld [vmem:[#allocation2 + $0x10] sm:$0xff]
  %v30 = vld [vmem:[#allocation2 + $0x18] sm:$0xff]
  %v31 = vld [vmem:[#allocation2 + $0x20] sm:$0xff]
  %v32 = vld [vmem:[#allocation2 + $0x28] sm:$0xff]
  %v33 = vld [vmem:[#allocation2 + $0x30] sm:$0xff]
  %v34 = vld [vmem:[#allocation2 + $0x38] sm:$0xff]
  %v35 = vld [vmem:[%s0] sm:$0xff]
  %v36 = vld [vmem:[%s0 + $0x8] sm:$0xff]
  %v37 = vld [vmem:[%s0 + $0x10] sm:$0xff]
  %v38 = vld [vmem:[%s0 + $0x18] sm:$0xff]
  %v39 = vld [vmem:[%s0 + $0x20] sm:$0xff]
  %v40 = vld [vmem:[%s0 + $0x28] sm:$0xff]
  %v41 = vld [vmem:[%s0 + $0x30] sm:$0xff]
  %v42 = vld [vmem:[%s0 + $0x38] sm:$0xff]
  %v43 = vld [vmem:[%s1] sm:$0xff]
  %v44 = vld [vmem:[%s1 + $0x8] sm:$0xff]
  %v45 = vld [vmem:[%s1 + $0x10] sm:$0xff]
  %v46 = vld [vmem:[%s1 + $0x18] sm:$0xff]
  %v47 = vld [vmem:[%s1 + $0x20] sm:$0xff]
  %v48 = vld [vmem:[%s1 + $0x28] sm:$0xff]
  %v49 = vld [vmem:[%s1 + $0x30] sm:$0xff]
  %v50 = vld [vmem:[%s1 + $0x38] sm:$0xff]
  %vm51 = vcmask 523264
  %v53 = vsel %vm51, %v35, 0
  %v56 = vsel %vm51, %v36, 0
  %v59 = vsel %vm51, %v37, 0
  %v62 = vsel %vm51, %v38, 0
  %v65 = vsel %vm51, %v39, 0
  %v68 = vsel %vm51, %v40, 0
  %v71 = vsel %vm51, %v41, 0
  %v74 = vsel %vm51, %v42, 0
  %76 = vmatprep.subr.mxu0 0.0
  %77 = vmatpush1.msra.mxu0 %v43
  %78 = vmatprep.subr.mxu0 0.0
  %79 = vmatpush1.msra.mxu0 %v44
  %80 = vmatprep.subr.mxu0 0.0
  %81 = vmatpush1.msra.mxu0 %v45
  %82 = vmatprep.subr.mxu0 0.0
  %83 = vmatpush1.msra.mxu0 %v46
  %84 = vmatprep.subr.mxu0 0.0
  %85 = vmatpush1.msra.mxu0 %v47
  %86 = vmatprep.subr.mxu0 0.0
  %87 = vmatpush1.msra.mxu0 %v48
  %88 = vmatprep.subr.mxu0 0.0
  %89 = vmatpush1.msra.mxu0 %v49
  %90 = vmatprep.subr.mxu0 0.0
  %91 = vmatpush1.msra.mxu0 %v50
  %92 = vmatprep.subr.mxu0 0.0
  %93 = vmatpush1.msra.mxu0 0.0
  %94 = vmatprep.subr.mxu0 0.0
  %95 = vmatpush1.msra.mxu0 0.0
  %96 = vmatprep.subr.mxu0 0.0
  %97 = vmatpush1.msra.mxu0 0.0
  %98 = vmatprep.subr.mxu0 0.0
  %99 = vmatpush1.msra.mxu0 0.0
  %100 = vmatprep.subr.mxu0 0.0
  %101 = vmatpush1.msra.mxu0 0.0
  %102 = vmatprep.subr.mxu0 0.0
  %103 = vmatpush1.msra.mxu0 0.0
  %104 = vmatprep.subr.mxu0 0.0
  %105 = vmatpush1.msra.mxu0 0.0
  %106 = vmatprep.subr.mxu0 0.0
  %107 = vmatpush1.msra.mxu0 0.0
  %108 = vmatprep.subr.mxu0 0.0
  %109 = vmatpush1.msra.mxu0 0.0
  %110 = vmatprep.subr.mxu0 0.0
  %111 = vmatpush1.msra.mxu0 0.0
  %112 = vmatprep.subr.mxu0 0.0
  %113 = vmatpush1.msra.mxu0 0.0
  %114 = vmatprep.subr.mxu0 0.0
  %115 = vmatpush1.msra.mxu0 0.0
  %116 = vmatprep.subr.mxu0 0.0
  %117 = vmatpush1.msra.mxu0 0.0
  %118 = vmatprep.subr.mxu0 0.0
  %119 = vmatpush1.msra.mxu0 0.0
  %120 = vmatprep.subr.mxu0 0.0
  %121 = vmatpush1.msra.mxu0 0.0
  %122 = vmatprep.subr.mxu0 0.0
  %123 = vmatpush1.msra.mxu0 0.0
  %124 = vmatprep.subr.mxu0 0.0
  %125 = vmatpush1.msra.mxu0 0.0
  %126 = vmatprep.subr.mxu0 0.0
  %127 = vmatpush1.msra.mxu0 0.0
  %128 = vmatprep.subr.mxu0 0.0
  %129 = vmatpush1.msra.mxu0 0.0
  %130 = vmatprep.subr.mxu0 0.0
  %131 = vmatpush1.msra.mxu0 0.0
  %132 = vmatprep.subr.mxu0 0.0
  %133 = vmatpush1.msra.mxu0 0.0
  %134 = vmatprep.subr.mxu0 0.0
  %135 = vmatpush1.msra.mxu0 0.0
  %136 = vmatprep.subr.mxu0 0.0
  %137 = vmatpush1.msra.mxu0 0.0
  %138 = vmatprep.subr.mxu0 0.0
  %139 = vmatpush1.msra.mxu0 0.0
  %140 = vmatprep.mubr.f32.mxu0 0.0
  %141 = vmatmul.mubr.f32.gmra.mrb[0].mxu0 %v53
  %v142 = vpop.f32.mrb[0].mxu0
  %v143 = vadd.f32 0.0, %v142
  %v144 = vpop.f32.mrb[0].mxu0
  %145 = vmatprep.mubr.f32.mxu0 0.0
  %146 = vmatmul.mubr.f32.gmra.mrb[0].mxu0 %v56
  %v147 = vpop.f32.mrb[0].mxu0
  %v148 = vadd.f32 0.0, %v147
  %v149 = vpop.f32.mrb[0].mxu0
  %150 = vmatprep.mubr.f32.mxu0 0.0
  %151 = vmatmul.mubr.f32.gmra.mrb[0].mxu0 %v59
  %v152 = vpop.f32.mrb[0].mxu0
  %v153 = vadd.f32 0.0, %v152
  %v154 = vpop.f32.mrb[0].mxu0
  %155 = vmatprep.mubr.f32.mxu0 0.0
  %156 = vmatmul.mubr.f32.gmra.mrb[0].mxu0 %v62
  %v157 = vpop.f32.mrb[0].mxu0
  %v158 = vadd.f32 0.0, %v157
  %v159 = vpop.f32.mrb[0].mxu0
  %160 = vmatprep.mubr.f32.mxu0 0.0
  %161 = vmatmul.mubr.f32.gmra.mrb[0].mxu0 %v65
  %v162 = vpop.f32.mrb[0].mxu0
  %v163 = vadd.f32 0.0, %v162
  %v164 = vpop.f32.mrb[0].mxu0
  %165 = vmatprep.mubr.f32.mxu0 0.0
  %166 = vmatmul.mubr.f32.gmra.mrb[0].mxu0 %v68
  %v167 = vpop.f32.mrb[0].mxu0
  %v168 = vadd.f32 0.0, %v167
  %v169 = vpop.f32.mrb[0].mxu0
  %170 = vmatprep.mubr.f32.mxu0 0.0
  %171 = vmatmul.mubr.f32.gmra.mrb[0].mxu0 %v71
  %v172 = vpop.f32.mrb[0].mxu0
  %v173 = vadd.f32 0.0, %v172
  %v174 = vpop.f32.mrb[0].mxu0
  %175 = vmatprep.mubr.f32.mxu0 0.0
  %176 = vmatmul.mubr.f32.gmra.mrb[0].mxu0 %v74
  %v177 = vpop.f32.mrb[0].mxu0
  %v178 = vadd.f32 0.0, %v177
  %v179 = vpop.f32.mrb[0].mxu0
  %180 = vdwg.mxu0
  %v181 = vadd.f32 %v27, %v143
  %v182 = vadd.f32 %v28, %v148
  %v183 = vadd.f32 %v29, %v153
  %v184 = vadd.f32 %v30, %v158
  %v185 = vadd.f32 %v31, %v163
  %v186 = vadd.f32 %v32, %v168
  %v187 = vadd.f32 %v33, %v173
  %v188 = vadd.f32 %v34, %v178
  %189 = vst.msk [vmem:[#allocation2] sm:$0xff] %vm51, %v181
  %190 = vst.msk [vmem:[#allocation2 + $0x8] sm:$0xff] %vm51, %v182
  %191 = vst.msk [vmem:[#allocation2 + $0x10] sm:$0xff] %vm51, %v183
  %192 = vst.msk [vmem:[#allocation2 + $0x18] sm:$0xff] %vm51, %v184
  %193 = vst.msk [vmem:[#allocation2 + $0x20] sm:$0xff] %vm51, %v185
  %194 = vst.msk [vmem:[#allocation2 + $0x28] sm:$0xff] %vm51, %v186
  %195 = vst.msk [vmem:[#allocation2 + $0x30] sm:$0xff] %vm51, %v187
  %196 = vst.msk [vmem:[#allocation2 + $0x38] sm:$0xff] %vm51, %v188
  // Predicated region
  $region18: #{run_pallas.43} parent=0 // pred_check
    %p197 = pneg %p14
  $region19: #{run_pallas.43} parent=0 // pred_check_branch
    %199 = sbr.rel (%p197) target = $region21
  $region20: #{run_pallas.43} parent=0 // pred_region
    %v200 = vld [vmem:[#allocation2] sm:$0xff]
    %v201 = vld [vmem:[#allocation2 + $0x8] sm:$0xff]
    %v202 = vld [vmem:[#allocation2 + $0x10] sm:$0xff]
    %v203 = vld [vmem:[#allocation2 + $0x18] sm:$0xff]
    %v204 = vld [vmem:[#allocation2 + $0x20] sm:$0xff]
    %v205 = vld [vmem:[#allocation2 + $0x28] sm:$0xff]
    %v206 = vld [vmem:[#allocation2 + $0x30] sm:$0xff]
    %v207 = vld [vmem:[#allocation2 + $0x38] sm:$0xff]
    %v208 = vld [vmem:[%s2] sm:$0x1]
    %v210 = vlaneseq
    %v211 = vshrl.u32 %v210, 7
    %v212 = vsub.s32 0, %v211
    %v213 = vrot.slane %v208, %v212
    %v215 = vadd.f32 %v200, %v213
    %v216 = vadd.f32 %v201, %v213
    %v217 = vadd.f32 %v202, %v213
    %v218 = vadd.f32 %v203, %v213
    %v219 = vadd.f32 %v204, %v213
    %v220 = vadd.f32 %v205, %v213
    %v221 = vadd.f32 %v206, %v213
    %v222 = vadd.f32 %v207, %v213
    %223 = vst.msk [vmem:[%s3] sm:$0xff] %vm51, %v215
    %224 = vst.msk [vmem:[%s3 + $0x8] sm:$0xff] %vm51, %v216
    %225 = vst.msk [vmem:[%s3 + $0x10] sm:$0xff] %vm51, %v217
    %226 = vst.msk [vmem:[%s3 + $0x18] sm:$0xff] %vm51, %v218
    %227 = vst.msk [vmem:[%s3 + $0x20] sm:$0xff] %vm51, %v219
    %228 = vst.msk [vmem:[%s3 + $0x28] sm:$0xff] %vm51, %v220
    %229 = vst.msk [vmem:[%s3 + $0x30] sm:$0xff] %vm51, %v221
    %230 = vst.msk [vmem:[%s3 + $0x38] sm:$0xff] %vm51, %v222
  $region21: #{run_pallas.43} parent=0 // pred_fallthru
    _
  // Predicated region
  $region22: #{run_pallas.43} parent=0 // pred_check
    _
  $region23: #{run_pallas.43} parent=0 // pred_check_branch
    %232 = sbr.rel (0) target = $region25
  $region24: #{run_pallas.43} parent=0 // pred_region
    _
  $region25: #{run_pallas.43} parent=0 // pred_fallthru
    _
  // Predicated region
  $region26: #{run_pallas.43} parent=0 // pred_check
    _
  $region27: #{run_pallas.43} parent=0 // pred_check_branch
    %234 = sbr.rel (0) target = $region29
  $region28: #{run_pallas.43} parent=0 // pred_region
    _
  $region29: #{run_pallas.43} parent=0 // pred_fallthru
    _

// kernel: run_pallas.57
$region0: #{run_pallas.57}
  #allocation0 [shape = 'u32[]', space=smem, size = 0x4, offset = 0x4, fixed_abs, tag = 'smem constant byte address 0x4 - core index']
  #allocation1 [shape = 'u32[144,128]{1,0:T(1,128)}', space=vmem, size = 0x12000, scoped, tag = 'internal scratch']
  #allocation2 [shape = 'f32[64,256]{1,0:T(8,128)}', space=vmem, size = 0x10000, scoped, tag = 'scratch operand']
  %s0 = inlined_call_operand.vmem [shape: f32[64,64], index: 0, kind: input, shape index: {}]
  %s1 = inlined_call_operand.vmem [shape: f32[64,256], index: 1, kind: input, shape index: {}]
  %s2 = inlined_call_operand.vmem [shape: f32[1,256], index: 2, kind: input, shape index: {}]
  %s3 = inlined_call_operand.hbm [shape: f32[64,256], index: 3, kind: output, shape index: {}]
  %s4 = sld [smem:[#allocation0]]
  $region30: #{run_pallas.57} parent=0
    _
  %s6 = ssub.s32 1, %s4
  %s7 = scalar_select 0, %s6, %s4
  $region1: #{run_pallas.57} parent=0
    #allocation3 [shape = 'u8[65536]{0}', space=vmem, size = 0x10000, scoped, tag = 'output window, operand 0, single buffered']
    #allocation4 [shape = 's32[1]{0}', space=sflag, size = 0x4, scoped, tag = 'scoped memory for run_pallas.57']
    %8 = vsyncpa [#allocation4], 0
    // Predicated region
    $region2: #{run_pallas.57} parent=1 // pred_check
      _
    $region3: #{run_pallas.57} parent=1 // pred_check_branch
      %10 = sbr.rel (0) target = $region5
    $region4: #{run_pallas.57} parent=1 // pred_region
      _
    $region5: #{run_pallas.57} parent=1 // pred_fallthru
      _
    // Predicated region
    $region6: #{run_pallas.57} parent=1 // pred_check
      _
    $region7: #{run_pallas.57} parent=1 // pred_check_branch
      %12 = sbr.rel (0) target = $region9
    $region8: #{run_pallas.57} parent=1 // pred_region
      _
    $region9: #{run_pallas.57} parent=1 // pred_fallthru
      _
    // Predicated region
    $region10: #{run_pallas.57} parent=1 // pred_check
      _
    $region11: #{run_pallas.57} parent=1 // pred_check_branch
      %14 = sbr.rel (0) target = $region13
    $region12: #{run_pallas.57} parent=1 // pred_region
      _
    $region13: #{run_pallas.57} parent=1 // pred_fallthru
      _
    %p15 = scmp.eq.s32.totalorder 0, 0
    // Predicated region
    $region14: #{run_pallas.57} parent=1 // pred_check
      %p16 = pneg %p15
    $region15: #{run_pallas.57} parent=1 // pred_check_branch
      %18 = sbr.rel (%p16) target = $region17
    $region16: #{run_pallas.57} parent=1 // pred_region
      %19 = vst [vmem:[#allocation2] sm:$0xff] 0.0
      %20 = vst [vmem:[#allocation2 + $0x8] sm:$0xff] 0.0
      %21 = vst [vmem:[#allocation2 + $0x10] sm:$0xff] 0.0
      %22 = vst [vmem:[#allocation2 + $0x18] sm:$0xff] 0.0
      %23 = vst [vmem:[#allocation2 + $0x20] sm:$0xff] 0.0
      %24 = vst [vmem:[#allocation2 + $0x28] sm:$0xff] 0.0
      %25 = vst [vmem:[#allocation2 + $0x30] sm:$0xff] 0.0
      %26 = vst [vmem:[#allocation2 + $0x38] sm:$0xff] 0.0
      %27 = vst [vmem:[#allocation2 + $0x40] sm:$0xff] 0.0
      %28 = vst [vmem:[#allocation2 + $0x48] sm:$0xff] 0.0
      %29 = vst [vmem:[#allocation2 + $0x50] sm:$0xff] 0.0
      %30 = vst [vmem:[#allocation2 + $0x58] sm:$0xff] 0.0
      %31 = vst [vmem:[#allocation2 + $0x60] sm:$0xff] 0.0
      %32 = vst [vmem:[#allocation2 + $0x68] sm:$0xff] 0.0
      %33 = vst [vmem:[#allocation2 + $0x70] sm:$0xff] 0.0
      %34 = vst [vmem:[#allocation2 + $0x78] sm:$0xff] 0.0
    $region17: #{run_pallas.57} parent=1 // pred_fallthru
      _
    %v35 = vld [vmem:[#allocation2] sm:$0xff]
    %v36 = vld [vmem:[#allocation2 + $0x8] sm:$0xff]
    %v37 = vld [vmem:[#allocation2 + $0x10] sm:$0xff]
    %v38 = vld [vmem:[#allocation2 + $0x18] sm:$0xff]
    %v39 = vld [vmem:[#allocation2 + $0x20] sm:$0xff]
    %v40 = vld [vmem:[#allocation2 + $0x28] sm:$0xff]
    %v41 = vld [vmem:[#allocation2 + $0x30] sm:$0xff]
    %v42 = vld [vmem:[#allocation2 + $0x38] sm:$0xff]
    %v43 = vld [vmem:[#allocation2 + $0x40] sm:$0xff]
    %v44 = vld [vmem:[#allocation2 + $0x48] sm:$0xff]
    %v45 = vld [vmem:[#allocation2 + $0x50] sm:$0xff]
    %v46 = vld [vmem:[#allocation2 + $0x58] sm:$0xff]
    %v47 = vld [vmem:[#allocation2 + $0x60] sm:$0xff]
    %v48 = vld [vmem:[#allocation2 + $0x68] sm:$0xff]
    %v49 = vld [vmem:[#allocation2 + $0x70] sm:$0xff]
    %v50 = vld [vmem:[#allocation2 + $0x78] sm:$0xff]
    %v51 = vld [vmem:[%s0] sm:$0xff]
    %v52 = vld [vmem:[%s0 + $0x8] sm:$0xff]
    %v53 = vld [vmem:[%s0 + $0x10] sm:$0xff]
    %v54 = vld [vmem:[%s0 + $0x18] sm:$0xff]
    %v55 = vld [vmem:[%s0 + $0x20] sm:$0xff]
    %v56 = vld [vmem:[%s0 + $0x28] sm:$0xff]
    %v57 = vld [vmem:[%s0 + $0x30] sm:$0xff]
    %v58 = vld [vmem:[%s0 + $0x38] sm:$0xff]
    %v59 = vld [vmem:[%s1] sm:$0xff]
    %v60 = vld [vmem:[%s1 + $0x8] sm:$0xff]
    %v61 = vld [vmem:[%s1 + $0x10] sm:$0xff]
    %v62 = vld [vmem:[%s1 + $0x18] sm:$0xff]
    %v63 = vld [vmem:[%s1 + $0x20] sm:$0xff]
    %v64 = vld [vmem:[%s1 + $0x28] sm:$0xff]
    %v65 = vld [vmem:[%s1 + $0x30] sm:$0xff]
    %v66 = vld [vmem:[%s1 + $0x38] sm:$0xff]
    %v67 = vld [vmem:[%s1 + $0x40] sm:$0xff]
    %v68 = vld [vmem:[%s1 + $0x48] sm:$0xff]
    %v69 = vld [vmem:[%s1 + $0x50] sm:$0xff]
    %v70 = vld [vmem:[%s1 + $0x58] sm:$0xff]
    %v71 = vld [vmem:[%s1 + $0x60] sm:$0xff]
    %v72 = vld [vmem:[%s1 + $0x68] sm:$0xff]
    %v73 = vld [vmem:[%s1 + $0x70] sm:$0xff]
    %v74 = vld [vmem:[%s1 + $0x78] sm:$0xff]
    %vm75 = vcmask 523264
    %v77 = vsel %vm75, %v51, 0
    %v80 = vsel %vm75, %v52, 0
    %v83 = vsel %vm75, %v53, 0
    %v86 = vsel %vm75, %v54, 0
    %v89 = vsel %vm75, %v55, 0
    %v92 = vsel %vm75, %v56, 0
    %v95 = vsel %vm75, %v57, 0
    %v98 = vsel %vm75, %v58, 0
    %100 = vmatprep.subr.mxu0 %v60
    %101 = vmatpush1.msra.mxu0 %v59
    %102 = vmatprep.subr.mxu0 %v62
    %103 = vmatpush1.msra.mxu0 %v61
    %104 = vmatprep.subr.mxu0 %v64
    %105 = vmatpush1.msra.mxu0 %v63
    %106 = vmatprep.subr.mxu0 %v66
    %107 = vmatpush1.msra.mxu0 %v65
    %108 = vmatprep.subr.mxu0 %v68
    %109 = vmatpush1.msra.mxu0 %v67
    %110 = vmatprep.subr.mxu0 %v70
    %111 = vmatpush1.msra.mxu0 %v69
    %112 = vmatprep.subr.mxu0 %v72
    %113 = vmatpush1.msra.mxu0 %v71
    %114 = vmatprep.subr.mxu0 %v74
    %115 = vmatpush1.msra.mxu0 %v73
    %116 = vmatprep.subr.mxu0 0.0
    %117 = vmatpush1.msra.mxu0 0.0
    %118 = vmatprep.subr.mxu0 0.0
    %119 = vmatpush1.msra.mxu0 0.0
    %120 = vmatprep.subr.mxu0 0.0
    %121 = vmatpush1.msra.mxu0 0.0
    %122 = vmatprep.subr.mxu0 0.0
    %123 = vmatpush1.msra.mxu0 0.0
    %124 = vmatprep.subr.mxu0 0.0
    %125 = vmatpush1.msra.mxu0 0.0
    %126 = vmatprep.subr.mxu0 0.0
    %127 = vmatpush1.msra.mxu0 0.0
    %128 = vmatprep.subr.mxu0 0.0
    %129 = vmatpush1.msra.mxu0 0.0
    %130 = vmatprep.subr.mxu0 0.0
    %131 = vmatpush1.msra.mxu0 0.0
    %132 = vmatprep.subr.mxu0 0.0
    %133 = vmatpush1.msra.mxu0 0.0
    %134 = vmatprep.subr.mxu0 0.0
    %135 = vmatpush1.msra.mxu0 0.0
    %136 = vmatprep.subr.mxu0 0.0
    %137 = vmatpush1.msra.mxu0 0.0
    %138 = vmatprep.subr.mxu0 0.0
    %139 = vmatpush1.msra.mxu0 0.0
    %140 = vmatprep.subr.mxu0 0.0
    %141 = vmatpush1.msra.mxu0 0.0
    %142 = vmatprep.subr.mxu0 0.0
    %143 = vmatpush1.msra.mxu0 0.0
    %144 = vmatprep.subr.mxu0 0.0
    %145 = vmatpush1.msra.mxu0 0.0
    %146 = vmatprep.subr.mxu0 0.0
    %147 = vmatpush1.msra.mxu0 0.0
    %148 = vmatprep.subr.mxu0 0.0
    %149 = vmatpush1.msra.mxu0 0.0
    %150 = vmatprep.subr.mxu0 0.0
    %151 = vmatpush1.msra.mxu0 0.0
    %152 = vmatprep.subr.mxu0 0.0
    %153 = vmatpush1.msra.mxu0 0.0
    %154 = vmatprep.subr.mxu0 0.0
    %155 = vmatpush1.msra.mxu0 0.0
    %156 = vmatprep.subr.mxu0 0.0
    %157 = vmatpush1.msra.mxu0 0.0
    %158 = vmatprep.subr.mxu0 0.0
    %159 = vmatpush1.msra.mxu0 0.0
    %160 = vmatprep.subr.mxu0 0.0
    %161 = vmatpush1.msra.mxu0 0.0
    %162 = vmatprep.subr.mxu0 0.0
    %163 = vmatpush1.msra.mxu0 0.0
    %164 = vmatprep.mubr.f32.mxu0 0.0
    %165 = vmatmul.mubr.f32.gmra.mrb[0].mxu0 %v77
    %v166 = vpop.f32.mrb[0].mxu0
    %v167 = vadd.f32 0.0, %v166
    %v168 = vpop.f32.mrb[0].mxu0
    %v169 = vadd.f32 0.0, %v168
    %170 = vmatprep.mubr.f32.mxu0 0.0
    %171 = vmatmul.mubr.f32.gmra.mrb[0].mxu0 %v80
    %v172 = vpop.f32.mrb[0].mxu0
    %v173 = vadd.f32 0.0, %v172
    %v174 = vpop.f32.mrb[0].mxu0
    %v175 = vadd.f32 0.0, %v174
    %176 = vmatprep.mubr.f32.mxu0 0.0
    %177 = vmatmul.mubr.f32.gmra.mrb[0].mxu0 %v83
    %v178 = vpop.f32.mrb[0].mxu0
    %v179 = vadd.f32 0.0, %v178
    %v180 = vpop.f32.mrb[0].mxu0
    %v181 = vadd.f32 0.0, %v180
    %182 = vmatprep.mubr.f32.mxu0 0.0
    %183 = vmatmul.mubr.f32.gmra.mrb[0].mxu0 %v86
    %v184 = vpop.f32.mrb[0].mxu0
    %v185 = vadd.f32 0.0, %v184
    %v186 = vpop.f32.mrb[0].mxu0
    %v187 = vadd.f32 0.0, %v186
    %188 = vmatprep.mubr.f32.mxu0 0.0
    %189 = vmatmul.mubr.f32.gmra.mrb[0].mxu0 %v89
    %v190 = vpop.f32.mrb[0].mxu0
    %v191 = vadd.f32 0.0, %v190
    %v192 = vpop.f32.mrb[0].mxu0
    %v193 = vadd.f32 0.0, %v192
    %194 = vmatprep.mubr.f32.mxu0 0.0
    %195 = vmatmul.mubr.f32.gmra.mrb[0].mxu0 %v92
    %v196 = vpop.f32.mrb[0].mxu0
    %v197 = vadd.f32 0.0, %v196
    %v198 = vpop.f32.mrb[0].mxu0
    %v199 = vadd.f32 0.0, %v198
    %200 = vmatprep.mubr.f32.mxu0 0.0
    %201 = vmatmul.mubr.f32.gmra.mrb[0].mxu0 %v95
    %v202 = vpop.f32.mrb[0].mxu0
    %v203 = vadd.f32 0.0, %v202
    %v204 = vpop.f32.mrb[0].mxu0
    %v205 = vadd.f32 0.0, %v204
    %206 = vmatprep.mubr.f32.mxu0 0.0
    %207 = vmatmul.mubr.f32.gmra.mrb[0].mxu0 %v98
    %v208 = vpop.f32.mrb[0].mxu0
    %v209 = vadd.f32 0.0, %v208
    %v210 = vpop.f32.mrb[0].mxu0
    %v211 = vadd.f32 0.0, %v210
    %212 = vdwg.mxu0
    %v213 = vadd.f32 %v35, %v167
    %v214 = vadd.f32 %v36, %v169
    %v215 = vadd.f32 %v37, %v173
    %v216 = vadd.f32 %v38, %v175
    %v217 = vadd.f32 %v39, %v179
    %v218 = vadd.f32 %v40, %v181
    %v219 = vadd.f32 %v41, %v185
    %v220 = vadd.f32 %v42, %v187
    %v221 = vadd.f32 %v43, %v191
    %v222 = vadd.f32 %v44, %v193
    %v223 = vadd.f32 %v45, %v197
    %v224 = vadd.f32 %v46, %v199
    %v225 = vadd.f32 %v47, %v203
    %v226 = vadd.f32 %v48, %v205
    %v227 = vadd.f32 %v49, %v209
    %v228 = vadd.f32 %v50, %v211
    %229 = vst [vmem:[#allocation2] sm:$0xff] %v213
    %230 = vst [vmem:[#allocation2 + $0x8] sm:$0xff] %v214
    %231 = vst [vmem:[#allocation2 + $0x10] sm:$0xff] %v215
    %232 = vst [vmem:[#allocation2 + $0x18] sm:$0xff] %v216
    %233 = vst [vmem:[#allocation2 + $0x20] sm:$0xff] %v217
    %234 = vst [vmem:[#allocation2 + $0x28] sm:$0xff] %v218
    %235 = vst [vmem:[#allocation2 + $0x30] sm:$0xff] %v219
    %236 = vst [vmem:[#allocation2 + $0x38] sm:$0xff] %v220
    %237 = vst [vmem:[#allocation2 + $0x40] sm:$0xff] %v221
    %238 = vst [vmem:[#allocation2 + $0x48] sm:$0xff] %v222
    %239 = vst [vmem:[#allocation2 + $0x50] sm:$0xff] %v223
    %240 = vst [vmem:[#allocation2 + $0x58] sm:$0xff] %v224
    %241 = vst [vmem:[#allocation2 + $0x60] sm:$0xff] %v225
    %242 = vst [vmem:[#allocation2 + $0x68] sm:$0xff] %v226
    %243 = vst [vmem:[#allocation2 + $0x70] sm:$0xff] %v227
    %244 = vst [vmem:[#allocation2 + $0x78] sm:$0xff] %v228
    // Predicated region
    $region18: #{run_pallas.57} parent=1 // pred_check
      %p245 = pneg %p15
    $region19: #{run_pallas.57} parent=1 // pred_check_branch
      %247 = sbr.rel (%p245) target = $region21
    $region20: #{run_pallas.57} parent=1 // pred_region
      %v248 = vld [vmem:[#allocation2] sm:$0xff]
      %v249 = vld [vmem:[#allocation2 + $0x8] sm:$0xff]
      %v250 = vld [vmem:[#allocation2 + $0x10] sm:$0xff]
      %v251 = vld [vmem:[#allocation2 + $0x18] sm:$0xff]
      %v252 = vld [vmem:[#allocation2 + $0x20] sm:$0xff]
      %v253 = vld [vmem:[#allocation2 + $0x28] sm:$0xff]
      %v254 = vld [vmem:[#allocation2 + $0x30] sm:$0xff]
      %v255 = vld [vmem:[#allocation2 + $0x38] sm:$0xff]
      %v256 = vld [vmem:[#allocation2 + $0x40] sm:$0xff]
      %v257 = vld [vmem:[#allocation2 + $0x48] sm:$0xff]
      %v258 = vld [vmem:[#allocation2 + $0x50] sm:$0xff]
      %v259 = vld [vmem:[#allocation2 + $0x58] sm:$0xff]
      %v260 = vld [vmem:[#allocation2 + $0x60] sm:$0xff]
      %v261 = vld [vmem:[#allocation2 + $0x68] sm:$0xff]
      %v262 = vld [vmem:[#allocation2 + $0x70] sm:$0xff]
      %v263 = vld [vmem:[#allocation2 + $0x78] sm:$0xff]
      %v264 = vld [vmem:[%s2] sm:$0x3]
      %v266 = vlaneseq
      %v267 = vshrl.u32 %v266, 7
      %v268 = vsub.s32 0, %v267
      %v269 = vrot.slane %v264, %v268
      %v270 = vlaneseq
      %v271 = vshrl.u32 %v270, 7
      %v272 = vsub.s32 1, %v271
      %v273 = vrot.slane %v264, %v272
      %v276 = vadd.f32 %v248, %v269
      %v277 = vadd.f32 %v249, %v273
      %v278 = vadd.f32 %v250, %v269
      %v279 = vadd.f32 %v251, %v273
      %v280 = vadd.f32 %v252, %v269
      %v281 = vadd.f32 %v253, %v273
      %v282 = vadd.f32 %v254, %v269
      %v283 = vadd.f32 %v255, %v273
      %v284 = vadd.f32 %v256, %v269
      %v285 = vadd.f32 %v257, %v273
      %v286 = vadd.f32 %v258, %v269
      %v287 = vadd.f32 %v259, %v273
      %v288 = vadd.f32 %v260, %v269
      %v289 = vadd.f32 %v261, %v273
      %v290 = vadd.f32 %v262, %v269
      %v291 = vadd.f32 %v263, %v273
      %292 = vst [vmem:[#allocation3] sm:$0xff] %v276
      %293 = vst [vmem:[#allocation3 + $0x8] sm:$0xff] %v277
      %294 = vst [vmem:[#allocation3 + $0x10] sm:$0xff] %v278
      %295 = vst [vmem:[#allocation3 + $0x18] sm:$0xff] %v279
      %296 = vst [vmem:[#allocation3 + $0x20] sm:$0xff] %v280
      %297 = vst [vmem:[#allocation3 + $0x28] sm:$0xff] %v281
      %298 = vst [vmem:[#allocation3 + $0x30] sm:$0xff] %v282
      %299 = vst [vmem:[#allocation3 + $0x38] sm:$0xff] %v283
      %300 = vst [vmem:[#allocation3 + $0x40] sm:$0xff] %v284
      %301 = vst [vmem:[#allocation3 + $0x48] sm:$0xff] %v285
      %302 = vst [vmem:[#allocation3 + $0x50] sm:$0xff] %v286
      %303 = vst [vmem:[#allocation3 + $0x58] sm:$0xff] %v287
      %304 = vst [vmem:[#allocation3 + $0x60] sm:$0xff] %v288
      %305 = vst [vmem:[#allocation3 + $0x68] sm:$0xff] %v289
      %306 = vst [vmem:[#allocation3 + $0x70] sm:$0xff] %v290
      %307 = vst [vmem:[#allocation3 + $0x78] sm:$0xff] %v291
    $region21: #{run_pallas.57} parent=1 // pred_fallthru
      _
    // Predicated region
    $region22: #{run_pallas.57} parent=1 // pred_check
      _
    $region23: #{run_pallas.57} parent=1 // pred_check_branch
      %309 = sbr.rel (0) target = $region25
    $region24: #{run_pallas.57} parent=1 // pred_region
      %s311 = ssub.s32 2048, 2048
      %312 = vsyncadd [#allocation4], %s311
      %s313 = sshll.u32 [#allocation3], 4
      %s314 = int_to_ptr.vmem [resolvable:$true] %s313
      %319 = dma.vmem_to_hbm [thread:$0]  %s314, 2048, %s3, [#allocation4], 256, 256, 16
    $region25: #{run_pallas.57} parent=1 // pred_fallthru
      _
    // Predicated region
    $region26: #{run_pallas.57} parent=1 // pred_check
      _
    $region27: #{run_pallas.57} parent=1 // pred_check_branch
      %321 = sbr.rel (0) target = $region29
    $region28: #{run_pallas.57} parent=1 // pred_region
      %322 = dma.done [#allocation4], 2048
    $region29: #{run_pallas.57} parent=1 // pred_fallthru
      _
    %323 = vsyncpa [#allocation4], 1

</llo_original>
